<compile_context>
chip_gen: v6e
topology: v6e:2x2x1
jax: 0.10.0
libtpu: 0.0.40
codegen_flags: <defaults>
</compile_context>

<pallas_src>
import functools

import jax
import jax.numpy as jnp
from jax import lax
from jax.experimental import pallas as pl
from jax.experimental.pallas import tpu as pltpu

LANE = 128       # lane width: OC and contraction dims are padded to this
SUBLANE = 8
ROW_TILE = 512   # max output-row tile per grid step (review: 512-1024 rows)


def _round_up(x, m):
    return (x + m - 1) // m * m


# ---------------------------------------------------------------------------
# Pallas kernels
# ---------------------------------------------------------------------------
def conv_lrelu_kernel(s_ref, w_ref, b_ref, o_ref, *, owp1):
    """Conv2d(4,4,s=2,p=1) + bias + LeakyReLU(0.2) for one (row_tile, oc_tile).

    s_ref: (chunk_rows, Kp)  bf16  flattened space-to-depth input (with halo)
    w_ref: (2, 2, Kp, 128)   bf16  repacked weights, one 2x2 "tap" per [a, b]
    b_ref: (1, 128)          f32
    o_ref: (TR, 128)         bf16
        out[r] = LeakyReLU( sum_{a,b} s[r + a*owp1 + b] @ w[a, b] + bias )
    """
    tr, lane = o_ref.shape
    acc = jnp.zeros((tr, lane), jnp.float32)
    for a in range(2):                       # 2x2 taps, statically unrolled
        for b in range(2):
            xs = s_ref[pl.ds(a * owp1 + b, tr), :]          # (TR, Kp) bf16
            acc = acc + jnp.dot(xs, w_ref[a, b],
                                preferred_element_type=jnp.float32)
    y = acc + b_ref[...]                                    # f32 epilogue
    y = jnp.where(y >= 0.0, y, 0.2 * y)                     # LeakyReLU(0.2)
    o_ref[...] = y.astype(o_ref.dtype)


def head_kernel(f_ref, w_ref, b_ref, o_ref):
    """AdaptiveAvgPool2d(1) + Flatten + Linear(C, 1) as a VPU reduction.

    f_ref: (N, P, Cp) bf16; w_ref: (1, Cp) f32; b_ref: (1, 1) f32; o_ref: (N, 1) f32
    """
    pooled = jnp.mean(f_ref[...].astype(jnp.float32), axis=1)      # (N, Cp)
    o_ref[...] = (jnp.sum(pooled * w_ref[...], axis=-1, keepdims=True)
                  + b_ref[...])


# ---------------------------------------------------------------------------
# Plain-JAX glue: space-to-depth (replaces im2col) + pallas_call wrappers
# ---------------------------------------------------------------------------
def _space_to_depth_flat(x_nhwc, cin_pad):
    """Spatial pad(1), channel-pad to cin_pad, 2x2 space-to-depth, flatten.

    Pure reshape/transpose -> no data duplication (unlike im2col).
    Returns s: (N, (OH+1)*(OW+1), 4*cin_pad) bf16 and the geometry.
    """
    n, h, w, c = x_nhwc.shape
    assert h % 2 == 0 and w % 2 == 0, "even spatial dims required"
    # TODO(synk): odd spatial sizes would need an explicit edge-row fallback.
    x = x_nhwc.astype(jnp.bfloat16)
    x = jnp.pad(x, ((0, 0), (1, 1), (1, 1), (0, cin_pad - c)))
    ohp1, owp1 = (h + 2) // 2, (w + 2) // 2            # = H/2 + 1, W/2 + 1
    s = x.reshape(n, ohp1, 2, owp1, 2, cin_pad)
    s = s.transpose(0, 1, 3, 2, 4, 5).reshape(n, ohp1 * owp1, 4 * cin_pad)
    return s, (h // 2, w // 2, ohp1, owp1)


def conv_lrelu(x_nhwc, wr, b_row):
    """One Conv2d(k=4,s=2,p=1) + LeakyReLU(0.2). Returns (N, OH, OW, OCp) bf16."""
    n = x_nhwc.shape[0]
    kp, ocp = wr.shape[2], wr.shape[3]
    cin_pad = kp // 4
    assert x_nhwc.shape[-1] <= cin_pad
    s, (oh, ow, ohp1, owp1) = _space_to_depth_flat(x_nhwc, cin_pad)

    rout = _round_up(oh * owp1, SUBLANE)        # rows the kernel produces
    tr = min(ROW_TILE, rout)                    # output-row tile
    nt = -(-rout // tr)                         # number of row tiles
    chunk = _round_up(tr + owp1 + 1, SUBLANE)   # rows each tile reads (halo)
    rin = (nt - 1) * tr + chunk                 # total padded input rows
    s = jnp.pad(s, ((0, 0), (0, rin - ohp1 * owp1), (0, 0)))
    # Per-tile input slabs; only the (owp1 + 1)-row halo is duplicated.
    sc = jnp.stack([s[:, t * tr:t * tr + chunk] for t in range(nt)], axis=1)

    grid = (n, nt, ocp // LANE)
    out = pl.pallas_call(
        functools.partial(conv_lrelu_kernel, owp1=owp1),
        out_shape=jax.ShapeDtypeStruct((n, nt * tr, ocp), jnp.bfloat16),
        grid=grid,
        in_specs=[
            pl.BlockSpec((None, None, chunk, kp), lambda i, t, j: (i, t, 0, 0)),
            pl.BlockSpec((2, 2, kp, LANE), lambda i, t, j: (0, 0, 0, j)),
            pl.BlockSpec((1, LANE), lambda i, t, j: (0, j)),
        ],
        out_specs=pl.BlockSpec((None, tr, LANE), lambda i, t, j: (i, t, j)),
        compiler_params=pltpu.CompilerParams(
            dimension_semantics=("parallel", "parallel", "parallel"),
            vmem_limit_bytes=32 * 1024 * 1024,
        ),
        cost_estimate=pl.CostEstimate(
            flops=8 * n * nt * tr * kp * ocp,
            transcendentals=0,
            bytes_accessed=int(sc.size * 2 + wr.size * 2 + b_row.size * 4
                               + n * nt * tr * ocp * 2),
        ),
    )(sc, wr, b_row)

    # Drop per-row-group garbage column and row padding -> NHWC (channels padded).
    out = out[:, :oh * owp1, :].reshape(n, oh, owp1, ocp)[:, :, :ow, :]
    return out


def head(x_nhwc, w_row, b_head):
    """AdaptiveAvgPool2d(1) + Flatten + Linear(C8, 1)."""
    n, h, w, cp = x_nhwc.shape
    feats = x_nhwc.reshape(n, h * w, cp)        # small (H/16 * W/16 positions)
    # TODO(synk): fold the head into the last conv kernel's epilogue to avoid
    # this extra launch and the lane-sparse (N, 1) store.
    return pl.pallas_call(
        head_kernel,
        out_shape=jax.ShapeDtypeStruct((n, 1), jnp.float32),
        in_specs=[pl.BlockSpec(memory_space=pltpu.MemorySpace.VMEM)] * 3,
        out_specs=pl.BlockSpec(memory_space=pltpu.MemorySpace.VMEM),
    )(feats, w_row, b_head)


# ---------------------------------------------------------------------------
# One-time parameter repacking (hoisted out of the forward pass)
# ---------------------------------------------------------------------------
def prepare_params(params, in_c):
    """Pad channels to lane width, repack conv weights into the 2x2-tap layout
    used by the kernel, cast streamed tensors to bf16. Done once."""
    convs = []
    cin_pad = _round_up(in_c, 32)          # so 4*cin_pad is a multiple of 128
    for (w, b) in params["convs"]:         # w: (4, 4, ic, oc) HWIO, b: (oc,)
        _, _, ic, oc = w.shape
        ocp = _round_up(oc, LANE)
        wpad = jnp.pad(w, ((0, 0), (0, 0), (0, cin_pad - ic), (0, ocp - oc)))
        # (4,4,C,O) -> [a,p,b,q,C,O] -> [a,b,p,q,C,O] -> (2,2,4C,O); di=2a+p, dj=2b+q
        wr = wpad.reshape(2, 2, 2, 2, cin_pad, ocp).transpose(0, 2, 1, 3, 4, 5)
        wr = wr.reshape(2, 2, 4 * cin_pad, ocp).astype(jnp.bfloat16)
        brow = jnp.pad(b, (0, ocp - oc)).reshape(1, ocp).astype(jnp.float32)
        convs.append((wr, brow))
        cin_pad = ocp                      # next layer sees the padded output
    c8 = params["w_lin"].shape[0]
    w_row = jnp.pad(params["w_lin"].reshape(1, c8),
                    ((0, 0), (0, cin_pad - c8))).astype(jnp.float32)
    b_head = params["b_lin"].reshape(1, 1).astype(jnp.float32)
    return {"convs": convs, "w_head": w_row, "b_head": b_head}


def discriminator_forward(x_nchw, prepped):
    x = jnp.transpose(x_nchw, (0, 2, 3, 1))                    # NCHW -> NHWC
    for (wr, brow) in prepped["convs"]:
        x = conv_lrelu(x, wr, brow)
    return head(x, prepped["w_head"], prepped["b_head"])        # (N, 1)


# ---------------------------------------------------------------------------
# Deterministic parameter init (shapes follow nn.Conv2d(in, out, 4, 2, 1) chain)
# ---------------------------------------------------------------------------
def init_params(key, in_c=3, base=8):
    chans = [in_c, base, base * 2, base * 4, base * 8]
    convs = []
    for i in range(4):
        key, kw_, kb_ = jax.random.split(key, 3)
        ic, oc = chans[i], chans[i + 1]
        fan_in = ic * 4 * 4
        w = jax.random.normal(kw_, (4, 4, ic, oc), jnp.float32) / jnp.sqrt(fan_in)
        b = 0.01 * jax.random.normal(kb_, (oc,), jnp.float32)
        convs.append((w, b))
    key, kw_, kb_ = jax.random.split(key, 3)
    w_lin = jax.random.normal(kw_, (chans[-1], 1), jnp.float32) / jnp.sqrt(chans[-1])
    b_lin = 0.01 * jax.random.normal(kb_, (1,), jnp.float32)
    return {"convs": convs, "w_lin": w_lin, "b_lin": b_lin}


# ---------------------------------------------------------------------------
# Pure-JAX f32 reference (for correctness check)
# ---------------------------------------------------------------------------
def reference_forward(x_nchw, params):
    x = jnp.transpose(x_nchw, (0, 2, 3, 1))
    dn = ("NHWC", "HWIO", "NHWC")
    for (w, b) in params["convs"]:
        x = lax.conv_general_dilated(x, w, (2, 2), [(1, 1), (1, 1)],
                                     dimension_numbers=dn)
        x = x + b
        x = jnp.where(x >= 0, x, 0.2 * x)
    pooled = jnp.mean(x, axis=(1, 2))
    return pooled @ params["w_lin"] + params["b_lin"].reshape(1, 1)


# ---------------------------------------------------------------------------
if __name__ == "__main__":
    key = jax.random.PRNGKey(0)
    key, kx = jax.random.split(key)

    # Small shapes consistent with the module: N=2, in_c=3, H=W=16, base=8.
    x = jax.random.normal(kx, (2, 3, 16, 16), jnp.float32)
    params = init_params(key, in_c=3, base=8)
    prepped = prepare_params(params, in_c=3)       # one-time repack/pad/cast

    fwd = jax.jit(discriminator_forward)
    out = jax.block_until_ready(fwd(x, prepped))

    ref = jax.block_until_ready(reference_forward(x, params))
    assert out.shape == (2, 1), out.shape
    # bf16 streams / f32 accumulation -> bf16-level tolerance vs f32 reference.
    assert jnp.allclose(out, ref, atol=5e-2, rtol=5e-2), (out, ref)

    print("KERNEL_OK")
</pallas_src>

<mosaic_0001>
module attributes {stable_mosaic.version = 11 : i64} {
  func.func @conv_lrelu_kernel(%arg0: i32, %arg1: i32, %arg2: i32, %arg3: memref<1x1x88x128xbf16, #tpu.memory_space<vmem>>, %arg4: memref<2x2x128x128xbf16, #tpu.memory_space<vmem>>, %arg5: memref<1x128xf32, #tpu.memory_space<vmem>>, %arg6: memref<1x72x128xbf16, #tpu.memory_space<vmem>>) attributes {dimension_semantics = [#tpu.dimension_semantics<parallel>, #tpu.dimension_semantics<parallel>, #tpu.dimension_semantics<parallel>], iteration_bounds = array<i64: 2, 1, 1>, scalar_prefetch = 0 : i64, scratch_operands = 0 : i64, tpu.core_type = #tpu.core_type<tc>, window_params = [{transform_indices = @transform_0, window_bounds = array<i64: 1, 1, 88, 128>}, {transform_indices = @transform_1, window_bounds = array<i64: 2, 2, 128, 128>}, {transform_indices = @transform_2, window_bounds = array<i64: 1, 128>}, {transform_indices = @transform_3, window_bounds = array<i64: 1, 72, 128>}]} {
    %cst = arith.constant 0.000000e+00 : f32
    %0 = vector.broadcast %cst : f32 to vector<72x128xf32>
    %c0 = arith.constant 0 : index
    %c0_0 = arith.constant 0 : index
    %c0_1 = arith.constant 0 : index
    %c0_2 = arith.constant 0 : index
    %1 = vector.load %arg3[%c0, %c0_0, %c0_1, %c0_2] : memref<1x1x88x128xbf16, #tpu.memory_space<vmem>>, vector<1x1x72x128xbf16>
    %2 = vector.shape_cast %1 : vector<1x1x72x128xbf16> to vector<72x128xbf16>
    %c0_3 = arith.constant 0 : index
    %c0_4 = arith.constant 0 : index
    %c0_5 = arith.constant 0 : index
    %c0_6 = arith.constant 0 : index
    %3 = vector.load %arg4[%c0_3, %c0_4, %c0_5, %c0_6] : memref<2x2x128x128xbf16, #tpu.memory_space<vmem>>, vector<1x1x128x128xbf16>
    %4 = vector.shape_cast %3 : vector<1x1x128x128xbf16> to vector<128x128xbf16>
    %cst_7 = arith.constant dense<0.000000e+00> : vector<72x128xf32>
    %5 = tpu.matmul %2, %4, %cst_7 {dimension_numbers = #tpu.dot_dimension_numbers<[1], [0], [0], [1], [0, 0, 1, 1], [], []>} : vector<72x128xbf16>, vector<128x128xbf16>, vector<72x128xf32> -> vector<72x128xf32>
    %6 = arith.addf %0, %5 : vector<72x128xf32>
    %c0_8 = arith.constant 0 : index
    %c0_9 = arith.constant 0 : index
    %c1 = arith.constant 1 : index
    %c0_10 = arith.constant 0 : index
    %7 = vector.load %arg3[%c0_8, %c0_9, %c1, %c0_10] : memref<1x1x88x128xbf16, #tpu.memory_space<vmem>>, vector<1x1x72x128xbf16>
    %8 = vector.shape_cast %7 : vector<1x1x72x128xbf16> to vector<72x128xbf16>
    %c0_11 = arith.constant 0 : index
    %c1_12 = arith.constant 1 : index
    %c0_13 = arith.constant 0 : index
    %c0_14 = arith.constant 0 : index
    %9 = vector.load %arg4[%c0_11, %c1_12, %c0_13, %c0_14] : memref<2x2x128x128xbf16, #tpu.memory_space<vmem>>, vector<1x1x128x128xbf16>
    %10 = vector.shape_cast %9 : vector<1x1x128x128xbf16> to vector<128x128xbf16>
    %cst_15 = arith.constant dense<0.000000e+00> : vector<72x128xf32>
    %11 = tpu.matmul %8, %10, %cst_15 {dimension_numbers = #tpu.dot_dimension_numbers<[1], [0], [0], [1], [0, 0, 1, 1], [], []>} : vector<72x128xbf16>, vector<128x128xbf16>, vector<72x128xf32> -> vector<72x128xf32>
    %12 = arith.addf %6, %11 : vector<72x128xf32>
    %c0_16 = arith.constant 0 : index
    %c0_17 = arith.constant 0 : index
    %c9 = arith.constant 9 : index
    %c0_18 = arith.constant 0 : index
    %13 = vector.load %arg3[%c0_16, %c0_17, %c9, %c0_18] : memref<1x1x88x128xbf16, #tpu.memory_space<vmem>>, vector<1x1x72x128xbf16>
    %14 = vector.shape_cast %13 : vector<1x1x72x128xbf16> to vector<72x128xbf16>
    %c1_19 = arith.constant 1 : index
    %c0_20 = arith.constant 0 : index
    %c0_21 = arith.constant 0 : index
    %c0_22 = arith.constant 0 : index
    %15 = vector.load %arg4[%c1_19, %c0_20, %c0_21, %c0_22] : memref<2x2x128x128xbf16, #tpu.memory_space<vmem>>, vector<1x1x128x128xbf16>
    %16 = vector.shape_cast %15 : vector<1x1x128x128xbf16> to vector<128x128xbf16>
    %cst_23 = arith.constant dense<0.000000e+00> : vector<72x128xf32>
    %17 = tpu.matmul %14, %16, %cst_23 {dimension_numbers = #tpu.dot_dimension_numbers<[1], [0], [0], [1], [0, 0, 1, 1], [], []>} : vector<72x128xbf16>, vector<128x128xbf16>, vector<72x128xf32> -> vector<72x128xf32>
    %18 = arith.addf %12, %17 : vector<72x128xf32>
    %c0_24 = arith.constant 0 : index
    %c0_25 = arith.constant 0 : index
    %c10 = arith.constant 10 : index
    %c0_26 = arith.constant 0 : index
    %19 = vector.load %arg3[%c0_24, %c0_25, %c10, %c0_26] : memref<1x1x88x128xbf16, #tpu.memory_space<vmem>>, vector<1x1x72x128xbf16>
    %20 = vector.shape_cast %19 : vector<1x1x72x128xbf16> to vector<72x128xbf16>
    %c1_27 = arith.constant 1 : index
    %c1_28 = arith.constant 1 : index
    %c0_29 = arith.constant 0 : index
    %c0_30 = arith.constant 0 : index
    %21 = vector.load %arg4[%c1_27, %c1_28, %c0_29, %c0_30] : memref<2x2x128x128xbf16, #tpu.memory_space<vmem>>, vector<1x1x128x128xbf16>
    %22 = vector.shape_cast %21 : vector<1x1x128x128xbf16> to vector<128x128xbf16>
    %cst_31 = arith.constant dense<0.000000e+00> : vector<72x128xf32>
    %23 = tpu.matmul %20, %22, %cst_31 {dimension_numbers = #tpu.dot_dimension_numbers<[1], [0], [0], [1], [0, 0, 1, 1], [], []>} : vector<72x128xbf16>, vector<128x128xbf16>, vector<72x128xf32> -> vector<72x128xf32>
    %24 = arith.addf %18, %23 : vector<72x128xf32>
    %c0_32 = arith.constant 0 : index
    %c0_33 = arith.constant 0 : index
    %25 = vector.load %arg5[%c0_32, %c0_33] : memref<1x128xf32, #tpu.memory_space<vmem>>, vector<1x128xf32>
    %26 = vector.broadcast %25 : vector<1x128xf32> to vector<72x128xf32>
    %27 = arith.addf %24, %26 : vector<72x128xf32>
    %cst_34 = arith.constant 0.000000e+00 : f32
    %28 = vector.broadcast %cst_34 : f32 to vector<72x128xf32>
    %29 = arith.cmpf oge, %27, %28 : vector<72x128xf32>
    %cst_35 = arith.constant 2.000000e-01 : f32
    %30 = vector.broadcast %cst_35 : f32 to vector<72x128xf32>
    %31 = arith.mulf %30, %27 : vector<72x128xf32>
    %32 = arith.select %29, %27, %31 : vector<72x128xi1>, vector<72x128xf32>
    %33 = arith.truncf %32 : vector<72x128xf32> to vector<72x128xbf16>
    %c0_36 = arith.constant 0 : index
    %c0_37 = arith.constant 0 : index
    %c0_38 = arith.constant 0 : index
    %34 = vector.load %arg6[%c0_36, %c0_37, %c0_38] : memref<1x72x128xbf16, #tpu.memory_space<vmem>>, vector<1x72x128xbf16>
    %35 = vector.shape_cast %34 : vector<1x72x128xbf16> to vector<72x128xbf16>
    %36 = vector.shape_cast %33 : vector<72x128xbf16> to vector<1x72x128xbf16>
    tpu.vector_store %arg6[%c0_36, %c0_37, %c0_38], %36 {strides = array<i32>} : memref<1x72x128xbf16, #tpu.memory_space<vmem>>, vector<1x72x128xbf16>,
    return
  }
  func.func @transform_0(%arg0: i32, %arg1: i32, %arg2: i32) -> (i32, i32, i32, i32) {
    %c0_i32 = arith.constant 0 : i32
    %c0_i32_0 = arith.constant 0 : i32
    %c0_i32_1 = arith.constant 0 : i32
    return %arg0, %arg1, %c0_i32, %c0_i32_0 : i32, i32, i32, i32
  }
  func.func @transform_1(%arg0: i32, %arg1: i32, %arg2: i32) -> (i32, i32, i32, i32) {
    %c0_i32 = arith.constant 0 : i32
    %c0_i32_0 = arith.constant 0 : i32
    %c0_i32_1 = arith.constant 0 : i32
    %c0_i32_2 = arith.constant 0 : i32
    return %c0_i32, %c0_i32_0, %c0_i32_1, %arg2 : i32, i32, i32, i32
  }
  func.func @transform_2(%arg0: i32, %arg1: i32, %arg2: i32) -> (i32, i32) {
    %c0_i32 = arith.constant 0 : i32
    %c0_i32_0 = arith.constant 0 : i32
    return %c0_i32, %arg2 : i32, i32
  }
  func.func @transform_3(%arg0: i32, %arg1: i32, %arg2: i32) -> (i32, i32, i32) {
    %c0_i32 = arith.constant 0 : i32
    return %arg0, %arg1, %arg2 : i32, i32, i32
  }
}

module attributes {stable_mosaic.version = 11 : i64} {
  func.func @conv_lrelu_kernel(%arg0: i32, %arg1: i32, %arg2: i32, %arg3: memref<1x1x32x512xbf16, #tpu.memory_space<vmem>>, %arg4: memref<2x2x512x128xbf16, #tpu.memory_space<vmem>>, %arg5: memref<1x128xf32, #tpu.memory_space<vmem>>, %arg6: memref<1x24x128xbf16, #tpu.memory_space<vmem>>) attributes {dimension_semantics = [#tpu.dimension_semantics<parallel>, #tpu.dimension_semantics<parallel>, #tpu.dimension_semantics<parallel>], iteration_bounds = array<i64: 2, 1, 1>, scalar_prefetch = 0 : i64, scratch_operands = 0 : i64, tpu.core_type = #tpu.core_type<tc>, window_params = [{transform_indices = @transform_0, window_bounds = array<i64: 1, 1, 32, 512>}, {transform_indices = @transform_1, window_bounds = array<i64: 2, 2, 512, 128>}, {transform_indices = @transform_2, window_bounds = array<i64: 1, 128>}, {transform_indices = @transform_3, window_bounds = array<i64: 1, 24, 128>}]} {
    %cst = arith.constant 0.000000e+00 : f32
    %0 = vector.broadcast %cst : f32 to vector<24x128xf32>
    %c0 = arith.constant 0 : index
    %c0_0 = arith.constant 0 : index
    %c0_1 = arith.constant 0 : index
    %c0_2 = arith.constant 0 : index
    %1 = vector.load %arg3[%c0, %c0_0, %c0_1, %c0_2] : memref<1x1x32x512xbf16, #tpu.memory_space<vmem>>, vector<1x1x24x512xbf16>
    %2 = vector.shape_cast %1 : vector<1x1x24x512xbf16> to vector<24x512xbf16>
    %c0_3 = arith.constant 0 : index
    %c0_4 = arith.constant 0 : index
    %c0_5 = arith.constant 0 : index
    %c0_6 = arith.constant 0 : index
    %3 = vector.load %arg4[%c0_3, %c0_4, %c0_5, %c0_6] : memref<2x2x512x128xbf16, #tpu.memory_space<vmem>>, vector<1x1x512x128xbf16>
    %4 = vector.shape_cast %3 : vector<1x1x512x128xbf16> to vector<512x128xbf16>
    %cst_7 = arith.constant dense<0.000000e+00> : vector<24x128xf32>
    %5 = tpu.matmul %2, %4, %cst_7 {dimension_numbers = #tpu.dot_dimension_numbers<[1], [0], [0], [1], [0, 0, 1, 1], [], []>} : vector<24x512xbf16>, vector<512x128xbf16>, vector<24x128xf32> -> vector<24x128xf32>
    %6 = arith.addf %0, %5 : vector<24x128xf32>
    %c0_8 = arith.constant 0 : index
    %c0_9 = arith.constant 0 : index
    %c1 = arith.constant 1 : index
    %c0_10 = arith.constant 0 : index
    %7 = vector.load %arg3[%c0_8, %c0_9, %c1, %c0_10] : memref<1x1x32x512xbf16, #tpu.memory_space<vmem>>, vector<1x1x24x512xbf16>
    %8 = vector.shape_cast %7 : vector<1x1x24x512xbf16> to vector<24x512xbf16>
    %c0_11 = arith.constant 0 : index
    %c1_12 = arith.constant 1 : index
    %c0_13 = arith.constant 0 : index
    %c0_14 = arith.constant 0 : index
    %9 = vector.load %arg4[%c0_11, %c1_12, %c0_13, %c0_14] : memref<2x2x512x128xbf16, #tpu.memory_space<vmem>>, vector<1x1x512x128xbf16>
    %10 = vector.shape_cast %9 : vector<1x1x512x128xbf16> to vector<512x128xbf16>
    %cst_15 = arith.constant dense<0.000000e+00> : vector<24x128xf32>
    %11 = tpu.matmul %8, %10, %cst_15 {dimension_numbers = #tpu.dot_dimension_numbers<[1], [0], [0], [1], [0, 0, 1, 1], [], []>} : vector<24x512xbf16>, vector<512x128xbf16>, vector<24x128xf32> -> vector<24x128xf32>
    %12 = arith.addf %6, %11 : vector<24x128xf32>
    %c0_16 = arith.constant 0 : index
    %c0_17 = arith.constant 0 : index
    %c5 = arith.constant 5 : index
    %c0_18 = arith.constant 0 : index
    %13 = vector.load %arg3[%c0_16, %c0_17, %c5, %c0_18] : memref<1x1x32x512xbf16, #tpu.memory_space<vmem>>, vector<1x1x24x512xbf16>
    %14 = vector.shape_cast %13 : vector<1x1x24x512xbf16> to vector<24x512xbf16>
    %c1_19 = arith.constant 1 : index
    %c0_20 = arith.constant 0 : index
    %c0_21 = arith.constant 0 : index
    %c0_22 = arith.constant 0 : index
    %15 = vector.load %arg4[%c1_19, %c0_20, %c0_21, %c0_22] : memref<2x2x512x128xbf16, #tpu.memory_space<vmem>>, vector<1x1x512x128xbf16>
    %16 = vector.shape_cast %15 : vector<1x1x512x128xbf16> to vector<512x128xbf16>
    %cst_23 = arith.constant dense<0.000000e+00> : vector<24x128xf32>
    %17 = tpu.matmul %14, %16, %cst_23 {dimension_numbers = #tpu.dot_dimension_numbers<[1], [0], [0], [1], [0, 0, 1, 1], [], []>} : vector<24x512xbf16>, vector<512x128xbf16>, vector<24x128xf32> -> vector<24x128xf32>
    %18 = arith.addf %12, %17 : vector<24x128xf32>
    %c0_24 = arith.constant 0 : index
    %c0_25 = arith.constant 0 : index
    %c6 = arith.constant 6 : index
    %c0_26 = arith.constant 0 : index
    %19 = vector.load %arg3[%c0_24, %c0_25, %c6, %c0_26] : memref<1x1x32x512xbf16, #tpu.memory_space<vmem>>, vector<1x1x24x512xbf16>
    %20 = vector.shape_cast %19 : vector<1x1x24x512xbf16> to vector<24x512xbf16>
    %c1_27 = arith.constant 1 : index
    %c1_28 = arith.constant 1 : index
    %c0_29 = arith.constant 0 : index
    %c0_30 = arith.constant 0 : index
    %21 = vector.load %arg4[%c1_27, %c1_28, %c0_29, %c0_30] : memref<2x2x512x128xbf16, #tpu.memory_space<vmem>>, vector<1x1x512x128xbf16>
    %22 = vector.shape_cast %21 : vector<1x1x512x128xbf16> to vector<512x128xbf16>
    %cst_31 = arith.constant dense<0.000000e+00> : vector<24x128xf32>
    %23 = tpu.matmul %20, %22, %cst_31 {dimension_numbers = #tpu.dot_dimension_numbers<[1], [0], [0], [1], [0, 0, 1, 1], [], []>} : vector<24x512xbf16>, vector<512x128xbf16>, vector<24x128xf32> -> vector<24x128xf32>
    %24 = arith.addf %18, %23 : vector<24x128xf32>
    %c0_32 = arith.constant 0 : index
    %c0_33 = arith.constant 0 : index
    %25 = vector.load %arg5[%c0_32, %c0_33] : memref<1x128xf32, #tpu.memory_space<vmem>>, vector<1x128xf32>
    %26 = vector.broadcast %25 : vector<1x128xf32> to vector<24x128xf32>
    %27 = arith.addf %24, %26 : vector<24x128xf32>
    %cst_34 = arith.constant 0.000000e+00 : f32
    %28 = vector.broadcast %cst_34 : f32 to vector<24x128xf32>
    %29 = arith.cmpf oge, %27, %28 : vector<24x128xf32>
    %cst_35 = arith.constant 2.000000e-01 : f32
    %30 = vector.broadcast %cst_35 : f32 to vector<24x128xf32>
    %31 = arith.mulf %30, %27 : vector<24x128xf32>
    %32 = arith.select %29, %27, %31 : vector<24x128xi1>, vector<24x128xf32>
    %33 = arith.truncf %32 : vector<24x128xf32> to vector<24x128xbf16>
    %c0_36 = arith.constant 0 : index
    %c0_37 = arith.constant 0 : index
    %c0_38 = arith.constant 0 : index
    %34 = vector.load %arg6[%c0_36, %c0_37, %c0_38] : memref<1x24x128xbf16, #tpu.memory_space<vmem>>, vector<1x24x128xbf16>
    %35 = vector.shape_cast %34 : vector<1x24x128xbf16> to vector<24x128xbf16>
    %36 = vector.shape_cast %33 : vector<24x128xbf16> to vector<1x24x128xbf16>
    tpu.vector_store %arg6[%c0_36, %c0_37, %c0_38], %36 {strides = array<i32>} : memref<1x24x128xbf16, #tpu.memory_space<vmem>>, vector<1x24x128xbf16>,
    return
  }
  func.func @transform_0(%arg0: i32, %arg1: i32, %arg2: i32) -> (i32, i32, i32, i32) {
    %c0_i32 = arith.constant 0 : i32
    %c0_i32_0 = arith.constant 0 : i32
    %c0_i32_1 = arith.constant 0 : i32
    return %arg0, %arg1, %c0_i32, %c0_i32_0 : i32, i32, i32, i32
  }
  func.func @transform_1(%arg0: i32, %arg1: i32, %arg2: i32) -> (i32, i32, i32, i32) {
    %c0_i32 = arith.constant 0 : i32
    %c0_i32_0 = arith.constant 0 : i32
    %c0_i32_1 = arith.constant 0 : i32
    %c0_i32_2 = arith.constant 0 : i32
    return %c0_i32, %c0_i32_0, %c0_i32_1, %arg2 : i32, i32, i32, i32
  }
  func.func @transform_2(%arg0: i32, %arg1: i32, %arg2: i32) -> (i32, i32) {
    %c0_i32 = arith.constant 0 : i32
    %c0_i32_0 = arith.constant 0 : i32
    return %c0_i32, %arg2 : i32, i32
  }
  func.func @transform_3(%arg0: i32, %arg1: i32, %arg2: i32) -> (i32, i32, i32) {
    %c0_i32 = arith.constant 0 : i32
    return %arg0, %arg1, %arg2 : i32, i32, i32
  }
}

module attributes {stable_mosaic.version = 11 : i64} {
  func.func @conv_lrelu_kernel(%arg0: i32, %arg1: i32, %arg2: i32, %arg3: memref<1x1x16x512xbf16, #tpu.memory_space<vmem>>, %arg4: memref<2x2x512x128xbf16, #tpu.memory_space<vmem>>, %arg5: memref<1x128xf32, #tpu.memory_space<vmem>>, %arg6: memref<1x8x128xbf16, #tpu.memory_space<vmem>>) attributes {dimension_semantics = [#tpu.dimension_semantics<parallel>, #tpu.dimension_semantics<parallel>, #tpu.dimension_semantics<parallel>], iteration_bounds = array<i64: 2, 1, 1>, scalar_prefetch = 0 : i64, scratch_operands = 0 : i64, tpu.core_type = #tpu.core_type<tc>, window_params = [{transform_indices = @transform_0, window_bounds = array<i64: 1, 1, 16, 512>}, {transform_indices = @transform_1, window_bounds = array<i64: 2, 2, 512, 128>}, {transform_indices = @transform_2, window_bounds = array<i64: 1, 128>}, {transform_indices = @transform_3, window_bounds = array<i64: 1, 8, 128>}]} {
    %cst = arith.constant 0.000000e+00 : f32
    %0 = vector.broadcast %cst : f32 to vector<8x128xf32>
    %c0 = arith.constant 0 : index
    %c0_0 = arith.constant 0 : index
    %c0_1 = arith.constant 0 : index
    %c0_2 = arith.constant 0 : index
    %1 = vector.load %arg3[%c0, %c0_0, %c0_1, %c0_2] : memref<1x1x16x512xbf16, #tpu.memory_space<vmem>>, vector<1x1x8x512xbf16>
    %2 = vector.shape_cast %1 : vector<1x1x8x512xbf16> to vector<8x512xbf16>
    %c0_3 = arith.constant 0 : index
    %c0_4 = arith.constant 0 : index
    %c0_5 = arith.constant 0 : index
    %c0_6 = arith.constant 0 : index
    %3 = vector.load %arg4[%c0_3, %c0_4, %c0_5, %c0_6] : memref<2x2x512x128xbf16, #tpu.memory_space<vmem>>, vector<1x1x512x128xbf16>
    %4 = vector.shape_cast %3 : vector<1x1x512x128xbf16> to vector<512x128xbf16>
    %cst_7 = arith.constant dense<0.000000e+00> : vector<8x128xf32>
    %5 = tpu.matmul %2, %4, %cst_7 {dimension_numbers = #tpu.dot_dimension_numbers<[1], [0], [0], [1], [0, 0, 1, 1], [], []>} : vector<8x512xbf16>, vector<512x128xbf16>, vector<8x128xf32> -> vector<8x128xf32>
    %6 = arith.addf %0, %5 : vector<8x128xf32>
    %c0_8 = arith.constant 0 : index
    %c0_9 = arith.constant 0 : index
    %c1 = arith.constant 1 : index
    %c0_10 = arith.constant 0 : index
    %7 = vector.load %arg3[%c0_8, %c0_9, %c1, %c0_10] : memref<1x1x16x512xbf16, #tpu.memory_space<vmem>>, vector<1x1x8x512xbf16>
    %8 = vector.shape_cast %7 : vector<1x1x8x512xbf16> to vector<8x512xbf16>
    %c0_11 = arith.constant 0 : index
    %c1_12 = arith.constant 1 : index
    %c0_13 = arith.constant 0 : index
    %c0_14 = arith.constant 0 : index
    %9 = vector.load %arg4[%c0_11, %c1_12, %c0_13, %c0_14] : memref<2x2x512x128xbf16, #tpu.memory_space<vmem>>, vector<1x1x512x128xbf16>
    %10 = vector.shape_cast %9 : vector<1x1x512x128xbf16> to vector<512x128xbf16>
    %cst_15 = arith.constant dense<0.000000e+00> : vector<8x128xf32>
    %11 = tpu.matmul %8, %10, %cst_15 {dimension_numbers = #tpu.dot_dimension_numbers<[1], [0], [0], [1], [0, 0, 1, 1], [], []>} : vector<8x512xbf16>, vector<512x128xbf16>, vector<8x128xf32> -> vector<8x128xf32>
    %12 = arith.addf %6, %11 : vector<8x128xf32>
    %c0_16 = arith.constant 0 : index
    %c0_17 = arith.constant 0 : index
    %c3 = arith.constant 3 : index
    %c0_18 = arith.constant 0 : index
    %13 = vector.load %arg3[%c0_16, %c0_17, %c3, %c0_18] : memref<1x1x16x512xbf16, #tpu.memory_space<vmem>>, vector<1x1x8x512xbf16>
    %14 = vector.shape_cast %13 : vector<1x1x8x512xbf16> to vector<8x512xbf16>
    %c1_19 = arith.constant 1 : index
    %c0_20 = arith.constant 0 : index
    %c0_21 = arith.constant 0 : index
    %c0_22 = arith.constant 0 : index
    %15 = vector.load %arg4[%c1_19, %c0_20, %c0_21, %c0_22] : memref<2x2x512x128xbf16, #tpu.memory_space<vmem>>, vector<1x1x512x128xbf16>
    %16 = vector.shape_cast %15 : vector<1x1x512x128xbf16> to vector<512x128xbf16>
    %cst_23 = arith.constant dense<0.000000e+00> : vector<8x128xf32>
    %17 = tpu.matmul %14, %16, %cst_23 {dimension_numbers = #tpu.dot_dimension_numbers<[1], [0], [0], [1], [0, 0, 1, 1], [], []>} : vector<8x512xbf16>, vector<512x128xbf16>, vector<8x128xf32> -> vector<8x128xf32>
    %18 = arith.addf %12, %17 : vector<8x128xf32>
    %c0_24 = arith.constant 0 : index
    %c0_25 = arith.constant 0 : index
    %c4 = arith.constant 4 : index
    %c0_26 = arith.constant 0 : index
    %19 = vector.load %arg3[%c0_24, %c0_25, %c4, %c0_26] : memref<1x1x16x512xbf16, #tpu.memory_space<vmem>>, vector<1x1x8x512xbf16>
    %20 = vector.shape_cast %19 : vector<1x1x8x512xbf16> to vector<8x512xbf16>
    %c1_27 = arith.constant 1 : index
    %c1_28 = arith.constant 1 : index
    %c0_29 = arith.constant 0 : index
    %c0_30 = arith.constant 0 : index
    %21 = vector.load %arg4[%c1_27, %c1_28, %c0_29, %c0_30] : memref<2x2x512x128xbf16, #tpu.memory_space<vmem>>, vector<1x1x512x128xbf16>
    %22 = vector.shape_cast %21 : vector<1x1x512x128xbf16> to vector<512x128xbf16>
    %cst_31 = arith.constant dense<0.000000e+00> : vector<8x128xf32>
    %23 = tpu.matmul %20, %22, %cst_31 {dimension_numbers = #tpu.dot_dimension_numbers<[1], [0], [0], [1], [0, 0, 1, 1], [], []>} : vector<8x512xbf16>, vector<512x128xbf16>, vector<8x128xf32> -> vector<8x128xf32>
    %24 = arith.addf %18, %23 : vector<8x128xf32>
    %c0_32 = arith.constant 0 : index
    %c0_33 = arith.constant 0 : index
    %25 = vector.load %arg5[%c0_32, %c0_33] : memref<1x128xf32, #tpu.memory_space<vmem>>, vector<1x128xf32>
    %26 = vector.broadcast %25 : vector<1x128xf32> to vector<8x128xf32>
    %27 = arith.addf %24, %26 : vector<8x128xf32>
    %cst_34 = arith.constant 0.000000e+00 : f32
    %28 = vector.broadcast %cst_34 : f32 to vector<8x128xf32>
    %29 = arith.cmpf oge, %27, %28 : vector<8x128xf32>
    %cst_35 = arith.constant 2.000000e-01 : f32
    %30 = vector.broadcast %cst_35 : f32 to vector<8x128xf32>
    %31 = arith.mulf %30, %27 : vector<8x128xf32>
    %32 = arith.select %29, %27, %31 : vector<8x128xi1>, vector<8x128xf32>
    %33 = arith.truncf %32 : vector<8x128xf32> to vector<8x128xbf16>
    %c0_36 = arith.constant 0 : index
    %c0_37 = arith.constant 0 : index
    %c0_38 = arith.constant 0 : index
    %34 = vector.load %arg6[%c0_36, %c0_37, %c0_38] : memref<1x8x128xbf16, #tpu.memory_space<vmem>>, vector<1x8x128xbf16>
    %35 = vector.shape_cast %34 : vector<1x8x128xbf16> to vector<8x128xbf16>
    %36 = vector.shape_cast %33 : vector<8x128xbf16> to vector<1x8x128xbf16>
    tpu.vector_store %arg6[%c0_36, %c0_37, %c0_38], %36 {strides = array<i32>} : memref<1x8x128xbf16, #tpu.memory_space<vmem>>, vector<1x8x128xbf16>,
    return
  }
  func.func @transform_0(%arg0: i32, %arg1: i32, %arg2: i32) -> (i32, i32, i32, i32) {
    %c0_i32 = arith.constant 0 : i32
    %c0_i32_0 = arith.constant 0 : i32
    %c0_i32_1 = arith.constant 0 : i32
    return %arg0, %arg1, %c0_i32, %c0_i32_0 : i32, i32, i32, i32
  }
  func.func @transform_1(%arg0: i32, %arg1: i32, %arg2: i32) -> (i32, i32, i32, i32) {
    %c0_i32 = arith.constant 0 : i32
    %c0_i32_0 = arith.constant 0 : i32
    %c0_i32_1 = arith.constant 0 : i32
    %c0_i32_2 = arith.constant 0 : i32
    return %c0_i32, %c0_i32_0, %c0_i32_1, %arg2 : i32, i32, i32, i32
  }
  func.func @transform_2(%arg0: i32, %arg1: i32, %arg2: i32) -> (i32, i32) {
    %c0_i32 = arith.constant 0 : i32
    %c0_i32_0 = arith.constant 0 : i32
    return %c0_i32, %arg2 : i32, i32
  }
  func.func @transform_3(%arg0: i32, %arg1: i32, %arg2: i32) -> (i32, i32, i32) {
    %c0_i32 = arith.constant 0 : i32
    return %arg0, %arg1, %arg2 : i32, i32, i32
  }
}

module attributes {stable_mosaic.version = 11 : i64} {
  func.func @head_kernel(%arg0: memref<2x1x128xbf16, #tpu.memory_space<vmem>>, %arg1: memref<1x128xf32, #tpu.memory_space<vmem>>, %arg2: memref<1x1xf32, #tpu.memory_space<vmem>>, %arg3: memref<2x1xf32, #tpu.memory_space<vmem>>) attributes {dimension_semantics = [], scalar_prefetch = 0 : i64, scratch_operands = 0 : i64, tpu.core_type = #tpu.core_type<tc>} {
    %c0 = arith.constant 0 : index
    %c0_0 = arith.constant 0 : index
    %c0_1 = arith.constant 0 : index
    %0 = vector.load %arg0[%c0, %c0_0, %c0_1] : memref<2x1x128xbf16, #tpu.memory_space<vmem>>, vector<2x1x128xbf16>
    %1 = arith.extf %0 : vector<2x1x128xbf16> to vector<2x1x128xf32>
    %cst = arith.constant dense<0.000000e+00> : vector<2x128xf32>
    %2 = vector.multi_reduction <add>, %1, %cst [1] : vector<2x1x128xf32> to vector<2x128xf32>
    %cst_2 = arith.constant 1.000000e+00 : f32
    %3 = vector.broadcast %cst_2 : f32 to vector<2x128xf32>
    %4 = arith.divf %2, %3 : vector<2x128xf32>
    %c0_3 = arith.constant 0 : index
    %c0_4 = arith.constant 0 : index
    %5 = vector.load %arg1[%c0_3, %c0_4] : memref<1x128xf32, #tpu.memory_space<vmem>>, vector<1x128xf32>
    %6 = vector.broadcast %5 : vector<1x128xf32> to vector<2x128xf32>
    %7 = arith.mulf %4, %6 : vector<2x128xf32>
    %cst_5 = arith.constant dense<0.000000e+00> : vector<2xf32>
    %8 = vector.multi_reduction <add>, %7, %cst_5 [1] : vector<2x128xf32> to vector<2xf32>
    %9 = vector.shape_cast %8 : vector<2xf32> to vector<2x1xf32>
    %c0_6 = arith.constant 0 : index
    %c0_7 = arith.constant 0 : index
    %10 = vector.load %arg2[%c0_6, %c0_7] : memref<1x1xf32, #tpu.memory_space<vmem>>, vector<1x1xf32>
    %11 = vector.broadcast %10 : vector<1x1xf32> to vector<2x1xf32>
    %12 = arith.addf %9, %11 : vector<2x1xf32>
    %c0_8 = arith.constant 0 : index
    %c0_9 = arith.constant 0 : index
    %13 = vector.load %arg3[%c0_8, %c0_9] : memref<2x1xf32, #tpu.memory_space<vmem>>, vector<2x1xf32>
    tpu.vector_store %arg3[%c0_8, %c0_9], %12 {strides = array<i32>} : memref<2x1xf32, #tpu.memory_space<vmem>>, vector<2x1xf32>,
    return
  }
}

module attributes {stable_mosaic.version = 11 : i64} {
  func.func @conv_lrelu_kernel(%arg0: i32, %arg1: i32, %arg2: i32, %arg3: memref<1x1x16x512xbf16, #tpu.memory_space<vmem>>, %arg4: memref<2x2x512x128xbf16, #tpu.memory_space<vmem>>, %arg5: memref<1x128xf32, #tpu.memory_space<vmem>>, %arg6: memref<1x8x128xbf16, #tpu.memory_space<vmem>>) attributes {dimension_semantics = [#tpu.dimension_semantics<parallel>, #tpu.dimension_semantics<parallel>, #tpu.dimension_semantics<parallel>], iteration_bounds = array<i64: 2, 1, 1>, scalar_prefetch = 0 : i64, scratch_operands = 0 : i64, tpu.core_type = #tpu.core_type<tc>, window_params = [{transform_indices = @transform_0, window_bounds = array<i64: 1, 1, 16, 512>}, {transform_indices = @transform_1, window_bounds = array<i64: 2, 2, 512, 128>}, {transform_indices = @transform_2, window_bounds = array<i64: 1, 128>}, {transform_indices = @transform_3, window_bounds = array<i64: 1, 8, 128>}]} {
    %cst = arith.constant 0.000000e+00 : f32
    %0 = vector.broadcast %cst : f32 to vector<8x128xf32>
    %c0 = arith.constant 0 : index
    %c0_0 = arith.constant 0 : index
    %c0_1 = arith.constant 0 : index
    %c0_2 = arith.constant 0 : index
    %1 = vector.load %arg3[%c0, %c0_0, %c0_1, %c0_2] : memref<1x1x16x512xbf16, #tpu.memory_space<vmem>>, vector<1x1x8x512xbf16>
    %2 = vector.shape_cast %1 : vector<1x1x8x512xbf16> to vector<8x512xbf16>
    %c0_3 = arith.constant 0 : index
    %c0_4 = arith.constant 0 : index
    %c0_5 = arith.constant 0 : index
    %c0_6 = arith.constant 0 : index
    %3 = vector.load %arg4[%c0_3, %c0_4, %c0_5, %c0_6] : memref<2x2x512x128xbf16, #tpu.memory_space<vmem>>, vector<1x1x512x128xbf16>
    %4 = vector.shape_cast %3 : vector<1x1x512x128xbf16> to vector<512x128xbf16>
    %cst_7 = arith.constant dense<0.000000e+00> : vector<8x128xf32>
    %5 = tpu.matmul %2, %4, %cst_7 {dimension_numbers = #tpu.dot_dimension_numbers<[1], [0], [0], [1], [0, 0, 1, 1], [], []>} : vector<8x512xbf16>, vector<512x128xbf16>, vector<8x128xf32> -> vector<8x128xf32>
    %6 = arith.addf %0, %5 : vector<8x128xf32>
    %c0_8 = arith.constant 0 : index
    %c0_9 = arith.constant 0 : index
    %c1 = arith.constant 1 : index
    %c0_10 = arith.constant 0 : index
    %7 = vector.load %arg3[%c0_8, %c0_9, %c1, %c0_10] : memref<1x1x16x512xbf16, #tpu.memory_space<vmem>>, vector<1x1x8x512xbf16>
    %8 = vector.shape_cast %7 : vector<1x1x8x512xbf16> to vector<8x512xbf16>
    %c0_11 = arith.constant 0 : index
    %c1_12 = arith.constant 1 : index
    %c0_13 = arith.constant 0 : index
    %c0_14 = arith.constant 0 : index
    %9 = vector.load %arg4[%c0_11, %c1_12, %c0_13, %c0_14] : memref<2x2x512x128xbf16, #tpu.memory_space<vmem>>, vector<1x1x512x128xbf16>
    %10 = vector.shape_cast %9 : vector<1x1x512x128xbf16> to vector<512x128xbf16>
    %cst_15 = arith.constant dense<0.000000e+00> : vector<8x128xf32>
    %11 = tpu.matmul %8, %10, %cst_15 {dimension_numbers = #tpu.dot_dimension_numbers<[1], [0], [0], [1], [0, 0, 1, 1], [], []>} : vector<8x512xbf16>, vector<512x128xbf16>, vector<8x128xf32> -> vector<8x128xf32>
    %12 = arith.addf %6, %11 : vector<8x128xf32>
    %c0_16 = arith.constant 0 : index
    %c0_17 = arith.constant 0 : index
    %c2 = arith.constant 2 : index
    %c0_18 = arith.constant 0 : index
    %13 = vector.load %arg3[%c0_16, %c0_17, %c2, %c0_18] : memref<1x1x16x512xbf16, #tpu.memory_space<vmem>>, vector<1x1x8x512xbf16>
    %14 = vector.shape_cast %13 : vector<1x1x8x512xbf16> to vector<8x512xbf16>
    %c1_19 = arith.constant 1 : index
    %c0_20 = arith.constant 0 : index
    %c0_21 = arith.constant 0 : index
    %c0_22 = arith.constant 0 : index
    %15 = vector.load %arg4[%c1_19, %c0_20, %c0_21, %c0_22] : memref<2x2x512x128xbf16, #tpu.memory_space<vmem>>, vector<1x1x512x128xbf16>
    %16 = vector.shape_cast %15 : vector<1x1x512x128xbf16> to vector<512x128xbf16>
    %cst_23 = arith.constant dense<0.000000e+00> : vector<8x128xf32>
    %17 = tpu.matmul %14, %16, %cst_23 {dimension_numbers = #tpu.dot_dimension_numbers<[1], [0], [0], [1], [0, 0, 1, 1], [], []>} : vector<8x512xbf16>, vector<512x128xbf16>, vector<8x128xf32> -> vector<8x128xf32>
    %18 = arith.addf %12, %17 : vector<8x128xf32>
    %c0_24 = arith.constant 0 : index
    %c0_25 = arith.constant 0 : index
    %c3 = arith.constant 3 : index
    %c0_26 = arith.constant 0 : index
    %19 = vector.load %arg3[%c0_24, %c0_25, %c3, %c0_26] : memref<1x1x16x512xbf16, #tpu.memory_space<vmem>>, vector<1x1x8x512xbf16>
    %20 = vector.shape_cast %19 : vector<1x1x8x512xbf16> to vector<8x512xbf16>
    %c1_27 = arith.constant 1 : index
    %c1_28 = arith.constant 1 : index
    %c0_29 = arith.constant 0 : index
    %c0_30 = arith.constant 0 : index
    %21 = vector.load %arg4[%c1_27, %c1_28, %c0_29, %c0_30] : memref<2x2x512x128xbf16, #tpu.memory_space<vmem>>, vector<1x1x512x128xbf16>
    %22 = vector.shape_cast %21 : vector<1x1x512x128xbf16> to vector<512x128xbf16>
    %cst_31 = arith.constant dense<0.000000e+00> : vector<8x128xf32>
    %23 = tpu.matmul %20, %22, %cst_31 {dimension_numbers = #tpu.dot_dimension_numbers<[1], [0], [0], [1], [0, 0, 1, 1], [], []>} : vector<8x512xbf16>, vector<512x128xbf16>, vector<8x128xf32> -> vector<8x128xf32>
    %24 = arith.addf %18, %23 : vector<8x128xf32>
    %c0_32 = arith.constant 0 : index
    %c0_33 = arith.constant 0 : index
    %25 = vector.load %arg5[%c0_32, %c0_33] : memref<1x128xf32, #tpu.memory_space<vmem>>, vector<1x128xf32>
    %26 = vector.broadcast %25 : vector<1x128xf32> to vector<8x128xf32>
    %27 = arith.addf %24, %26 : vector<8x128xf32>
    %cst_34 = arith.constant 0.000000e+00 : f32
    %28 = vector.broadcast %cst_34 : f32 to vector<8x128xf32>
    %29 = arith.cmpf oge, %27, %28 : vector<8x128xf32>
    %cst_35 = arith.constant 2.000000e-01 : f32
    %30 = vector.broadcast %cst_35 : f32 to vector<8x128xf32>
    %31 = arith.mulf %30, %27 : vector<8x128xf32>
    %32 = arith.select %29, %27, %31 : vector<8x128xi1>, vector<8x128xf32>
    %33 = arith.truncf %32 : vector<8x128xf32> to vector<8x128xbf16>
    %c0_36 = arith.constant 0 : index
    %c0_37 = arith.constant 0 : index
    %c0_38 = arith.constant 0 : index
    %34 = vector.load %arg6[%c0_36, %c0_37, %c0_38] : memref<1x8x128xbf16, #tpu.memory_space<vmem>>, vector<1x8x128xbf16>
    %35 = vector.shape_cast %34 : vector<1x8x128xbf16> to vector<8x128xbf16>
    %36 = vector.shape_cast %33 : vector<8x128xbf16> to vector<1x8x128xbf16>
    tpu.vector_store %arg6[%c0_36, %c0_37, %c0_38], %36 {strides = array<i32>} : memref<1x8x128xbf16, #tpu.memory_space<vmem>>, vector<1x8x128xbf16>,
    return
  }
  func.func @transform_0(%arg0: i32, %arg1: i32, %arg2: i32) -> (i32, i32, i32, i32) {
    %c0_i32 = arith.constant 0 : i32
    %c0_i32_0 = arith.constant 0 : i32
    %c0_i32_1 = arith.constant 0 : i32
    return %arg0, %arg1, %c0_i32, %c0_i32_0 : i32, i32, i32, i32
  }
  func.func @transform_1(%arg0: i32, %arg1: i32, %arg2: i32) -> (i32, i32, i32, i32) {
    %c0_i32 = arith.constant 0 : i32
    %c0_i32_0 = arith.constant 0 : i32
    %c0_i32_1 = arith.constant 0 : i32
    %c0_i32_2 = arith.constant 0 : i32
    return %c0_i32, %c0_i32_0, %c0_i32_1, %arg2 : i32, i32, i32, i32
  }
  func.func @transform_2(%arg0: i32, %arg1: i32, %arg2: i32) -> (i32, i32) {
    %c0_i32 = arith.constant 0 : i32
    %c0_i32_0 = arith.constant 0 : i32
    return %c0_i32, %arg2 : i32, i32
  }
  func.func @transform_3(%arg0: i32, %arg1: i32, %arg2: i32) -> (i32, i32, i32) {
    %c0_i32 = arith.constant 0 : i32
    return %arg0, %arg1, %arg2 : i32, i32, i32
  }
}

</mosaic_0001>

<llo_original>
// kernel: discriminator_forward.5
$region0: #{discriminator_forward.5}
  #allocation0 [shape = 'u32[]', space=smem, size = 0x4, offset = 0x4, fixed_abs, tag = 'smem constant byte address 0x4 - core index']
  #allocation1 [shape = 'u32[144,128]{1,0:T(1,128)}', space=vmem, size = 0x12000, scoped, tag = 'internal scratch']
  %s0 = inlined_call_operand.vmem [shape: bf16[2,1,88,128], index: 0, kind: input, shape index: {}]
  %s1 = inlined_call_operand.vmem [shape: bf16[2,2,128,128], index: 1, kind: input, shape index: {}]
  %s2 = inlined_call_operand.vmem [shape: f32[1,128], index: 2, kind: input, shape index: {}]
  %s3 = inlined_call_operand.vmem [shape: bf16[2,72,128], index: 3, kind: output, shape index: {}]
  %s4 = sld [smem:[#allocation0]]
  $region45: #{discriminator_forward.5} parent=0
    _
  %s6 = ssub.s32 1, %s4
  %s7 = scalar_select 0, %s6, %s4
  loop: start=0, step=1, limit=4
  $region2: #{discriminator_forward.5} parent=0 // loop_pre_header
    _
  $region3: #{discriminator_forward.5} parent=0 // loop_header
    %s9 = sphi 0, %s13
    %p10 = scmp.ge.s32.totalorder %s9, 4
    %s16 = sphi 0, %s35
    %s17 = sphi 0, %s31
    %s18 = sphi 0, %s27
    %s19 = sphi 0, %s16
    %s20 = sphi 0, %s17
    %s21 = sphi 0, %s18
    %s22 = sphi 0, %s19
    %s23 = sphi 0, %s20
    %s24 = sphi 0, %s21
    %s40 = sphi 0, %s42
    %s43 = sphi 0, %s40
    %s44 = sphi 0, %s43
    %s60 = sphi 0, %s44
    %s66 = sphi 0, %s68
    %s69 = sphi 0, %s66
    %s70 = sphi 0, %s69
    %s86 = sphi 0, %s70
    %s92 = sphi 0, %s94
    %s95 = sphi 0, %s92
    %s96 = sphi 0, %s95
    %s112 = sphi 0, %s96
    %s122 = sphi 0, %s124
    %s125 = sphi 0, %s122
    %s126 = sphi 0, %s125
    %s142 = sphi 0, %s126
  $region4: #{discriminator_forward.5} parent=0 // loop_header_branch
    %12 = sbr.rel (%p10) target = $region8
  $region5: #{discriminator_forward.5} parent=0 // loop_body
    %s14 = ssub.s32 %s9, 1
    %s15 = ssub.s32 %s9, 2
    %s25 = sadd.s32 1, %s18
    %p26 = scmp.ge.s32.totalorder %s25, 1
    %s27 = scalar_select %p26, 0, %s25
    %s28 = sadd.s32 1, %s17
    %s29 = scalar_select %p26, %s28, %s17
    %p30 = scmp.ge.s32.totalorder %s29, 1
    %s31 = scalar_select %p30, 0, %s29
    %s32 = sadd.s32 1, %s16
    %s33 = scalar_select %p30, %s32, %s16
    %p34 = scmp.ge.s32.totalorder %s33, 2
    %s35 = scalar_select %p34, 0, %s33
    %s36 = ssub.s32 %s16, %s35
    %s37 = ssub.s32 %s17, %s31
    %s38 = sor.u32 %s36, %s37
    %p39 = scmp.eq.s32.totalorder %s38, 0
    %s41 = sadd.s32 %s40, 1
    %s42 = scalar_select %p39, %s40, %s41
    %p45 = pneg %p39
    %p46 = scmp.eq.s32.totalorder %s9, 1
    %p47 = por %p45, %p46
    %p48 = scmp.ne.s32.totalorder %s40, %s43
    %p49 = scmp.eq.s32.totalorder %s9, 0
    %p50 = por %p48, %p49
    %p51 = scmp.ne.s32.totalorder %s40, %s43
    %p52 = scmp.eq.s32.totalorder %s14, 1
    %p53 = por %p51, %p52
    %p54 = scmp.ne.s32.totalorder %s43, %s44
    %p55 = scmp.eq.s32.totalorder %s14, 0
    %p56 = por %p54, %p55
    %p57 = scmp.ne.s32.totalorder %s43, %s44
    %p58 = scmp.eq.s32.totalorder %s15, 1
    %p59 = por %p57, %p58
    %p61 = scmp.ne.s32.totalorder %s44, %s60
    %p62 = scmp.eq.s32.totalorder %s15, 0
    %p63 = por %p61, %p62
    %s64 = ssub.s32 %s18, %s27
    %p65 = scmp.eq.s32.totalorder %s64, 0
    %s67 = sadd.s32 %s66, 1
    %s68 = scalar_select %p65, %s66, %s67
    %p71 = pneg %p65
    %p72 = scmp.eq.s32.totalorder %s9, 1
    %p73 = por %p71, %p72
    %p74 = scmp.ne.s32.totalorder %s66, %s69
    %p75 = scmp.eq.s32.totalorder %s9, 0
    %p76 = por %p74, %p75
    %p77 = scmp.ne.s32.totalorder %s66, %s69
    %p78 = scmp.eq.s32.totalorder %s14, 1
    %p79 = por %p77, %p78
    %p80 = scmp.ne.s32.totalorder %s69, %s70
    %p81 = scmp.eq.s32.totalorder %s14, 0
    %p82 = por %p80, %p81
    %p83 = scmp.ne.s32.totalorder %s69, %s70
    %p84 = scmp.eq.s32.totalorder %s15, 1
    %p85 = por %p83, %p84
    %p87 = scmp.ne.s32.totalorder %s70, %s86
    %p88 = scmp.eq.s32.totalorder %s15, 0
    %p89 = por %p87, %p88
    %s90 = ssub.s32 %s18, %s27
    %p91 = scmp.eq.s32.totalorder %s90, 0
    %s93 = sadd.s32 %s92, 1
    %s94 = scalar_select %p91, %s92, %s93
    %p97 = pneg %p91
    %p98 = scmp.eq.s32.totalorder %s9, 1
    %p99 = por %p97, %p98
    %p100 = scmp.ne.s32.totalorder %s92, %s95
    %p101 = scmp.eq.s32.totalorder %s9, 0
    %p102 = por %p100, %p101
    %p103 = scmp.ne.s32.totalorder %s92, %s95
    %p104 = scmp.eq.s32.totalorder %s14, 1
    %p105 = por %p103, %p104
    %p106 = scmp.ne.s32.totalorder %s95, %s96
    %p107 = scmp.eq.s32.totalorder %s14, 0
    %p108 = por %p106, %p107
    %p109 = scmp.ne.s32.totalorder %s95, %s96
    %p110 = scmp.eq.s32.totalorder %s15, 1
    %p111 = por %p109, %p110
    %p113 = scmp.ne.s32.totalorder %s96, %s112
    %p114 = scmp.eq.s32.totalorder %s15, 0
    %p115 = por %p113, %p114
    %s116 = ssub.s32 %s16, %s35
    %s117 = ssub.s32 %s17, %s31
    %s118 = sor.u32 %s116, %s117
    %s119 = ssub.s32 %s18, %s27
    %s120 = sor.u32 %s118, %s119
    %p121 = scmp.eq.s32.totalorder %s120, 0
    %s123 = sadd.s32 %s122, 1
    %s124 = scalar_select %p121, %s122, %s123
    %p127 = pneg %p121
    %p128 = scmp.eq.s32.totalorder %s9, 1
    %p129 = por %p127, %p128
    %p130 = scmp.ne.s32.totalorder %s122, %s125
    %p131 = scmp.eq.s32.totalorder %s9, 0
    %p132 = por %p130, %p131
    %p133 = scmp.ne.s32.totalorder %s122, %s125
    %p134 = scmp.eq.s32.totalorder %s14, 1
    %p135 = por %p133, %p134
    %p136 = scmp.ne.s32.totalorder %s125, %s126
    %p137 = scmp.eq.s32.totalorder %s14, 0
    %p138 = por %p136, %p137
    %p139 = scmp.ne.s32.totalorder %s125, %s126
    %p140 = scmp.eq.s32.totalorder %s15, 1
    %p141 = por %p139, %p140
    %p143 = scmp.ne.s32.totalorder %s126, %s142
    %p144 = scmp.eq.s32.totalorder %s15, 0
    %p145 = por %p143, %p144
    %p146 = scmp.le.s32.totalorder 1, %s9
    %p147 = scmp.lt.s32.totalorder %s9, 3
    %p148 = pnand %p146, %p147
    %p149 = pneg %p148
    // Predicated region
    $region9: #{discriminator_forward.5} parent=5 // pred_check
      _
    $region10: #{discriminator_forward.5} parent=5 // pred_check_branch
      %151 = sbr.rel (%p148) target = $region12
    $region11: #{discriminator_forward.5} parent=5 // pred_region
      %s152 = ssub.s32 %s9, 1
      // Predicated region
      $region13: #{discriminator_forward.5} parent=11 // pred_check
        %p153 = pneg %p82
      $region14: #{discriminator_forward.5} parent=11 // pred_check_branch
        %155 = sbr.rel (%p153) target = $region16
      $region15: #{discriminator_forward.5} parent=11 // pred_region
        %p156 = scmp.lt.s32.totalorder %s21, 0
        %s157 = scalar_select %p156, %s21, 0
        %s158 = smul.addr %s157, 4
        %s159 = scalar_lea.vmem %s1, %s158
      $region16: #{discriminator_forward.5} parent=11 // pred_fallthru
        _
      // Predicated region
      $region17: #{discriminator_forward.5} parent=11 // pred_check
        %p160 = pneg %p108
      $region18: #{discriminator_forward.5} parent=11 // pred_check_branch
        %162 = sbr.rel (%p160) target = $region20
      $region19: #{discriminator_forward.5} parent=11 // pred_region
        %p163 = scmp.lt.s32.totalorder %s21, 0
        %s164 = scalar_select %p163, %s21, 0
        %s165 = scalar_lea.vmem %s2, %s164
      $region20: #{discriminator_forward.5} parent=11 // pred_fallthru
        _
    $region12: #{discriminator_forward.5} parent=5 // pred_fallthru
      _
    %p166 = scmp.lt.s32.totalorder %s9, 2
    // Predicated region
    $region21: #{discriminator_forward.5} parent=5 // pred_check
      %p167 = pneg %p166
    $region22: #{discriminator_forward.5} parent=5 // pred_check_branch
      %169 = sbr.rel (%p167) target = $region24
    $region23: #{discriminator_forward.5} parent=5 // pred_region
      // Predicated region
      $region25: #{discriminator_forward.5} parent=23 // pred_check
        %p170 = pneg %p50
      $region26: #{discriminator_forward.5} parent=23 // pred_check_branch
        %172 = sbr.rel (%p170) target = $region28
      $region27: #{discriminator_forward.5} parent=23 // pred_region
        %p173 = scmp.lt.s32.totalorder %s16, 1
        %s174 = scalar_select %p173, %s16, 1
        %p175 = scmp.lt.s32.totalorder %s17, 0
        %s176 = scalar_select %p175, %s17, 0
        %s177 = smul.addr %s176, 11
        %s178 = smul.addr %s174, 11
        %s179 = sadd.s32 %s177, %s178
        %s180 = smul.addr %s179, 4
        %s181 = scalar_lea.vmem %s0, %s180
      $region28: #{discriminator_forward.5} parent=23 // pred_fallthru
        _
    $region24: #{discriminator_forward.5} parent=5 // pred_fallthru
      _
    %p182 = scmp.le.s32.totalorder 1, %s9
    %p183 = scmp.lt.s32.totalorder %s9, 3
    %p184 = pnand %p182, %p183
    %p185 = pneg %p184
    // Predicated region
    $region29: #{discriminator_forward.5} parent=5 // pred_check
      _
    $region30: #{discriminator_forward.5} parent=5 // pred_check_branch
      %187 = sbr.rel (%p184) target = $region32
    $region31: #{discriminator_forward.5} parent=5 // pred_region
      %s188 = ssub.s32 %s9, 1
      %p189 = scmp.lt.s32.totalorder %s19, 1
      %s190 = scalar_select %p189, %s19, 1
      %p191 = scmp.lt.s32.totalorder %s20, 0
      %s192 = scalar_select %p191, %s20, 0
      %s193 = smul.addr %s192, 11
      %s194 = smul.addr %s190, 11
      %s195 = sadd.s32 %s193, %s194
      %s196 = smul.addr %s195, 4
      %s197 = scalar_lea.vmem %s0, %s196
      %p198 = pneg %p56
      %p199 = pneg %p53
      %p200 = scmp.lt.s32.totalorder %s21, 0
      %s201 = scalar_select %p200, %s21, 0
      %s202 = smul.addr %s201, 4
      %s203 = scalar_lea.vmem %s1, %s202
      %p204 = pneg %p82
      %p205 = pneg %p79
      %p206 = scmp.lt.s32.totalorder %s21, 0
      %s207 = scalar_select %p206, %s21, 0
      %s208 = scalar_lea.vmem %s2, %s207
      %p209 = pneg %p108
      %p210 = pneg %p105
      %p211 = pneg %p138
      %p212 = pneg %p135
      %s213 = smul.u32 9, %s20
      %p214 = scmp.lt.s32.totalorder %s19, 1
      %s215 = scalar_select %p214, %s19, 1
      %p216 = scmp.lt.s32.totalorder %s213, 8
      %s217 = scalar_select %p216, %s213, 8
      %p218 = scmp.lt.s32.totalorder %s21, 0
      %s219 = scalar_select %p218, %s21, 0
      %s220 = sadd.s32 %s219, %s217
      %s221 = smul.addr %s215, 9
      %s222 = sadd.s32 %s220, %s221
      %s223 = smul.addr %s222, 4
      %s224 = scalar_lea.vmem %s3, %s223
      %p225 = scmp.lt.s32.totalorder %s19, 1
      %s226 = scalar_select %p225, %s19, 1
      %p227 = scmp.lt.s32.totalorder %s20, 0
      %s228 = scalar_select %p227, %s20, 0
      %s229 = smul.addr %s228, 11
      %s230 = smul.addr %s226, 11
      %s231 = sadd.s32 %s229, %s230
      %s232 = smul.addr %s231, 4
      %s233 = scalar_lea.vmem %s0, %s232
      %p234 = scmp.lt.s32.totalorder %s21, 0
      %s235 = scalar_select %p234, %s21, 0
      %s236 = smul.addr %s235, 4
      %s237 = scalar_lea.vmem %s1, %s236
      %p238 = scmp.lt.s32.totalorder %s21, 0
      %s239 = scalar_select %p238, %s21, 0
      %s240 = scalar_lea.vmem %s2, %s239
      %s241 = smul.u32 9, %s20
      %p242 = scmp.lt.s32.totalorder %s19, 1
      %s243 = scalar_select %p242, %s19, 1
      %p244 = scmp.lt.s32.totalorder %s241, 8
      %s245 = scalar_select %p244, %s241, 8
      %p246 = scmp.lt.s32.totalorder %s21, 0
      %s247 = scalar_select %p246, %s21, 0
      %s248 = sadd.s32 %s247, %s245
      %s249 = smul.addr %s243, 9
      %s250 = sadd.s32 %s248, %s249
      %s251 = smul.addr %s250, 4
      %s252 = scalar_lea.vmem %s3, %s251
      %s253 = smul.u32 9, %s20
      %v255 = vld [vmem:[%s233] sm:$0xf]
      %v256 = vld [vmem:[%s233 + $0x4] sm:$0xf]
      %v257 = vld [vmem:[%s233 + $0x8] sm:$0xf]
      %v258 = vld [vmem:[%s233 + $0xc] sm:$0xf]
      %v259 = vld [vmem:[%s233 + $0x10] sm:$0xf]
      %v260 = vld [vmem:[%s233 + $0x14] sm:$0xf]
      %v261 = vld [vmem:[%s233 + $0x18] sm:$0xf]
      %v262 = vld [vmem:[%s233 + $0x1c] sm:$0xf]
      %v263 = vld [vmem:[%s233 + $0x20] sm:$0xf]
      %v264 = vld [vmem:[%s237] sm:$0xf]
      %v265 = vld [vmem:[%s237 + $0x4] sm:$0xf]
      %v266 = vld [vmem:[%s237 + $0x8] sm:$0xf]
      %v267 = vld [vmem:[%s237 + $0xc] sm:$0xf]
      %v268 = vld [vmem:[%s237 + $0x10] sm:$0xf]
      %v269 = vld [vmem:[%s237 + $0x14] sm:$0xf]
      %v270 = vld [vmem:[%s237 + $0x18] sm:$0xf]
      %v271 = vld [vmem:[%s237 + $0x1c] sm:$0xf]
      %v272 = vld [vmem:[%s237 + $0x20] sm:$0xf]
      %v273 = vld [vmem:[%s237 + $0x24] sm:$0xf]
      %v274 = vld [vmem:[%s237 + $0x28] sm:$0xf]
      %v275 = vld [vmem:[%s237 + $0x2c] sm:$0xf]
      %v276 = vld [vmem:[%s237 + $0x30] sm:$0xf]
      %v277 = vld [vmem:[%s237 + $0x34] sm:$0xf]
      %v278 = vld [vmem:[%s237 + $0x38] sm:$0xf]
      %v279 = vld [vmem:[%s237 + $0x3c] sm:$0xf]
      %v280 = vld [vmem:[%s233 + $0x24] sm:$0x1]
      %s281 = scalar_lea.vmem %s237, 64
      %v282 = vld [vmem:[%s281] sm:$0xf]
      %v283 = vld [vmem:[%s281 + $0x4] sm:$0xf]
      %v284 = vld [vmem:[%s281 + $0x8] sm:$0xf]
      %v285 = vld [vmem:[%s281 + $0xc] sm:$0xf]
      %v286 = vld [vmem:[%s281 + $0x10] sm:$0xf]
      %v287 = vld [vmem:[%s281 + $0x14] sm:$0xf]
      %v288 = vld [vmem:[%s281 + $0x18] sm:$0xf]
      %v289 = vld [vmem:[%s281 + $0x1c] sm:$0xf]
      %v290 = vld [vmem:[%s281 + $0x20] sm:$0xf]
      %v291 = vld [vmem:[%s281 + $0x24] sm:$0xf]
      %v292 = vld [vmem:[%s281 + $0x28] sm:$0xf]
      %v293 = vld [vmem:[%s281 + $0x2c] sm:$0xf]
      %v294 = vld [vmem:[%s281 + $0x30] sm:$0xf]
      %v295 = vld [vmem:[%s281 + $0x34] sm:$0xf]
      %v296 = vld [vmem:[%s281 + $0x38] sm:$0xf]
      %v297 = vld [vmem:[%s281 + $0x3c] sm:$0xf]
      %v308 = vunpack.c.l.b16 %v255
      %v309 = vunpack.c.l.b16 %v256
      %v310 = vunpack.c.l.b16 %v257
      %v311 = vunpack.c.l.b16 %v258
      %v312 = vunpack.c.l.b16 %v259
      %v313 = vunpack.c.l.b16 %v260
      %v314 = vunpack.c.l.b16 %v261
      %v315 = vunpack.c.l.b16 %v262
      %v316 = vunpack.c.l.b16 %v263
      %v317 = vunpack.c.l.b16 %v280
      %v318 = vpack.c.b16 %v309, %v308
      %v319 = vpack.c.b16 %v311, %v310
      %v320 = vpack.c.b16 %v313, %v312
      %v321 = vpack.c.b16 %v315, %v314
      %v322 = vpack.c.b16 %v317, %v316
      %vm323 = vsmask.f32 7424
      %v325 = vshrl.u32 %v318, 16
      %v327 = vshll.u32 %v318, 16
      %v329 = vrot.slane %v327, 1
      %v330 = vor.u32 %v325, %v329
      %v332 = vshll.u32 %v319, 16
      %v334 = vrot.slane %v332, 1
      %v335 = vsel %vm323, %v330, %v334
      %v336 = vshrl.u32 %v319, 16
      %v338 = vor.u32 %v336, %v334
      %v340 = vshll.u32 %v320, 16
      %v342 = vrot.slane %v340, 1
      %v343 = vsel %vm323, %v338, %v342
      %v344 = vshrl.u32 %v320, 16
      %v346 = vor.u32 %v344, %v342
      %v348 = vshll.u32 %v321, 16
      %v350 = vrot.slane %v348, 1
      %v351 = vsel %vm323, %v346, %v350
      %v352 = vshrl.u32 %v321, 16
      %v354 = vor.u32 %v352, %v350
      %v356 = vshll.u32 %v322, 16
      %v358 = vrot.slane %v356, 1
      %v359 = vsel %vm323, %v354, %v358
      %v360 = vshrl.u32 %v322, 16
      %v362 = vor.u32 %v360, %v358
      %v384 = vunpack.c.l.b16 %v282
      %v385 = vunpack.c.l.b16 %v283
      %v386 = vunpack.c.l.b16 %v284
      %v387 = vunpack.c.l.b16 %v285
      %v388 = vunpack.c.l.b16 %v286
      %v389 = vunpack.c.l.b16 %v287
      %v390 = vunpack.c.l.b16 %v288
      %v391 = vunpack.c.l.b16 %v289
      %v392 = vunpack.c.l.b16 %v290
      %v393 = vunpack.c.l.b16 %v291
      %v394 = vunpack.c.l.b16 %v292
      %v395 = vunpack.c.l.b16 %v293
      %v396 = vunpack.c.l.b16 %v294
      %v397 = vunpack.c.l.b16 %v295
      %v398 = vunpack.c.l.b16 %v296
      %v399 = vunpack.c.l.b16 %v297
      %v400 = vpack.c.b16 %v385, %v384
      %v401 = vpack.c.b16 %v387, %v386
      %v402 = vpack.c.b16 %v389, %v388
      %v403 = vpack.c.b16 %v391, %v390
      %v404 = vpack.c.b16 %v393, %v392
      %v405 = vpack.c.b16 %v395, %v394
      %v406 = vpack.c.b16 %v397, %v396
      %v407 = vpack.c.b16 %v399, %v398
      %416 = vmatprep.subr.bf16.mxu0 0
      %417 = vmatpush1.bf16.msra.mxu0 %v407
      %418 = vmatprep.subr.bf16.mxu0 0
      %419 = vmatpush1.bf16.msra.mxu0 %v406
      %420 = vmatprep.subr.bf16.mxu0 0
      %421 = vmatpush1.bf16.msra.mxu0 %v405
      %422 = vmatprep.subr.bf16.mxu0 0
      %423 = vmatpush1.bf16.msra.mxu0 %v404
      %424 = vmatprep.subr.bf16.mxu0 0
      %425 = vmatpush1.bf16.msra.mxu0 %v403
      %426 = vmatprep.subr.bf16.mxu0 0
      %427 = vmatpush1.bf16.msra.mxu0 %v402
      %428 = vmatprep.subr.bf16.mxu0 0
      %429 = vmatpush1.bf16.msra.mxu0 %v401
      %430 = vmatprep.subr.bf16.mxu0 0
      %431 = vmatpush1.bf16.msra.mxu0 %v400
      %432 = vmatprep.subr.bf16.mxu0 0
      %433 = vmatpush2.bf16.msra.mxu0 0
      %434 = vmatprep.subr.bf16.mxu0 0
      %435 = vmatpush2.bf16.msra.mxu0 0
      %436 = vmatprep.subr.bf16.mxu0 0
      %437 = vmatpush2.bf16.msra.mxu0 0
      %438 = vmatprep.subr.bf16.mxu0 0
      %439 = vmatpush2.bf16.msra.mxu0 0
      %440 = vmatprep.subr.bf16.mxu0 0
      %441 = vmatpush2.bf16.msra.mxu0 0
      %442 = vmatprep.subr.bf16.mxu0 0
      %443 = vmatpush2.bf16.msra.mxu0 0
      %444 = vmatprep.subr.bf16.mxu0 0
      %445 = vmatpush2.bf16.msra.mxu0 0
      %446 = vmatprep.subr.bf16.mxu0 0
      %447 = vmatpush2.bf16.msra.mxu0 0
      %448 = vmatprep.mubr.bf16.mxu0 0
      %449 = vmatmul.mubr.bf16.gmra.mxu0 %v335
      %v450 = vpop.f32.mrf.mxu0
      %v451 = vadd.f32 0.0, %v450
      %v452 = vpop.f32.mrf.mxu0
      %v453 = vpop.f32.mrf.mxu0
      %v454 = vadd.f32 0.0, %v453
      %v455 = vpop.f32.mrf.mxu0
      %456 = vmatprep.mubr.bf16.mxu0 0
      %457 = vmatmul.mubr.bf16.gmra.mxu0 %v343
      %v458 = vpop.f32.mrf.mxu0
      %v459 = vadd.f32 0.0, %v458
      %v460 = vpop.f32.mrf.mxu0
      %v461 = vpop.f32.mrf.mxu0
      %v462 = vadd.f32 0.0, %v461
      %v463 = vpop.f32.mrf.mxu0
      %464 = vmatprep.mubr.bf16.mxu0 0
      %465 = vmatmul.mubr.bf16.gmra.mxu0 %v351
      %v466 = vpop.f32.mrf.mxu0
      %v467 = vadd.f32 0.0, %v466
      %v468 = vpop.f32.mrf.mxu0
      %v469 = vpop.f32.mrf.mxu0
      %v470 = vadd.f32 0.0, %v469
      %v471 = vpop.f32.mrf.mxu0
      %472 = vmatprep.mubr.bf16.mxu0 0
      %473 = vmatmul.mubr.bf16.gmra.mxu0 %v359
      %v474 = vpop.f32.mrf.mxu0
      %v475 = vadd.f32 0.0, %v474
      %v476 = vpop.f32.mrf.mxu0
      %v477 = vpop.f32.mrf.mxu0
      %v478 = vadd.f32 0.0, %v477
      %v479 = vpop.f32.mrf.mxu0
      %480 = vmatprep.mubr.bf16.mxu0 0
      %481 = vmatmul.mubr.bf16.gmra.mxu0 %v362
      %v482 = vpop.f32.mrf.mxu0
      %v483 = vadd.f32 0.0, %v482
      %v484 = vpop.f32.mrf.mxu0
      %v485 = vpop.f32.mrf.mxu0
      %v486 = vpop.f32.mrf.mxu0
      %487 = vdwg.mxu0
      %v488 = vpack.c.b16 %v316, %v316
      %v510 = vunpack.c.l.b16 %v264
      %v511 = vunpack.c.l.b16 %v265
      %v512 = vunpack.c.l.b16 %v266
      %v513 = vunpack.c.l.b16 %v267
      %v514 = vunpack.c.l.b16 %v268
      %v515 = vunpack.c.l.b16 %v269
      %v516 = vunpack.c.l.b16 %v270
      %v517 = vunpack.c.l.b16 %v271
      %v518 = vunpack.c.l.b16 %v272
      %v519 = vunpack.c.l.b16 %v273
      %v520 = vunpack.c.l.b16 %v274
      %v521 = vunpack.c.l.b16 %v275
      %v522 = vunpack.c.l.b16 %v276
      %v523 = vunpack.c.l.b16 %v277
      %v524 = vunpack.c.l.b16 %v278
      %v525 = vunpack.c.l.b16 %v279
      %v526 = vpack.c.b16 %v511, %v510
      %v527 = vpack.c.b16 %v513, %v512
      %v528 = vpack.c.b16 %v515, %v514
      %v529 = vpack.c.b16 %v517, %v516
      %v530 = vpack.c.b16 %v519, %v518
      %v531 = vpack.c.b16 %v521, %v520
      %v532 = vpack.c.b16 %v523, %v522
      %v533 = vpack.c.b16 %v525, %v524
      %542 = vmatprep.subr.bf16.mxu0 0
      %543 = vmatpush1.bf16.msra.mxu0 %v533
      %544 = vmatprep.subr.bf16.mxu0 0
      %545 = vmatpush1.bf16.msra.mxu0 %v532
      %546 = vmatprep.subr.bf16.mxu0 0
      %547 = vmatpush1.bf16.msra.mxu0 %v531
      %548 = vmatprep.subr.bf16.mxu0 0
      %549 = vmatpush1.bf16.msra.mxu0 %v530
      %550 = vmatprep.subr.bf16.mxu0 0
      %551 = vmatpush1.bf16.msra.mxu0 %v529
      %552 = vmatprep.subr.bf16.mxu0 0
      %553 = vmatpush1.bf16.msra.mxu0 %v528
      %554 = vmatprep.subr.bf16.mxu0 0
      %555 = vmatpush1.bf16.msra.mxu0 %v527
      %556 = vmatprep.subr.bf16.mxu0 0
      %557 = vmatpush1.bf16.msra.mxu0 %v526
      %558 = vmatprep.subr.bf16.mxu0 0
      %559 = vmatpush2.bf16.msra.mxu0 0
      %560 = vmatprep.subr.bf16.mxu0 0
      %561 = vmatpush2.bf16.msra.mxu0 0
      %562 = vmatprep.subr.bf16.mxu0 0
      %563 = vmatpush2.bf16.msra.mxu0 0
      %564 = vmatprep.subr.bf16.mxu0 0
      %565 = vmatpush2.bf16.msra.mxu0 0
      %566 = vmatprep.subr.bf16.mxu0 0
      %567 = vmatpush2.bf16.msra.mxu0 0
      %568 = vmatprep.subr.bf16.mxu0 0
      %569 = vmatpush2.bf16.msra.mxu0 0
      %570 = vmatprep.subr.bf16.mxu0 0
      %571 = vmatpush2.bf16.msra.mxu0 0
      %572 = vmatprep.subr.bf16.mxu0 0
      %573 = vmatpush2.bf16.msra.mxu0 0
      %574 = vmatprep.mubr.bf16.mxu0 0
      %575 = vmatmul.mubr.bf16.gmra.mxu0 %v318
      %v576 = vpop.f32.mrf.mxu0
      %v577 = vadd.f32 %v451, %v576
      %v578 = vpop.f32.mrf.mxu0
      %v579 = vpop.f32.mrf.mxu0
      %v580 = vadd.f32 %v454, %v579
      %v581 = vpop.f32.mrf.mxu0
      %582 = vmatprep.mubr.bf16.mxu0 0
      %583 = vmatmul.mubr.bf16.gmra.mxu0 %v319
      %v584 = vpop.f32.mrf.mxu0
      %v585 = vadd.f32 %v459, %v584
      %v586 = vpop.f32.mrf.mxu0
      %v587 = vpop.f32.mrf.mxu0
      %v588 = vadd.f32 %v462, %v587
      %v589 = vpop.f32.mrf.mxu0
      %590 = vmatprep.mubr.bf16.mxu0 0
      %591 = vmatmul.mubr.bf16.gmra.mxu0 %v320
      %v592 = vpop.f32.mrf.mxu0
      %v593 = vadd.f32 %v467, %v592
      %v594 = vpop.f32.mrf.mxu0
      %v595 = vpop.f32.mrf.mxu0
      %v596 = vadd.f32 %v470, %v595
      %v597 = vpop.f32.mrf.mxu0
      %598 = vmatprep.mubr.bf16.mxu0 0
      %599 = vmatmul.mubr.bf16.gmra.mxu0 %v321
      %v600 = vpop.f32.mrf.mxu0
      %v601 = vadd.f32 %v475, %v600
      %v602 = vpop.f32.mrf.mxu0
      %v603 = vpop.f32.mrf.mxu0
      %v604 = vadd.f32 %v478, %v603
      %v605 = vpop.f32.mrf.mxu0
      %606 = vmatprep.mubr.bf16.mxu0 0
      %607 = vmatmul.mubr.bf16.gmra.mxu0 %v488
      %v608 = vpop.f32.mrf.mxu0
      %v609 = vadd.f32 %v483, %v608
      %v610 = vpop.f32.mrf.mxu0
      %v611 = vpop.f32.mrf.mxu0
      %v612 = vpop.f32.mrf.mxu0
      %613 = vdwg.mxu0
      %v614 = vld [vmem:[%s233 + $0x4] sm:$0xf]
      %v615 = vld [vmem:[%s233 + $0x8] sm:$0xf]
      %v616 = vld [vmem:[%s233 + $0xc] sm:$0xf]
      %v617 = vld [vmem:[%s233 + $0x10] sm:$0xf]
      %v618 = vld [vmem:[%s233 + $0x14] sm:$0xf]
      %v619 = vld [vmem:[%s233 + $0x18] sm:$0xf]
      %v620 = vld [vmem:[%s233 + $0x1c] sm:$0xf]
      %v621 = vld [vmem:[%s233 + $0x20] sm:$0xf]
      %v622 = vld [vmem:[%s233 + $0x24] sm:$0xf]
      %v623 = vld [vmem:[%s233 + $0x28] sm:$0x1]
      %s624 = scalar_lea.vmem %s237, 128
      %v625 = vld [vmem:[%s624] sm:$0xf]
      %v626 = vld [vmem:[%s624 + $0x4] sm:$0xf]
      %v627 = vld [vmem:[%s624 + $0x8] sm:$0xf]
      %v628 = vld [vmem:[%s624 + $0xc] sm:$0xf]
      %v629 = vld [vmem:[%s624 + $0x10] sm:$0xf]
      %v630 = vld [vmem:[%s624 + $0x14] sm:$0xf]
      %v631 = vld [vmem:[%s624 + $0x18] sm:$0xf]
      %v632 = vld [vmem:[%s624 + $0x1c] sm:$0xf]
      %v633 = vld [vmem:[%s624 + $0x20] sm:$0xf]
      %v634 = vld [vmem:[%s624 + $0x24] sm:$0xf]
      %v635 = vld [vmem:[%s624 + $0x28] sm:$0xf]
      %v636 = vld [vmem:[%s624 + $0x2c] sm:$0xf]
      %v637 = vld [vmem:[%s624 + $0x30] sm:$0xf]
      %v638 = vld [vmem:[%s624 + $0x34] sm:$0xf]
      %v639 = vld [vmem:[%s624 + $0x38] sm:$0xf]
      %v640 = vld [vmem:[%s624 + $0x3c] sm:$0xf]
      %v651 = vunpack.c.l.b16 %v614
      %v652 = vunpack.c.l.b16 %v615
      %v653 = vunpack.c.l.b16 %v616
      %v654 = vunpack.c.l.b16 %v617
      %v655 = vunpack.c.l.b16 %v618
      %v656 = vunpack.c.l.b16 %v619
      %v657 = vunpack.c.l.b16 %v620
      %v658 = vunpack.c.l.b16 %v621
      %v659 = vunpack.c.l.b16 %v622
      %v660 = vunpack.c.l.b16 %v623
      %v661 = vpack.c.b16 %v652, %v651
      %v662 = vpack.c.b16 %v654, %v653
      %v663 = vpack.c.b16 %v656, %v655
      %v664 = vpack.c.b16 %v658, %v657
      %v665 = vpack.c.b16 %v660, %v659
      %v667 = vshrl.u32 %v661, 16
      %v669 = vshll.u32 %v661, 16
      %v671 = vrot.slane %v669, 1
      %v672 = vor.u32 %v667, %v671
      %v674 = vshll.u32 %v662, 16
      %v676 = vrot.slane %v674, 1
      %v677 = vsel %vm323, %v672, %v676
      %v678 = vshrl.u32 %v662, 16
      %v680 = vor.u32 %v678, %v676
      %v682 = vshll.u32 %v663, 16
      %v684 = vrot.slane %v682, 1
      %v685 = vsel %vm323, %v680, %v684
      %v686 = vshrl.u32 %v663, 16
      %v688 = vor.u32 %v686, %v684
      %v690 = vshll.u32 %v664, 16
      %v692 = vrot.slane %v690, 1
      %v693 = vsel %vm323, %v688, %v692
      %v694 = vshrl.u32 %v664, 16
      %v696 = vor.u32 %v694, %v692
      %v698 = vshll.u32 %v665, 16
      %v700 = vrot.slane %v698, 1
      %v701 = vsel %vm323, %v696, %v700
      %v702 = vshrl.u32 %v665, 16
      %v704 = vor.u32 %v702, %v700
      %v726 = vunpack.c.l.b16 %v625
      %v727 = vunpack.c.l.b16 %v626
      %v728 = vunpack.c.l.b16 %v627
      %v729 = vunpack.c.l.b16 %v628
      %v730 = vunpack.c.l.b16 %v629
      %v731 = vunpack.c.l.b16 %v630
      %v732 = vunpack.c.l.b16 %v631
      %v733 = vunpack.c.l.b16 %v632
      %v734 = vunpack.c.l.b16 %v633
      %v735 = vunpack.c.l.b16 %v634
      %v736 = vunpack.c.l.b16 %v635
      %v737 = vunpack.c.l.b16 %v636
      %v738 = vunpack.c.l.b16 %v637
      %v739 = vunpack.c.l.b16 %v638
      %v740 = vunpack.c.l.b16 %v639
      %v741 = vunpack.c.l.b16 %v640
      %v742 = vpack.c.b16 %v727, %v726
      %v743 = vpack.c.b16 %v729, %v728
      %v744 = vpack.c.b16 %v731, %v730
      %v745 = vpack.c.b16 %v733, %v732
      %v746 = vpack.c.b16 %v735, %v734
      %v747 = vpack.c.b16 %v737, %v736
      %v748 = vpack.c.b16 %v739, %v738
      %v749 = vpack.c.b16 %v741, %v740
      %758 = vmatprep.subr.bf16.mxu0 0
      %759 = vmatpush1.bf16.msra.mxu0 %v749
      %760 = vmatprep.subr.bf16.mxu0 0
      %761 = vmatpush1.bf16.msra.mxu0 %v748
      %762 = vmatprep.subr.bf16.mxu0 0
      %763 = vmatpush1.bf16.msra.mxu0 %v747
      %764 = vmatprep.subr.bf16.mxu0 0
      %765 = vmatpush1.bf16.msra.mxu0 %v746
      %766 = vmatprep.subr.bf16.mxu0 0
      %767 = vmatpush1.bf16.msra.mxu0 %v745
      %768 = vmatprep.subr.bf16.mxu0 0
      %769 = vmatpush1.bf16.msra.mxu0 %v744
      %770 = vmatprep.subr.bf16.mxu0 0
      %771 = vmatpush1.bf16.msra.mxu0 %v743
      %772 = vmatprep.subr.bf16.mxu0 0
      %773 = vmatpush1.bf16.msra.mxu0 %v742
      %774 = vmatprep.subr.bf16.mxu0 0
      %775 = vmatpush2.bf16.msra.mxu0 0
      %776 = vmatprep.subr.bf16.mxu0 0
      %777 = vmatpush2.bf16.msra.mxu0 0
      %778 = vmatprep.subr.bf16.mxu0 0
      %779 = vmatpush2.bf16.msra.mxu0 0
      %780 = vmatprep.subr.bf16.mxu0 0
      %781 = vmatpush2.bf16.msra.mxu0 0
      %782 = vmatprep.subr.bf16.mxu0 0
      %783 = vmatpush2.bf16.msra.mxu0 0
      %784 = vmatprep.subr.bf16.mxu0 0
      %785 = vmatpush2.bf16.msra.mxu0 0
      %786 = vmatprep.subr.bf16.mxu0 0
      %787 = vmatpush2.bf16.msra.mxu0 0
      %788 = vmatprep.subr.bf16.mxu0 0
      %789 = vmatpush2.bf16.msra.mxu0 0
      %790 = vmatprep.mubr.bf16.mxu0 0
      %791 = vmatmul.mubr.bf16.gmra.mxu0 %v677
      %v792 = vpop.f32.mrf.mxu0
      %v793 = vadd.f32 0.0, %v792
      %v794 = vpop.f32.mrf.mxu0
      %v795 = vpop.f32.mrf.mxu0
      %v796 = vadd.f32 0.0, %v795
      %v797 = vpop.f32.mrf.mxu0
      %798 = vmatprep.mubr.bf16.mxu0 0
      %799 = vmatmul.mubr.bf16.gmra.mxu0 %v685
      %v800 = vpop.f32.mrf.mxu0
      %v801 = vadd.f32 0.0, %v800
      %v802 = vpop.f32.mrf.mxu0
      %v803 = vpop.f32.mrf.mxu0
      %v804 = vadd.f32 0.0, %v803
      %v805 = vpop.f32.mrf.mxu0
      %806 = vmatprep.mubr.bf16.mxu0 0
      %807 = vmatmul.mubr.bf16.gmra.mxu0 %v693
      %v808 = vpop.f32.mrf.mxu0
      %v809 = vadd.f32 0.0, %v808
      %v810 = vpop.f32.mrf.mxu0
      %v811 = vpop.f32.mrf.mxu0
      %v812 = vadd.f32 0.0, %v811
      %v813 = vpop.f32.mrf.mxu0
      %814 = vmatprep.mubr.bf16.mxu0 0
      %815 = vmatmul.mubr.bf16.gmra.mxu0 %v701
      %v816 = vpop.f32.mrf.mxu0
      %v817 = vadd.f32 0.0, %v816
      %v818 = vpop.f32.mrf.mxu0
      %v819 = vpop.f32.mrf.mxu0
      %v820 = vadd.f32 0.0, %v819
      %v821 = vpop.f32.mrf.mxu0
      %822 = vmatprep.mubr.bf16.mxu0 0
      %823 = vmatmul.mubr.bf16.gmra.mxu0 %v704
      %v824 = vpop.f32.mrf.mxu0
      %v825 = vadd.f32 0.0, %v824
      %v826 = vpop.f32.mrf.mxu0
      %v827 = vpop.f32.mrf.mxu0
      %v828 = vpop.f32.mrf.mxu0
      %829 = vdwg.mxu0
      %v830 = vadd.f32 %v577, %v793
      %v831 = vadd.f32 %v580, %v796
      %v832 = vadd.f32 %v585, %v801
      %v833 = vadd.f32 %v588, %v804
      %v834 = vadd.f32 %v593, %v809
      %v835 = vadd.f32 %v596, %v812
      %v836 = vadd.f32 %v601, %v817
      %v837 = vadd.f32 %v604, %v820
      %v838 = vadd.f32 %v609, %v825
      %v839 = vld [vmem:[%s233 + $0x4] sm:$0xe]
      %s840 = scalar_lea.vmem %s237, 192
      %v841 = vld [vmem:[%s840] sm:$0xf]
      %v842 = vld [vmem:[%s840 + $0x4] sm:$0xf]
      %v843 = vld [vmem:[%s840 + $0x8] sm:$0xf]
      %v844 = vld [vmem:[%s840 + $0xc] sm:$0xf]
      %v845 = vld [vmem:[%s840 + $0x10] sm:$0xf]
      %v846 = vld [vmem:[%s840 + $0x14] sm:$0xf]
      %v847 = vld [vmem:[%s840 + $0x18] sm:$0xf]
      %v848 = vld [vmem:[%s840 + $0x1c] sm:$0xf]
      %v849 = vld [vmem:[%s840 + $0x20] sm:$0xf]
      %v850 = vld [vmem:[%s840 + $0x24] sm:$0xf]
      %v851 = vld [vmem:[%s840 + $0x28] sm:$0xf]
      %v852 = vld [vmem:[%s840 + $0x2c] sm:$0xf]
      %v853 = vld [vmem:[%s840 + $0x30] sm:$0xf]
      %v854 = vld [vmem:[%s840 + $0x34] sm:$0xf]
      %v855 = vld [vmem:[%s840 + $0x38] sm:$0xf]
      %v856 = vld [vmem:[%s840 + $0x3c] sm:$0xf]
      %v858 = vunpack.c.l.b16 %v839
      %v859 = vpack.c.b16 %v652, %v858
      %vm860 = vcmask 1046528
      %v861 = vrot.slane %v859, 1
      %v862 = vrot.slane %v662, 1
      %v863 = vsel %vm860, %v861, %v862
      %v864 = vrot.slane %v663, 1
      %v865 = vsel %vm860, %v862, %v864
      %v866 = vrot.slane %v664, 1
      %v867 = vsel %vm860, %v864, %v866
      %v868 = vrot.slane %v665, 1
      %v869 = vsel %vm860, %v866, %v868
      %v891 = vunpack.c.l.b16 %v841
      %v892 = vunpack.c.l.b16 %v842
      %v893 = vunpack.c.l.b16 %v843
      %v894 = vunpack.c.l.b16 %v844
      %v895 = vunpack.c.l.b16 %v845
      %v896 = vunpack.c.l.b16 %v846
      %v897 = vunpack.c.l.b16 %v847
      %v898 = vunpack.c.l.b16 %v848
      %v899 = vunpack.c.l.b16 %v849
      %v900 = vunpack.c.l.b16 %v850
      %v901 = vunpack.c.l.b16 %v851
      %v902 = vunpack.c.l.b16 %v852
      %v903 = vunpack.c.l.b16 %v853
      %v904 = vunpack.c.l.b16 %v854
      %v905 = vunpack.c.l.b16 %v855
      %v906 = vunpack.c.l.b16 %v856
      %v907 = vpack.c.b16 %v892, %v891
      %v908 = vpack.c.b16 %v894, %v893
      %v909 = vpack.c.b16 %v896, %v895
      %v910 = vpack.c.b16 %v898, %v897
      %v911 = vpack.c.b16 %v900, %v899
      %v912 = vpack.c.b16 %v902, %v901
      %v913 = vpack.c.b16 %v904, %v903
      %v914 = vpack.c.b16 %v906, %v905
      %923 = vmatprep.subr.bf16.mxu0 0
      %924 = vmatpush1.bf16.msra.mxu0 %v914
      %925 = vmatprep.subr.bf16.mxu0 0
      %926 = vmatpush1.bf16.msra.mxu0 %v913
      %927 = vmatprep.subr.bf16.mxu0 0
      %928 = vmatpush1.bf16.msra.mxu0 %v912
      %929 = vmatprep.subr.bf16.mxu0 0
      %930 = vmatpush1.bf16.msra.mxu0 %v911
      %931 = vmatprep.subr.bf16.mxu0 0
      %932 = vmatpush1.bf16.msra.mxu0 %v910
      %933 = vmatprep.subr.bf16.mxu0 0
      %934 = vmatpush1.bf16.msra.mxu0 %v909
      %935 = vmatprep.subr.bf16.mxu0 0
      %936 = vmatpush1.bf16.msra.mxu0 %v908
      %937 = vmatprep.subr.bf16.mxu0 0
      %938 = vmatpush1.bf16.msra.mxu0 %v907
      %939 = vmatprep.subr.bf16.mxu0 0
      %940 = vmatpush2.bf16.msra.mxu0 0
      %941 = vmatprep.subr.bf16.mxu0 0
      %942 = vmatpush2.bf16.msra.mxu0 0
      %943 = vmatprep.subr.bf16.mxu0 0
      %944 = vmatpush2.bf16.msra.mxu0 0
      %945 = vmatprep.subr.bf16.mxu0 0
      %946 = vmatpush2.bf16.msra.mxu0 0
      %947 = vmatprep.subr.bf16.mxu0 0
      %948 = vmatpush2.bf16.msra.mxu0 0
      %949 = vmatprep.subr.bf16.mxu0 0
      %950 = vmatpush2.bf16.msra.mxu0 0
      %951 = vmatprep.subr.bf16.mxu0 0
      %952 = vmatpush2.bf16.msra.mxu0 0
      %953 = vmatprep.subr.bf16.mxu0 0
      %954 = vmatpush2.bf16.msra.mxu0 0
      %955 = vmatprep.mubr.bf16.mxu0 0
      %956 = vmatmul.mubr.bf16.gmra.mxu0 %v863
      %v957 = vpop.f32.mrf.mxu0
      %v958 = vadd.f32 0.0, %v957
      %v959 = vpop.f32.mrf.mxu0
      %v960 = vpop.f32.mrf.mxu0
      %v961 = vadd.f32 0.0, %v960
      %v962 = vpop.f32.mrf.mxu0
      %963 = vmatprep.mubr.bf16.mxu0 0
      %964 = vmatmul.mubr.bf16.gmra.mxu0 %v865
      %v965 = vpop.f32.mrf.mxu0
      %v966 = vadd.f32 0.0, %v965
      %v967 = vpop.f32.mrf.mxu0
      %v968 = vpop.f32.mrf.mxu0
      %v969 = vadd.f32 0.0, %v968
      %v970 = vpop.f32.mrf.mxu0
      %971 = vmatprep.mubr.bf16.mxu0 0
      %972 = vmatmul.mubr.bf16.gmra.mxu0 %v867
      %v973 = vpop.f32.mrf.mxu0
      %v974 = vadd.f32 0.0, %v973
      %v975 = vpop.f32.mrf.mxu0
      %v976 = vpop.f32.mrf.mxu0
      %v977 = vadd.f32 0.0, %v976
      %v978 = vpop.f32.mrf.mxu0
      %979 = vmatprep.mubr.bf16.mxu0 0
      %980 = vmatmul.mubr.bf16.gmra.mxu0 %v869
      %v981 = vpop.f32.mrf.mxu0
      %v982 = vadd.f32 0.0, %v981
      %v983 = vpop.f32.mrf.mxu0
      %v984 = vpop.f32.mrf.mxu0
      %v985 = vadd.f32 0.0, %v984
      %v986 = vpop.f32.mrf.mxu0
      %987 = vmatprep.mubr.bf16.mxu0 0
      %988 = vmatmul.mubr.bf16.gmra.mxu0 %v868
      %v989 = vpop.f32.mrf.mxu0
      %v990 = vadd.f32 0.0, %v989
      %v991 = vpop.f32.mrf.mxu0
      %v992 = vpop.f32.mrf.mxu0
      %v993 = vpop.f32.mrf.mxu0
      %994 = vdwg.mxu0
      %v995 = vadd.f32 %v830, %v958
      %v996 = vadd.f32 %v831, %v961
      %v997 = vadd.f32 %v832, %v966
      %v998 = vadd.f32 %v833, %v969
      %v999 = vadd.f32 %v834, %v974
      %v1000 = vadd.f32 %v835, %v977
      %v1001 = vadd.f32 %v836, %v982
      %v1002 = vadd.f32 %v837, %v985
      %v1003 = vadd.f32 %v838, %v990
      %v1004 = vld [vmem:[%s240] sm:$0x1]
      %v1006 = vlaneseq
      %v1007 = vshrl.u32 %v1006, 7
      %v1008 = vsub.s32 0, %v1007
      %v1009 = vrot.slane %v1004, %v1008
      %v1011 = vadd.f32 %v995, %v1009
      %v1012 = vadd.f32 %v996, %v1009
      %v1013 = vadd.f32 %v997, %v1009
      %v1014 = vadd.f32 %v998, %v1009
      %v1015 = vadd.f32 %v999, %v1009
      %v1016 = vadd.f32 %v1000, %v1009
      %v1017 = vadd.f32 %v1001, %v1009
      %v1018 = vadd.f32 %v1002, %v1009
      %v1019 = vadd.f32 %v1003, %v1009
      %vm1020 = vcmp.ge.f32.partialorder %v1011, 0.0
      %vm1021 = vcmp.ge.f32.partialorder %v1012, 0.0
      %vm1022 = vcmp.ge.f32.partialorder %v1013, 0.0
      %vm1023 = vcmp.ge.f32.partialorder %v1014, 0.0
      %vm1024 = vcmp.ge.f32.partialorder %v1015, 0.0
      %vm1025 = vcmp.ge.f32.partialorder %v1016, 0.0
      %vm1026 = vcmp.ge.f32.partialorder %v1017, 0.0
      %vm1027 = vcmp.ge.f32.partialorder %v1018, 0.0
      %vm1028 = vcmp.ge.f32.partialorder %v1019, 0.0
      %v1029 = vmul.f32 %v1011, 0.2
      %v1030 = vmul.f32 %v1012, 0.2
      %v1031 = vmul.f32 %v1013, 0.2
      %v1032 = vmul.f32 %v1014, 0.2
      %v1033 = vmul.f32 %v1015, 0.2
      %v1034 = vmul.f32 %v1016, 0.2
      %v1035 = vmul.f32 %v1017, 0.2
      %v1036 = vmul.f32 %v1018, 0.2
      %v1037 = vmul.f32 %v1019, 0.2
      %v1038 = vsel %vm1020, %v1011, %v1029
      %v1039 = vsel %vm1021, %v1012, %v1030
      %v1040 = vsel %vm1022, %v1013, %v1031
      %v1041 = vsel %vm1023, %v1014, %v1032
      %v1042 = vsel %vm1024, %v1015, %v1033
      %v1043 = vsel %vm1025, %v1016, %v1034
      %v1044 = vsel %vm1026, %v1017, %v1035
      %v1045 = vsel %vm1027, %v1018, %v1036
      %v1046 = vsel %vm1028, %v1019, %v1037
      %v1047 = vpack.c.bf16 %v1039, %v1038
      %v1048 = vpack.c.bf16 %v1041, %v1040
      %v1049 = vpack.c.bf16 %v1043, %v1042
      %v1050 = vpack.c.bf16 %v1045, %v1044
      %v1051 = vpack.c.bf16 %v1046, %v1046
      %v1057 = vunpack.c.l.b16 %v1047
      %v1058 = vunpack.c.h.b16 %v1047
      %v1059 = vunpack.c.l.b16 %v1048
      %v1060 = vunpack.c.h.b16 %v1048
      %v1061 = vunpack.c.l.b16 %v1049
      %v1062 = vunpack.c.h.b16 %v1049
      %v1063 = vunpack.c.l.b16 %v1050
      %v1064 = vunpack.c.h.b16 %v1050
      %v1065 = vunpack.c.l.b16 %v1051
      %v1066 = vpack.c.b16 %v1057, %v1057
      %v1067 = vpack.c.b16 %v1058, %v1058
      %v1068 = vpack.c.b16 %v1059, %v1059
      %v1069 = vpack.c.b16 %v1060, %v1060
      %v1070 = vpack.c.b16 %v1061, %v1061
      %v1071 = vpack.c.b16 %v1062, %v1062
      %v1072 = vpack.c.b16 %v1063, %v1063
      %v1073 = vpack.c.b16 %v1064, %v1064
      %v1074 = vpack.c.b16 %v1065, %v1065
      %1084 = vst [vmem:[%s252] sm:$0xf] %v1066
      %1085 = vst [vmem:[%s252 + $0x4] sm:$0xf] %v1067
      %1086 = vst [vmem:[%s252 + $0x8] sm:$0xf] %v1068
      %1087 = vst [vmem:[%s252 + $0xc] sm:$0xf] %v1069
      %1088 = vst [vmem:[%s252 + $0x10] sm:$0xf] %v1070
      %1089 = vst [vmem:[%s252 + $0x14] sm:$0xf] %v1071
      %1090 = vst [vmem:[%s252 + $0x18] sm:$0xf] %v1072
      %1091 = vst [vmem:[%s252 + $0x1c] sm:$0xf] %v1073
      %1092 = vst [vmem:[%s252 + $0x20] sm:$0xf] %v1074
      %s1093 = smul.u32 9, %s20
      %p1094 = scmp.lt.s32.totalorder %s19, 1
      %s1095 = scalar_select %p1094, %s19, 1
      %p1096 = scmp.lt.s32.totalorder %s1093, 8
      %s1097 = scalar_select %p1096, %s1093, 8
      %p1098 = scmp.lt.s32.totalorder %s21, 0
      %s1099 = scalar_select %p1098, %s21, 0
      %s1100 = sadd.s32 %s1099, %s1097
      %s1101 = smul.addr %s1095, 9
      %s1102 = sadd.s32 %s1100, %s1101
      %s1103 = smul.addr %s1102, 4
      %s1104 = scalar_lea.vmem %s3, %s1103
      // Predicated region
      $region33: #{discriminator_forward.5} parent=31 // pred_check
        %p1105 = pneg %p135
      $region34: #{discriminator_forward.5} parent=31 // pred_check_branch
        %1107 = sbr.rel (%p1105) target = $region36
      $region35: #{discriminator_forward.5} parent=31 // pred_region
        %s1108 = smul.u32 9, %s20
      $region36: #{discriminator_forward.5} parent=31 // pred_fallthru
        _
    $region32: #{discriminator_forward.5} parent=5 // pred_fallthru
      _
    %p1109 = scmp.le.s32.totalorder 2, %s9
    // Predicated region
    $region37: #{discriminator_forward.5} parent=5 // pred_check
      %p1110 = pneg %p1109
    $region38: #{discriminator_forward.5} parent=5 // pred_check_branch
      %1112 = sbr.rel (%p1110) target = $region40
    $region39: #{discriminator_forward.5} parent=5 // pred_region
      %s1113 = ssub.s32 %s9, 2
      // Predicated region
      $region41: #{discriminator_forward.5} parent=39 // pred_check
        %p1114 = pneg %p141
      $region42: #{discriminator_forward.5} parent=39 // pred_check_branch
        %1116 = sbr.rel (%p1114) target = $region44
      $region43: #{discriminator_forward.5} parent=39 // pred_region
        %s1117 = smul.u32 9, %s23
        %p1118 = scmp.lt.s32.totalorder %s22, 1
        %s1119 = scalar_select %p1118, %s22, 1
        %p1120 = scmp.lt.s32.totalorder %s1117, 8
        %s1121 = scalar_select %p1120, %s1117, 8
        %p1122 = scmp.lt.s32.totalorder %s24, 0
        %s1123 = scalar_select %p1122, %s24, 0
        %s1124 = sadd.s32 %s1123, %s1121
        %s1125 = smul.addr %s1119, 9
        %s1126 = sadd.s32 %s1124, %s1125
        %s1127 = smul.addr %s1126, 4
        %s1128 = scalar_lea.vmem %s3, %s1127
      $region44: #{discriminator_forward.5} parent=39 // pred_fallthru
        _
    $region40: #{discriminator_forward.5} parent=5 // pred_fallthru
      _
  $region6: #{discriminator_forward.5} parent=0 // loop_footer
    %s13 = sadd.s32 1, %s9
  $region7: #{discriminator_forward.5} parent=0 // loop_footer_branch
    %8 = sbr.rel target = $region3
  $region8: #{discriminator_forward.5} parent=0 // loop_exit
    _

// kernel: discriminator_forward.9
$region0: #{discriminator_forward.9}
  #allocation0 [shape = 'u32[]', space=smem, size = 0x4, offset = 0x4, fixed_abs, tag = 'smem constant byte address 0x4 - core index']
  #allocation1 [shape = 'u32[144,128]{1,0:T(1,128)}', space=vmem, size = 0x12000, scoped, tag = 'internal scratch']
  #allocation2 [shape = 'f32[1,1]{1,0:T(1,128)S(1)}', space=vmem, size = 0x200, scoped, tag = 'scoped memory for discriminator_forward.9']
  %s0 = inlined_call_operand.vmem [shape: bf16[2,1,128], index: 0, kind: input, shape index: {}]
  %s1 = inlined_call_operand.vmem [shape: f32[1,128], index: 1, kind: input, shape index: {}]
  %s2 = inlined_call_operand.<no memory space> [shape: f32[1,1], index: 2, kind: input, shape index: {}]
  %s3 = inlined_call_operand.vmem [shape: f32[2,1], index: 3, kind: output, shape index: {}]
  %s4 = sld [smem:[#allocation0]]
  $region22: #{discriminator_forward.9} parent=0
    _
  %s6 = ssub.s32 1, %s4
  %s7 = scalar_select 0, %s6, %s4
  %v8 = vstv %s2
  %9 = vst [vmem:[#allocation2] sm:$0x1] %v8
  // Predicated region
  $region2: #{discriminator_forward.9} parent=0 // pred_check
    _
  $region3: #{discriminator_forward.9} parent=0 // pred_check_branch
    %11 = sbr.rel (0) target = $region5
  $region4: #{discriminator_forward.9} parent=0 // pred_region
    _
  $region5: #{discriminator_forward.9} parent=0 // pred_fallthru
    _
  // Predicated region
  $region6: #{discriminator_forward.9} parent=0 // pred_check
    _
  $region7: #{discriminator_forward.9} parent=0 // pred_check_branch
    %13 = sbr.rel (0) target = $region9
  $region8: #{discriminator_forward.9} parent=0 // pred_region
    _
  $region9: #{discriminator_forward.9} parent=0 // pred_fallthru
    _
  // Predicated region
  $region10: #{discriminator_forward.9} parent=0 // pred_check
    _
  $region11: #{discriminator_forward.9} parent=0 // pred_check_branch
    %15 = sbr.rel (0) target = $region13
  $region12: #{discriminator_forward.9} parent=0 // pred_region
    _
  $region13: #{discriminator_forward.9} parent=0 // pred_fallthru
    _
  %v16 = vld [vmem:[%s0] sm:$0x1]
  %v17 = vld [vmem:[%s0 + $0x1] sm:$0x1]
  %v18 = vunpack.c.l.bf16 %v16
  %v19 = vunpack.c.l.bf16 %v17
  %v20 = vadd.f32 %v18, 0.0
  %v21 = vadd.f32 %v19, 0.0
  %v22 = vld [vmem:[%s1] sm:$0x1]
  %v24 = vlaneseq
  %v25 = vshrl.u32 %v24, 7
  %v26 = vsub.s32 0, %v25
  %v27 = vrot.slane %v22, %v26
  %v29 = vunpack.c.l.s4 1983009808
  %v30 = vunpack.c.0.s8 %v29
  %v31 = vlaneseq
  %v32 = vshrl.u32 %v31, 7
  %v33 = vsub.s32 %v30, %v32
  %v34 = vrot.slane %v27, %v33
  %v35 = vrot.slane %v34, 1
  %v38 = vmul.f32 %v20, %v34
  %v39 = vmul.f32 %v21, %v35
  %v42 = vlaneseq
  %v43 = vshrl.u32 %v42, 7
  %v44 = vsub.s32 0, %v43
  %v45 = vrot.slane %v38, %v44
  %v46 = vlaneseq
  %v47 = vshrl.u32 %v46, 7
  %v48 = vsub.s32 0, %v47
  %v49 = vrot.slane %v39, %v48
  %vm50 = vcmask 1041409
  %v51 = vsel %vm50, %v49, %v45
  %vm53 = vcmask 1041408
  %v54 = vsel %vm53, %v51, 0.0
  %55 = vadd.xlane.f32.xlu0 %v54
  %v56 = vpop.xlane.xlu0 %55
  %v57 = vld [vmem:[#allocation2] sm:$0x1]
  %v59 = vlaneseq
  %v60 = vshrl.u32 %v59, 7
  %v61 = vsub.s32 0, %v60
  %v62 = vrot.slane %v57, %v61
  %v64 = vadd.f32 %v56, %v62
  %vm65 = vcmask 1024
  %66 = vst.msk [vmem:[%s3] sm:$0x3] %vm65, %v64
  // Predicated region
  $region14: #{discriminator_forward.9} parent=0 // pred_check
    _
  $region15: #{discriminator_forward.9} parent=0 // pred_check_branch
    %68 = sbr.rel (0) target = $region17
  $region16: #{discriminator_forward.9} parent=0 // pred_region
    _
  $region17: #{discriminator_forward.9} parent=0 // pred_fallthru
    _
  // Predicated region
  $region18: #{discriminator_forward.9} parent=0 // pred_check
    _
  $region19: #{discriminator_forward.9} parent=0 // pred_check_branch
    %70 = sbr.rel (0) target = $region21
  $region20: #{discriminator_forward.9} parent=0 // pred_region
    _
  $region21: #{discriminator_forward.9} parent=0 // pred_fallthru
    _

// kernel: discriminator_forward.6
$region0: #{discriminator_forward.6}
  #allocation0 [shape = 'u32[]', space=smem, size = 0x4, offset = 0x4, fixed_abs, tag = 'smem constant byte address 0x4 - core index']
  #allocation1 [shape = 'u32[144,128]{1,0:T(1,128)}', space=vmem, size = 0x12000, scoped, tag = 'internal scratch']
  %s0 = inlined_call_operand.vmem [shape: bf16[2,1,32,512], index: 0, kind: input, shape index: {}]
  %s1 = inlined_call_operand.vmem [shape: bf16[2,2,512,128], index: 1, kind: input, shape index: {}]
  %s2 = inlined_call_operand.vmem [shape: f32[1,128], index: 2, kind: input, shape index: {}]
  %s3 = inlined_call_operand.vmem [shape: bf16[2,24,128], index: 3, kind: output, shape index: {}]
  %s4 = sld [smem:[#allocation0]]
  $region45: #{discriminator_forward.6} parent=0
    _
  %s6 = ssub.s32 1, %s4
  %s7 = scalar_select 0, %s6, %s4
  loop: start=0, step=1, limit=4
  $region2: #{discriminator_forward.6} parent=0 // loop_pre_header
    _
  $region3: #{discriminator_forward.6} parent=0 // loop_header
    %s9 = sphi 0, %s13
    %p10 = scmp.ge.s32.totalorder %s9, 4
    %s16 = sphi 0, %s35
    %s17 = sphi 0, %s31
    %s18 = sphi 0, %s27
    %s19 = sphi 0, %s16
    %s20 = sphi 0, %s17
    %s21 = sphi 0, %s18
    %s22 = sphi 0, %s19
    %s23 = sphi 0, %s20
    %s24 = sphi 0, %s21
    %s40 = sphi 0, %s42
    %s43 = sphi 0, %s40
    %s44 = sphi 0, %s43
    %s60 = sphi 0, %s44
    %s66 = sphi 0, %s68
    %s69 = sphi 0, %s66
    %s70 = sphi 0, %s69
    %s86 = sphi 0, %s70
    %s92 = sphi 0, %s94
    %s95 = sphi 0, %s92
    %s96 = sphi 0, %s95
    %s112 = sphi 0, %s96
    %s122 = sphi 0, %s124
    %s125 = sphi 0, %s122
    %s126 = sphi 0, %s125
    %s142 = sphi 0, %s126
  $region4: #{discriminator_forward.6} parent=0 // loop_header_branch
    %12 = sbr.rel (%p10) target = $region8
  $region5: #{discriminator_forward.6} parent=0 // loop_body
    %s14 = ssub.s32 %s9, 1
    %s15 = ssub.s32 %s9, 2
    %s25 = sadd.s32 1, %s18
    %p26 = scmp.ge.s32.totalorder %s25, 1
    %s27 = scalar_select %p26, 0, %s25
    %s28 = sadd.s32 1, %s17
    %s29 = scalar_select %p26, %s28, %s17
    %p30 = scmp.ge.s32.totalorder %s29, 1
    %s31 = scalar_select %p30, 0, %s29
    %s32 = sadd.s32 1, %s16
    %s33 = scalar_select %p30, %s32, %s16
    %p34 = scmp.ge.s32.totalorder %s33, 2
    %s35 = scalar_select %p34, 0, %s33
    %s36 = ssub.s32 %s16, %s35
    %s37 = ssub.s32 %s17, %s31
    %s38 = sor.u32 %s36, %s37
    %p39 = scmp.eq.s32.totalorder %s38, 0
    %s41 = sadd.s32 %s40, 1
    %s42 = scalar_select %p39, %s40, %s41
    %p45 = pneg %p39
    %p46 = scmp.eq.s32.totalorder %s9, 1
    %p47 = por %p45, %p46
    %p48 = scmp.ne.s32.totalorder %s40, %s43
    %p49 = scmp.eq.s32.totalorder %s9, 0
    %p50 = por %p48, %p49
    %p51 = scmp.ne.s32.totalorder %s40, %s43
    %p52 = scmp.eq.s32.totalorder %s14, 1
    %p53 = por %p51, %p52
    %p54 = scmp.ne.s32.totalorder %s43, %s44
    %p55 = scmp.eq.s32.totalorder %s14, 0
    %p56 = por %p54, %p55
    %p57 = scmp.ne.s32.totalorder %s43, %s44
    %p58 = scmp.eq.s32.totalorder %s15, 1
    %p59 = por %p57, %p58
    %p61 = scmp.ne.s32.totalorder %s44, %s60
    %p62 = scmp.eq.s32.totalorder %s15, 0
    %p63 = por %p61, %p62
    %s64 = ssub.s32 %s18, %s27
    %p65 = scmp.eq.s32.totalorder %s64, 0
    %s67 = sadd.s32 %s66, 1
    %s68 = scalar_select %p65, %s66, %s67
    %p71 = pneg %p65
    %p72 = scmp.eq.s32.totalorder %s9, 1
    %p73 = por %p71, %p72
    %p74 = scmp.ne.s32.totalorder %s66, %s69
    %p75 = scmp.eq.s32.totalorder %s9, 0
    %p76 = por %p74, %p75
    %p77 = scmp.ne.s32.totalorder %s66, %s69
    %p78 = scmp.eq.s32.totalorder %s14, 1
    %p79 = por %p77, %p78
    %p80 = scmp.ne.s32.totalorder %s69, %s70
    %p81 = scmp.eq.s32.totalorder %s14, 0
    %p82 = por %p80, %p81
    %p83 = scmp.ne.s32.totalorder %s69, %s70
    %p84 = scmp.eq.s32.totalorder %s15, 1
    %p85 = por %p83, %p84
    %p87 = scmp.ne.s32.totalorder %s70, %s86
    %p88 = scmp.eq.s32.totalorder %s15, 0
    %p89 = por %p87, %p88
    %s90 = ssub.s32 %s18, %s27
    %p91 = scmp.eq.s32.totalorder %s90, 0
    %s93 = sadd.s32 %s92, 1
    %s94 = scalar_select %p91, %s92, %s93
    %p97 = pneg %p91
    %p98 = scmp.eq.s32.totalorder %s9, 1
    %p99 = por %p97, %p98
    %p100 = scmp.ne.s32.totalorder %s92, %s95
    %p101 = scmp.eq.s32.totalorder %s9, 0
    %p102 = por %p100, %p101
    %p103 = scmp.ne.s32.totalorder %s92, %s95
    %p104 = scmp.eq.s32.totalorder %s14, 1
    %p105 = por %p103, %p104
    %p106 = scmp.ne.s32.totalorder %s95, %s96
    %p107 = scmp.eq.s32.totalorder %s14, 0
    %p108 = por %p106, %p107
    %p109 = scmp.ne.s32.totalorder %s95, %s96
    %p110 = scmp.eq.s32.totalorder %s15, 1
    %p111 = por %p109, %p110
    %p113 = scmp.ne.s32.totalorder %s96, %s112
    %p114 = scmp.eq.s32.totalorder %s15, 0
    %p115 = por %p113, %p114
    %s116 = ssub.s32 %s16, %s35
    %s117 = ssub.s32 %s17, %s31
    %s118 = sor.u32 %s116, %s117
    %s119 = ssub.s32 %s18, %s27
    %s120 = sor.u32 %s118, %s119
    %p121 = scmp.eq.s32.totalorder %s120, 0
    %s123 = sadd.s32 %s122, 1
    %s124 = scalar_select %p121, %s122, %s123
    %p127 = pneg %p121
    %p128 = scmp.eq.s32.totalorder %s9, 1
    %p129 = por %p127, %p128
    %p130 = scmp.ne.s32.totalorder %s122, %s125
    %p131 = scmp.eq.s32.totalorder %s9, 0
    %p132 = por %p130, %p131
    %p133 = scmp.ne.s32.totalorder %s122, %s125
    %p134 = scmp.eq.s32.totalorder %s14, 1
    %p135 = por %p133, %p134
    %p136 = scmp.ne.s32.totalorder %s125, %s126
    %p137 = scmp.eq.s32.totalorder %s14, 0
    %p138 = por %p136, %p137
    %p139 = scmp.ne.s32.totalorder %s125, %s126
    %p140 = scmp.eq.s32.totalorder %s15, 1
    %p141 = por %p139, %p140
    %p143 = scmp.ne.s32.totalorder %s126, %s142
    %p144 = scmp.eq.s32.totalorder %s15, 0
    %p145 = por %p143, %p144
    %p146 = scmp.le.s32.totalorder 1, %s9
    %p147 = scmp.lt.s32.totalorder %s9, 3
    %p148 = pnand %p146, %p147
    %p149 = pneg %p148
    // Predicated region
    $region9: #{discriminator_forward.6} parent=5 // pred_check
      _
    $region10: #{discriminator_forward.6} parent=5 // pred_check_branch
      %151 = sbr.rel (%p148) target = $region12
    $region11: #{discriminator_forward.6} parent=5 // pred_region
      %s152 = ssub.s32 %s9, 1
      // Predicated region
      $region13: #{discriminator_forward.6} parent=11 // pred_check
        %p153 = pneg %p82
      $region14: #{discriminator_forward.6} parent=11 // pred_check_branch
        %155 = sbr.rel (%p153) target = $region16
      $region15: #{discriminator_forward.6} parent=11 // pred_region
        %p156 = scmp.lt.s32.totalorder %s21, 0
        %s157 = scalar_select %p156, %s21, 0
        %s158 = smul.addr %s157, 4
        %s159 = scalar_lea.vmem %s1, %s158
      $region16: #{discriminator_forward.6} parent=11 // pred_fallthru
        _
      // Predicated region
      $region17: #{discriminator_forward.6} parent=11 // pred_check
        %p160 = pneg %p108
      $region18: #{discriminator_forward.6} parent=11 // pred_check_branch
        %162 = sbr.rel (%p160) target = $region20
      $region19: #{discriminator_forward.6} parent=11 // pred_region
        %p163 = scmp.lt.s32.totalorder %s21, 0
        %s164 = scalar_select %p163, %s21, 0
        %s165 = scalar_lea.vmem %s2, %s164
      $region20: #{discriminator_forward.6} parent=11 // pred_fallthru
        _
    $region12: #{discriminator_forward.6} parent=5 // pred_fallthru
      _
    %p166 = scmp.lt.s32.totalorder %s9, 2
    // Predicated region
    $region21: #{discriminator_forward.6} parent=5 // pred_check
      %p167 = pneg %p166
    $region22: #{discriminator_forward.6} parent=5 // pred_check_branch
      %169 = sbr.rel (%p167) target = $region24
    $region23: #{discriminator_forward.6} parent=5 // pred_region
      // Predicated region
      $region25: #{discriminator_forward.6} parent=23 // pred_check
        %p170 = pneg %p50
      $region26: #{discriminator_forward.6} parent=23 // pred_check_branch
        %172 = sbr.rel (%p170) target = $region28
      $region27: #{discriminator_forward.6} parent=23 // pred_region
        %p173 = scmp.lt.s32.totalorder %s16, 1
        %s174 = scalar_select %p173, %s16, 1
        %p175 = scmp.lt.s32.totalorder %s17, 0
        %s176 = scalar_select %p175, %s17, 0
        %s177 = smul.addr %s176, 16
        %s178 = smul.addr %s174, 16
        %s179 = sadd.s32 %s177, %s178
        %s180 = smul.addr %s179, 4
        %s181 = scalar_lea.vmem %s0, %s180
      $region28: #{discriminator_forward.6} parent=23 // pred_fallthru
        _
    $region24: #{discriminator_forward.6} parent=5 // pred_fallthru
      _
    %p182 = scmp.le.s32.totalorder 1, %s9
    %p183 = scmp.lt.s32.totalorder %s9, 3
    %p184 = pnand %p182, %p183
    %p185 = pneg %p184
    // Predicated region
    $region29: #{discriminator_forward.6} parent=5 // pred_check
      _
    $region30: #{discriminator_forward.6} parent=5 // pred_check_branch
      %187 = sbr.rel (%p184) target = $region32
    $region31: #{discriminator_forward.6} parent=5 // pred_region
      %s188 = ssub.s32 %s9, 1
      %p189 = scmp.lt.s32.totalorder %s19, 1
      %s190 = scalar_select %p189, %s19, 1
      %p191 = scmp.lt.s32.totalorder %s20, 0
      %s192 = scalar_select %p191, %s20, 0
      %s193 = smul.addr %s192, 16
      %s194 = smul.addr %s190, 16
      %s195 = sadd.s32 %s193, %s194
      %s196 = smul.addr %s195, 4
      %s197 = scalar_lea.vmem %s0, %s196
      %p198 = pneg %p56
      %p199 = pneg %p53
      %p200 = scmp.lt.s32.totalorder %s21, 0
      %s201 = scalar_select %p200, %s21, 0
      %s202 = smul.addr %s201, 4
      %s203 = scalar_lea.vmem %s1, %s202
      %p204 = pneg %p82
      %p205 = pneg %p79
      %p206 = scmp.lt.s32.totalorder %s21, 0
      %s207 = scalar_select %p206, %s21, 0
      %s208 = scalar_lea.vmem %s2, %s207
      %p209 = pneg %p108
      %p210 = pneg %p105
      %p211 = pneg %p138
      %p212 = pneg %p135
      %s213 = smul.u32 3, %s20
      %p214 = scmp.lt.s32.totalorder %s19, 1
      %s215 = scalar_select %p214, %s19, 1
      %p216 = scmp.lt.s32.totalorder %s213, 2
      %s217 = scalar_select %p216, %s213, 2
      %p218 = scmp.lt.s32.totalorder %s21, 0
      %s219 = scalar_select %p218, %s21, 0
      %s220 = sadd.s32 %s219, %s217
      %s221 = smul.addr %s215, 3
      %s222 = sadd.s32 %s220, %s221
      %s223 = smul.addr %s222, 4
      %s224 = scalar_lea.vmem %s3, %s223
      %p225 = scmp.lt.s32.totalorder %s19, 1
      %s226 = scalar_select %p225, %s19, 1
      %p227 = scmp.lt.s32.totalorder %s20, 0
      %s228 = scalar_select %p227, %s20, 0
      %s229 = smul.addr %s228, 16
      %s230 = smul.addr %s226, 16
      %s231 = sadd.s32 %s229, %s230
      %s232 = smul.addr %s231, 4
      %s233 = scalar_lea.vmem %s0, %s232
      %p234 = scmp.lt.s32.totalorder %s21, 0
      %s235 = scalar_select %p234, %s21, 0
      %s236 = smul.addr %s235, 4
      %s237 = scalar_lea.vmem %s1, %s236
      %p238 = scmp.lt.s32.totalorder %s21, 0
      %s239 = scalar_select %p238, %s21, 0
      %s240 = scalar_lea.vmem %s2, %s239
      %s241 = smul.u32 3, %s20
      %p242 = scmp.lt.s32.totalorder %s19, 1
      %s243 = scalar_select %p242, %s19, 1
      %p244 = scmp.lt.s32.totalorder %s241, 2
      %s245 = scalar_select %p244, %s241, 2
      %p246 = scmp.lt.s32.totalorder %s21, 0
      %s247 = scalar_select %p246, %s21, 0
      %s248 = sadd.s32 %s247, %s245
      %s249 = smul.addr %s243, 3
      %s250 = sadd.s32 %s248, %s249
      %s251 = smul.addr %s250, 4
      %s252 = scalar_lea.vmem %s3, %s251
      %s253 = smul.u32 3, %s20
      %v255 = vld [vmem:[%s233] sm:$0xff]
      %v256 = vld [vmem:[%s233 + $0x8] sm:$0xff]
      %v257 = vld [vmem:[%s233 + $0x10] sm:$0xff]
      %v258 = vld [vmem:[%s233 + $0x18] sm:$0xff]
      %v259 = vld [vmem:[%s233 + $0x20] sm:$0xff]
      %v260 = vld [vmem:[%s233 + $0x28] sm:$0xff]
      %v261 = vld [vmem:[%s237] sm:$0xf]
      %v262 = vld [vmem:[%s237 + $0x4] sm:$0xf]
      %v263 = vld [vmem:[%s237 + $0x8] sm:$0xf]
      %v264 = vld [vmem:[%s237 + $0xc] sm:$0xf]
      %v265 = vld [vmem:[%s237 + $0x10] sm:$0xf]
      %v266 = vld [vmem:[%s237 + $0x14] sm:$0xf]
      %v267 = vld [vmem:[%s237 + $0x18] sm:$0xf]
      %v268 = vld [vmem:[%s237 + $0x1c] sm:$0xf]
      %v269 = vld [vmem:[%s237 + $0x20] sm:$0xf]
      %v270 = vld [vmem:[%s237 + $0x24] sm:$0xf]
      %v271 = vld [vmem:[%s237 + $0x28] sm:$0xf]
      %v272 = vld [vmem:[%s237 + $0x2c] sm:$0xf]
      %v273 = vld [vmem:[%s237 + $0x30] sm:$0xf]
      %v274 = vld [vmem:[%s237 + $0x34] sm:$0xf]
      %v275 = vld [vmem:[%s237 + $0x38] sm:$0xf]
      %v276 = vld [vmem:[%s237 + $0x3c] sm:$0xf]
      %v277 = vld [vmem:[%s237 + $0x40] sm:$0xf]
      %v278 = vld [vmem:[%s237 + $0x44] sm:$0xf]
      %v279 = vld [vmem:[%s237 + $0x48] sm:$0xf]
      %v280 = vld [vmem:[%s237 + $0x4c] sm:$0xf]
      %v281 = vld [vmem:[%s237 + $0x50] sm:$0xf]
      %v282 = vld [vmem:[%s237 + $0x54] sm:$0xf]
      %v283 = vld [vmem:[%s237 + $0x58] sm:$0xf]
      %v284 = vld [vmem:[%s237 + $0x5c] sm:$0xf]
      %v285 = vld [vmem:[%s237 + $0x60] sm:$0xf]
      %v286 = vld [vmem:[%s237 + $0x64] sm:$0xf]
      %v287 = vld [vmem:[%s237 + $0x68] sm:$0xf]
      %v288 = vld [vmem:[%s237 + $0x6c] sm:$0xf]
      %v289 = vld [vmem:[%s237 + $0x70] sm:$0xf]
      %v290 = vld [vmem:[%s237 + $0x74] sm:$0xf]
      %v291 = vld [vmem:[%s237 + $0x78] sm:$0xf]
      %v292 = vld [vmem:[%s237 + $0x7c] sm:$0xf]
      %v293 = vld [vmem:[%s237 + $0x80] sm:$0xf]
      %v294 = vld [vmem:[%s237 + $0x84] sm:$0xf]
      %v295 = vld [vmem:[%s237 + $0x88] sm:$0xf]
      %v296 = vld [vmem:[%s237 + $0x8c] sm:$0xf]
      %v297 = vld [vmem:[%s237 + $0x90] sm:$0xf]
      %v298 = vld [vmem:[%s237 + $0x94] sm:$0xf]
      %v299 = vld [vmem:[%s237 + $0x98] sm:$0xf]
      %v300 = vld [vmem:[%s237 + $0x9c] sm:$0xf]
      %v301 = vld [vmem:[%s237 + $0xa0] sm:$0xf]
      %v302 = vld [vmem:[%s237 + $0xa4] sm:$0xf]
      %v303 = vld [vmem:[%s237 + $0xa8] sm:$0xf]
      %v304 = vld [vmem:[%s237 + $0xac] sm:$0xf]
      %v305 = vld [vmem:[%s237 + $0xb0] sm:$0xf]
      %v306 = vld [vmem:[%s237 + $0xb4] sm:$0xf]
      %v307 = vld [vmem:[%s237 + $0xb8] sm:$0xf]
      %v308 = vld [vmem:[%s237 + $0xbc] sm:$0xf]
      %v309 = vld [vmem:[%s237 + $0xc0] sm:$0xf]
      %v310 = vld [vmem:[%s237 + $0xc4] sm:$0xf]
      %v311 = vld [vmem:[%s237 + $0xc8] sm:$0xf]
      %v312 = vld [vmem:[%s237 + $0xcc] sm:$0xf]
      %v313 = vld [vmem:[%s237 + $0xd0] sm:$0xf]
      %v314 = vld [vmem:[%s237 + $0xd4] sm:$0xf]
      %v315 = vld [vmem:[%s237 + $0xd8] sm:$0xf]
      %v316 = vld [vmem:[%s237 + $0xdc] sm:$0xf]
      %v317 = vld [vmem:[%s237 + $0xe0] sm:$0xf]
      %v318 = vld [vmem:[%s237 + $0xe4] sm:$0xf]
      %v319 = vld [vmem:[%s237 + $0xe8] sm:$0xf]
      %v320 = vld [vmem:[%s237 + $0xec] sm:$0xf]
      %v321 = vld [vmem:[%s237 + $0xf0] sm:$0xf]
      %v322 = vld [vmem:[%s237 + $0xf4] sm:$0xf]
      %v323 = vld [vmem:[%s237 + $0xf8] sm:$0xf]
      %v324 = vld [vmem:[%s237 + $0xfc] sm:$0xf]
      %v325 = vld [vmem:[%s233] sm:$0xff]
      %v326 = vld [vmem:[%s233 + $0x8] sm:$0xff]
      %v327 = vld [vmem:[%s233 + $0x10] sm:$0xff]
      %v328 = vld [vmem:[%s233 + $0x18] sm:$0xff]
      %v329 = vld [vmem:[%s233 + $0x20] sm:$0xff]
      %v330 = vld [vmem:[%s233 + $0x28] sm:$0xff]
      %v331 = vld [vmem:[%s233 + $0x30] sm:$0x11]
      %v332 = vld [vmem:[%s233 + $0x38] sm:$0x11]
      %s333 = scalar_lea.vmem %s237, 256
      %v334 = vld [vmem:[%s333] sm:$0xf]
      %v335 = vld [vmem:[%s333 + $0x4] sm:$0xf]
      %v336 = vld [vmem:[%s333 + $0x8] sm:$0xf]
      %v337 = vld [vmem:[%s333 + $0xc] sm:$0xf]
      %v338 = vld [vmem:[%s333 + $0x10] sm:$0xf]
      %v339 = vld [vmem:[%s333 + $0x14] sm:$0xf]
      %v340 = vld [vmem:[%s333 + $0x18] sm:$0xf]
      %v341 = vld [vmem:[%s333 + $0x1c] sm:$0xf]
      %v342 = vld [vmem:[%s333 + $0x20] sm:$0xf]
      %v343 = vld [vmem:[%s333 + $0x24] sm:$0xf]
      %v344 = vld [vmem:[%s333 + $0x28] sm:$0xf]
      %v345 = vld [vmem:[%s333 + $0x2c] sm:$0xf]
      %v346 = vld [vmem:[%s333 + $0x30] sm:$0xf]
      %v347 = vld [vmem:[%s333 + $0x34] sm:$0xf]
      %v348 = vld [vmem:[%s333 + $0x38] sm:$0xf]
      %v349 = vld [vmem:[%s333 + $0x3c] sm:$0xf]
      %v350 = vld [vmem:[%s333 + $0x40] sm:$0xf]
      %v351 = vld [vmem:[%s333 + $0x44] sm:$0xf]
      %v352 = vld [vmem:[%s333 + $0x48] sm:$0xf]
      %v353 = vld [vmem:[%s333 + $0x4c] sm:$0xf]
      %v354 = vld [vmem:[%s333 + $0x50] sm:$0xf]
      %v355 = vld [vmem:[%s333 + $0x54] sm:$0xf]
      %v356 = vld [vmem:[%s333 + $0x58] sm:$0xf]
      %v357 = vld [vmem:[%s333 + $0x5c] sm:$0xf]
      %v358 = vld [vmem:[%s333 + $0x60] sm:$0xf]
      %v359 = vld [vmem:[%s333 + $0x64] sm:$0xf]
      %v360 = vld [vmem:[%s333 + $0x68] sm:$0xf]
      %v361 = vld [vmem:[%s333 + $0x6c] sm:$0xf]
      %v362 = vld [vmem:[%s333 + $0x70] sm:$0xf]
      %v363 = vld [vmem:[%s333 + $0x74] sm:$0xf]
      %v364 = vld [vmem:[%s333 + $0x78] sm:$0xf]
      %v365 = vld [vmem:[%s333 + $0x7c] sm:$0xf]
      %v366 = vld [vmem:[%s333 + $0x80] sm:$0xf]
      %v367 = vld [vmem:[%s333 + $0x84] sm:$0xf]
      %v368 = vld [vmem:[%s333 + $0x88] sm:$0xf]
      %v369 = vld [vmem:[%s333 + $0x8c] sm:$0xf]
      %v370 = vld [vmem:[%s333 + $0x90] sm:$0xf]
      %v371 = vld [vmem:[%s333 + $0x94] sm:$0xf]
      %v372 = vld [vmem:[%s333 + $0x98] sm:$0xf]
      %v373 = vld [vmem:[%s333 + $0x9c] sm:$0xf]
      %v374 = vld [vmem:[%s333 + $0xa0] sm:$0xf]
      %v375 = vld [vmem:[%s333 + $0xa4] sm:$0xf]
      %v376 = vld [vmem:[%s333 + $0xa8] sm:$0xf]
      %v377 = vld [vmem:[%s333 + $0xac] sm:$0xf]
      %v378 = vld [vmem:[%s333 + $0xb0] sm:$0xf]
      %v379 = vld [vmem:[%s333 + $0xb4] sm:$0xf]
      %v380 = vld [vmem:[%s333 + $0xb8] sm:$0xf]
      %v381 = vld [vmem:[%s333 + $0xbc] sm:$0xf]
      %v382 = vld [vmem:[%s333 + $0xc0] sm:$0xf]
      %v383 = vld [vmem:[%s333 + $0xc4] sm:$0xf]
      %v384 = vld [vmem:[%s333 + $0xc8] sm:$0xf]
      %v385 = vld [vmem:[%s333 + $0xcc] sm:$0xf]
      %v386 = vld [vmem:[%s333 + $0xd0] sm:$0xf]
      %v387 = vld [vmem:[%s333 + $0xd4] sm:$0xf]
      %v388 = vld [vmem:[%s333 + $0xd8] sm:$0xf]
      %v389 = vld [vmem:[%s333 + $0xdc] sm:$0xf]
      %v390 = vld [vmem:[%s333 + $0xe0] sm:$0xf]
      %v391 = vld [vmem:[%s333 + $0xe4] sm:$0xf]
      %v392 = vld [vmem:[%s333 + $0xe8] sm:$0xf]
      %v393 = vld [vmem:[%s333 + $0xec] sm:$0xf]
      %v394 = vld [vmem:[%s333 + $0xf0] sm:$0xf]
      %v395 = vld [vmem:[%s333 + $0xf4] sm:$0xf]
      %v396 = vld [vmem:[%s333 + $0xf8] sm:$0xf]
      %v397 = vld [vmem:[%s333 + $0xfc] sm:$0xf]
      %v406 = vunpack.c.l.b16 %v325
      %v407 = vunpack.c.h.b16 %v325
      %v408 = vunpack.c.l.b16 %v326
      %v409 = vunpack.c.h.b16 %v326
      %v410 = vunpack.c.l.b16 %v327
      %v411 = vunpack.c.h.b16 %v327
      %v412 = vunpack.c.l.b16 %v328
      %v413 = vunpack.c.h.b16 %v328
      %v414 = vunpack.c.l.b16 %v329
      %v415 = vunpack.c.h.b16 %v329
      %v416 = vunpack.c.l.b16 %v330
      %v417 = vunpack.c.h.b16 %v330
      %v418 = vunpack.c.l.b16 %v331
      %v419 = vunpack.c.h.b16 %v331
      %v420 = vunpack.c.l.b16 %v332
      %v421 = vunpack.c.h.b16 %v332
      %v422 = vpack.c.b16 %v410, %v406
      %v423 = vpack.c.b16 %v411, %v407
      %v424 = vpack.c.b16 %v412, %v408
      %v425 = vpack.c.b16 %v413, %v409
      %v426 = vpack.c.b16 %v418, %v414
      %v427 = vpack.c.b16 %v419, %v415
      %v428 = vpack.c.b16 %v420, %v416
      %v429 = vpack.c.b16 %v421, %v417
      %vm430 = vsmask.f32 7424
      %v432 = vshrl.u32 %v422, 16
      %v434 = vshll.u32 %v422, 16
      %v436 = vrot.slane %v434, 1
      %v437 = vor.u32 %v432, %v436
      %v439 = vshll.u32 %v426, 16
      %v441 = vrot.slane %v439, 1
      %v442 = vsel %vm430, %v437, %v441
      %v444 = vshrl.u32 %v423, 16
      %v446 = vshll.u32 %v423, 16
      %v448 = vrot.slane %v446, 1
      %v449 = vor.u32 %v444, %v448
      %v451 = vshll.u32 %v427, 16
      %v453 = vrot.slane %v451, 1
      %v454 = vsel %vm430, %v449, %v453
      %v456 = vshrl.u32 %v424, 16
      %v458 = vshll.u32 %v424, 16
      %v460 = vrot.slane %v458, 1
      %v461 = vor.u32 %v456, %v460
      %v463 = vshll.u32 %v428, 16
      %v465 = vrot.slane %v463, 1
      %v466 = vsel %vm430, %v461, %v465
      %v468 = vshrl.u32 %v425, 16
      %v470 = vshll.u32 %v425, 16
      %v472 = vrot.slane %v470, 1
      %v473 = vor.u32 %v468, %v472
      %v475 = vshll.u32 %v429, 16
      %v477 = vrot.slane %v475, 1
      %v478 = vsel %vm430, %v473, %v477
      %v479 = vshrl.u32 %v426, 16
      %v481 = vor.u32 %v479, %v441
      %v482 = vshrl.u32 %v427, 16
      %v484 = vor.u32 %v482, %v453
      %v485 = vshrl.u32 %v428, 16
      %v487 = vor.u32 %v485, %v465
      %v488 = vshrl.u32 %v429, 16
      %v490 = vor.u32 %v488, %v477
      %v563 = vunpack.c.l.b16 %v334
      %v564 = vunpack.c.l.b16 %v335
      %v565 = vunpack.c.l.b16 %v336
      %v566 = vunpack.c.l.b16 %v337
      %v567 = vunpack.c.l.b16 %v338
      %v568 = vunpack.c.l.b16 %v339
      %v569 = vunpack.c.l.b16 %v340
      %v570 = vunpack.c.l.b16 %v341
      %v571 = vunpack.c.l.b16 %v342
      %v572 = vunpack.c.l.b16 %v343
      %v573 = vunpack.c.l.b16 %v344
      %v574 = vunpack.c.l.b16 %v345
      %v575 = vunpack.c.l.b16 %v346
      %v576 = vunpack.c.l.b16 %v347
      %v577 = vunpack.c.l.b16 %v348
      %v578 = vunpack.c.l.b16 %v349
      %v579 = vunpack.c.l.b16 %v350
      %v580 = vunpack.c.l.b16 %v351
      %v581 = vunpack.c.l.b16 %v352
      %v582 = vunpack.c.l.b16 %v353
      %v583 = vunpack.c.l.b16 %v354
      %v584 = vunpack.c.l.b16 %v355
      %v585 = vunpack.c.l.b16 %v356
      %v586 = vunpack.c.l.b16 %v357
      %v587 = vunpack.c.l.b16 %v358
      %v588 = vunpack.c.l.b16 %v359
      %v589 = vunpack.c.l.b16 %v360
      %v590 = vunpack.c.l.b16 %v361
      %v591 = vunpack.c.l.b16 %v362
      %v592 = vunpack.c.l.b16 %v363
      %v593 = vunpack.c.l.b16 %v364
      %v594 = vunpack.c.l.b16 %v365
      %v595 = vunpack.c.l.b16 %v366
      %v596 = vunpack.c.l.b16 %v367
      %v597 = vunpack.c.l.b16 %v368
      %v598 = vunpack.c.l.b16 %v369
      %v599 = vunpack.c.l.b16 %v370
      %v600 = vunpack.c.l.b16 %v371
      %v601 = vunpack.c.l.b16 %v372
      %v602 = vunpack.c.l.b16 %v373
      %v603 = vunpack.c.l.b16 %v374
      %v604 = vunpack.c.l.b16 %v375
      %v605 = vunpack.c.l.b16 %v376
      %v606 = vunpack.c.l.b16 %v377
      %v607 = vunpack.c.l.b16 %v378
      %v608 = vunpack.c.l.b16 %v379
      %v609 = vunpack.c.l.b16 %v380
      %v610 = vunpack.c.l.b16 %v381
      %v611 = vunpack.c.l.b16 %v382
      %v612 = vunpack.c.l.b16 %v383
      %v613 = vunpack.c.l.b16 %v384
      %v614 = vunpack.c.l.b16 %v385
      %v615 = vunpack.c.l.b16 %v386
      %v616 = vunpack.c.l.b16 %v387
      %v617 = vunpack.c.l.b16 %v388
      %v618 = vunpack.c.l.b16 %v389
      %v619 = vunpack.c.l.b16 %v390
      %v620 = vunpack.c.l.b16 %v391
      %v621 = vunpack.c.l.b16 %v392
      %v622 = vunpack.c.l.b16 %v393
      %v623 = vunpack.c.l.b16 %v394
      %v624 = vunpack.c.l.b16 %v395
      %v625 = vunpack.c.l.b16 %v396
      %v626 = vunpack.c.l.b16 %v397
      %v627 = vpack.c.b16 %v564, %v563
      %v628 = vpack.c.b16 %v566, %v565
      %v629 = vpack.c.b16 %v568, %v567
      %v630 = vpack.c.b16 %v570, %v569
      %v631 = vpack.c.b16 %v572, %v571
      %v632 = vpack.c.b16 %v574, %v573
      %v633 = vpack.c.b16 %v576, %v575
      %v634 = vpack.c.b16 %v578, %v577
      %v635 = vpack.c.b16 %v580, %v579
      %v636 = vpack.c.b16 %v582, %v581
      %v637 = vpack.c.b16 %v584, %v583
      %v638 = vpack.c.b16 %v586, %v585
      %v639 = vpack.c.b16 %v588, %v587
      %v640 = vpack.c.b16 %v590, %v589
      %v641 = vpack.c.b16 %v592, %v591
      %v642 = vpack.c.b16 %v594, %v593
      %v643 = vpack.c.b16 %v596, %v595
      %v644 = vpack.c.b16 %v598, %v597
      %v645 = vpack.c.b16 %v600, %v599
      %v646 = vpack.c.b16 %v602, %v601
      %v647 = vpack.c.b16 %v604, %v603
      %v648 = vpack.c.b16 %v606, %v605
      %v649 = vpack.c.b16 %v608, %v607
      %v650 = vpack.c.b16 %v610, %v609
      %v651 = vpack.c.b16 %v612, %v611
      %v652 = vpack.c.b16 %v614, %v613
      %v653 = vpack.c.b16 %v616, %v615
      %v654 = vpack.c.b16 %v618, %v617
      %v655 = vpack.c.b16 %v620, %v619
      %v656 = vpack.c.b16 %v622, %v621
      %v657 = vpack.c.b16 %v624, %v623
      %v658 = vpack.c.b16 %v626, %v625
      %691 = vmatprep.subr.bf16.mxu0 0
      %692 = vmatpush1.bf16.msra.mxu0 %v634
      %693 = vmatprep.subr.bf16.mxu0 0
      %694 = vmatpush1.bf16.msra.mxu0 %v633
      %695 = vmatprep.subr.bf16.mxu0 0
      %696 = vmatpush1.bf16.msra.mxu0 %v632
      %697 = vmatprep.subr.bf16.mxu0 0
      %698 = vmatpush1.bf16.msra.mxu0 %v631
      %699 = vmatprep.subr.bf16.mxu0 0
      %700 = vmatpush1.bf16.msra.mxu0 %v630
      %701 = vmatprep.subr.bf16.mxu0 0
      %702 = vmatpush1.bf16.msra.mxu0 %v629
      %703 = vmatprep.subr.bf16.mxu0 0
      %704 = vmatpush1.bf16.msra.mxu0 %v628
      %705 = vmatprep.subr.bf16.mxu0 0
      %706 = vmatpush1.bf16.msra.mxu0 %v627
      %707 = vmatprep.subr.bf16.mxu0 0
      %708 = vmatpush2.bf16.msra.mxu0 %v642
      %709 = vmatprep.subr.bf16.mxu0 0
      %710 = vmatpush2.bf16.msra.mxu0 %v641
      %711 = vmatprep.subr.bf16.mxu0 0
      %712 = vmatpush2.bf16.msra.mxu0 %v640
      %713 = vmatprep.subr.bf16.mxu0 0
      %714 = vmatpush2.bf16.msra.mxu0 %v639
      %715 = vmatprep.subr.bf16.mxu0 0
      %716 = vmatpush2.bf16.msra.mxu0 %v638
      %717 = vmatprep.subr.bf16.mxu0 0
      %718 = vmatpush2.bf16.msra.mxu0 %v637
      %719 = vmatprep.subr.bf16.mxu0 0
      %720 = vmatpush2.bf16.msra.mxu0 %v636
      %721 = vmatprep.subr.bf16.mxu0 0
      %722 = vmatpush2.bf16.msra.mxu0 %v635
      %723 = vmatprep.mubr.bf16.mxu0 %v454
      %724 = vmatmul.mubr.bf16.gmra.mxu0 %v442
      %v725 = vpop.f32.mrf.mxu0
      %v726 = vadd.f32 0.0, %v725
      %v727 = vpop.f32.mrf.mxu0
      %v728 = vpop.f32.mrf.mxu0
      %v729 = vadd.f32 0.0, %v728
      %v730 = vpop.f32.mrf.mxu0
      %731 = vmatprep.mubr.bf16.mxu0 %v484
      %732 = vmatmul.mubr.bf16.gmra.mxu0 %v481
      %v733 = vpop.f32.mrf.mxu0
      %v734 = vadd.f32 0.0, %v733
      %v735 = vpop.f32.mrf.mxu0
      %v736 = vpop.f32.mrf.mxu0
      %v737 = vpop.f32.mrf.mxu0
      %738 = vdwg.mxu0
      %739 = vmatprep.subr.bf16.mxu0 0
      %740 = vmatpush1.bf16.msra.mxu0 %v650
      %741 = vmatprep.subr.bf16.mxu0 0
      %742 = vmatpush1.bf16.msra.mxu0 %v649
      %743 = vmatprep.subr.bf16.mxu0 0
      %744 = vmatpush1.bf16.msra.mxu0 %v648
      %745 = vmatprep.subr.bf16.mxu0 0
      %746 = vmatpush1.bf16.msra.mxu0 %v647
      %747 = vmatprep.subr.bf16.mxu0 0
      %748 = vmatpush1.bf16.msra.mxu0 %v646
      %749 = vmatprep.subr.bf16.mxu0 0
      %750 = vmatpush1.bf16.msra.mxu0 %v645
      %751 = vmatprep.subr.bf16.mxu0 0
      %752 = vmatpush1.bf16.msra.mxu0 %v644
      %753 = vmatprep.subr.bf16.mxu0 0
      %754 = vmatpush1.bf16.msra.mxu0 %v643
      %755 = vmatprep.subr.bf16.mxu0 0
      %756 = vmatpush2.bf16.msra.mxu0 %v658
      %757 = vmatprep.subr.bf16.mxu0 0
      %758 = vmatpush2.bf16.msra.mxu0 %v657
      %759 = vmatprep.subr.bf16.mxu0 0
      %760 = vmatpush2.bf16.msra.mxu0 %v656
      %761 = vmatprep.subr.bf16.mxu0 0
      %762 = vmatpush2.bf16.msra.mxu0 %v655
      %763 = vmatprep.subr.bf16.mxu0 0
      %764 = vmatpush2.bf16.msra.mxu0 %v654
      %765 = vmatprep.subr.bf16.mxu0 0
      %766 = vmatpush2.bf16.msra.mxu0 %v653
      %767 = vmatprep.subr.bf16.mxu0 0
      %768 = vmatpush2.bf16.msra.mxu0 %v652
      %769 = vmatprep.subr.bf16.mxu0 0
      %770 = vmatpush2.bf16.msra.mxu0 %v651
      %771 = vmatprep.mubr.bf16.mxu0 %v478
      %772 = vmatmul.mubr.bf16.gmra.mxu0 %v466
      %v773 = vpop.f32.mrf.mxu0
      %v774 = vadd.f32 %v726, %v773
      %v775 = vpop.f32.mrf.mxu0
      %v776 = vpop.f32.mrf.mxu0
      %v777 = vadd.f32 %v729, %v776
      %v778 = vpop.f32.mrf.mxu0
      %779 = vmatprep.mubr.bf16.mxu0 %v490
      %780 = vmatmul.mubr.bf16.gmra.mxu0 %v487
      %v781 = vpop.f32.mrf.mxu0
      %v782 = vadd.f32 %v734, %v781
      %v783 = vpop.f32.mrf.mxu0
      %v784 = vpop.f32.mrf.mxu0
      %v785 = vpop.f32.mrf.mxu0
      %786 = vdwg.mxu0
      %v793 = vunpack.c.l.b16 %v255
      %v794 = vunpack.c.h.b16 %v255
      %v795 = vunpack.c.l.b16 %v256
      %v796 = vunpack.c.h.b16 %v256
      %v797 = vunpack.c.l.b16 %v257
      %v798 = vunpack.c.h.b16 %v257
      %v799 = vunpack.c.l.b16 %v258
      %v800 = vunpack.c.h.b16 %v258
      %v801 = vunpack.c.l.b16 %v259
      %v802 = vunpack.c.h.b16 %v259
      %v803 = vunpack.c.l.b16 %v260
      %v804 = vunpack.c.h.b16 %v260
      %v805 = vpack.c.b16 %v797, %v793
      %v806 = vpack.c.b16 %v798, %v794
      %v807 = vpack.c.b16 %v799, %v795
      %v808 = vpack.c.b16 %v800, %v796
      %v809 = vpack.c.b16 %v801, %v801
      %v810 = vpack.c.b16 %v802, %v802
      %v811 = vpack.c.b16 %v803, %v803
      %v812 = vpack.c.b16 %v804, %v804
      %v885 = vunpack.c.l.b16 %v261
      %v886 = vunpack.c.l.b16 %v262
      %v887 = vunpack.c.l.b16 %v263
      %v888 = vunpack.c.l.b16 %v264
      %v889 = vunpack.c.l.b16 %v265
      %v890 = vunpack.c.l.b16 %v266
      %v891 = vunpack.c.l.b16 %v267
      %v892 = vunpack.c.l.b16 %v268
      %v893 = vunpack.c.l.b16 %v269
      %v894 = vunpack.c.l.b16 %v270
      %v895 = vunpack.c.l.b16 %v271
      %v896 = vunpack.c.l.b16 %v272
      %v897 = vunpack.c.l.b16 %v273
      %v898 = vunpack.c.l.b16 %v274
      %v899 = vunpack.c.l.b16 %v275
      %v900 = vunpack.c.l.b16 %v276
      %v901 = vunpack.c.l.b16 %v277
      %v902 = vunpack.c.l.b16 %v278
      %v903 = vunpack.c.l.b16 %v279
      %v904 = vunpack.c.l.b16 %v280
      %v905 = vunpack.c.l.b16 %v281
      %v906 = vunpack.c.l.b16 %v282
      %v907 = vunpack.c.l.b16 %v283
      %v908 = vunpack.c.l.b16 %v284
      %v909 = vunpack.c.l.b16 %v285
      %v910 = vunpack.c.l.b16 %v286
      %v911 = vunpack.c.l.b16 %v287
      %v912 = vunpack.c.l.b16 %v288
      %v913 = vunpack.c.l.b16 %v289
      %v914 = vunpack.c.l.b16 %v290
      %v915 = vunpack.c.l.b16 %v291
      %v916 = vunpack.c.l.b16 %v292
      %v917 = vunpack.c.l.b16 %v293
      %v918 = vunpack.c.l.b16 %v294
      %v919 = vunpack.c.l.b16 %v295
      %v920 = vunpack.c.l.b16 %v296
      %v921 = vunpack.c.l.b16 %v297
      %v922 = vunpack.c.l.b16 %v298
      %v923 = vunpack.c.l.b16 %v299
      %v924 = vunpack.c.l.b16 %v300
      %v925 = vunpack.c.l.b16 %v301
      %v926 = vunpack.c.l.b16 %v302
      %v927 = vunpack.c.l.b16 %v303
      %v928 = vunpack.c.l.b16 %v304
      %v929 = vunpack.c.l.b16 %v305
      %v930 = vunpack.c.l.b16 %v306
      %v931 = vunpack.c.l.b16 %v307
      %v932 = vunpack.c.l.b16 %v308
      %v933 = vunpack.c.l.b16 %v309
      %v934 = vunpack.c.l.b16 %v310
      %v935 = vunpack.c.l.b16 %v311
      %v936 = vunpack.c.l.b16 %v312
      %v937 = vunpack.c.l.b16 %v313
      %v938 = vunpack.c.l.b16 %v314
      %v939 = vunpack.c.l.b16 %v315
      %v940 = vunpack.c.l.b16 %v316
      %v941 = vunpack.c.l.b16 %v317
      %v942 = vunpack.c.l.b16 %v318
      %v943 = vunpack.c.l.b16 %v319
      %v944 = vunpack.c.l.b16 %v320
      %v945 = vunpack.c.l.b16 %v321
      %v946 = vunpack.c.l.b16 %v322
      %v947 = vunpack.c.l.b16 %v323
      %v948 = vunpack.c.l.b16 %v324
      %v949 = vpack.c.b16 %v886, %v885
      %v950 = vpack.c.b16 %v888, %v887
      %v951 = vpack.c.b16 %v890, %v889
      %v952 = vpack.c.b16 %v892, %v891
      %v953 = vpack.c.b16 %v894, %v893
      %v954 = vpack.c.b16 %v896, %v895
      %v955 = vpack.c.b16 %v898, %v897
      %v956 = vpack.c.b16 %v900, %v899
      %v957 = vpack.c.b16 %v902, %v901
      %v958 = vpack.c.b16 %v904, %v903
      %v959 = vpack.c.b16 %v906, %v905
      %v960 = vpack.c.b16 %v908, %v907
      %v961 = vpack.c.b16 %v910, %v909
      %v962 = vpack.c.b16 %v912, %v911
      %v963 = vpack.c.b16 %v914, %v913
      %v964 = vpack.c.b16 %v916, %v915
      %v965 = vpack.c.b16 %v918, %v917
      %v966 = vpack.c.b16 %v920, %v919
      %v967 = vpack.c.b16 %v922, %v921
      %v968 = vpack.c.b16 %v924, %v923
      %v969 = vpack.c.b16 %v926, %v925
      %v970 = vpack.c.b16 %v928, %v927
      %v971 = vpack.c.b16 %v930, %v929
      %v972 = vpack.c.b16 %v932, %v931
      %v973 = vpack.c.b16 %v934, %v933
      %v974 = vpack.c.b16 %v936, %v935
      %v975 = vpack.c.b16 %v938, %v937
      %v976 = vpack.c.b16 %v940, %v939
      %v977 = vpack.c.b16 %v942, %v941
      %v978 = vpack.c.b16 %v944, %v943
      %v979 = vpack.c.b16 %v946, %v945
      %v980 = vpack.c.b16 %v948, %v947
      %1013 = vmatprep.subr.bf16.mxu0 0
      %1014 = vmatpush1.bf16.msra.mxu0 %v956
      %1015 = vmatprep.subr.bf16.mxu0 0
      %1016 = vmatpush1.bf16.msra.mxu0 %v955
      %1017 = vmatprep.subr.bf16.mxu0 0
      %1018 = vmatpush1.bf16.msra.mxu0 %v954
      %1019 = vmatprep.subr.bf16.mxu0 0
      %1020 = vmatpush1.bf16.msra.mxu0 %v953
      %1021 = vmatprep.subr.bf16.mxu0 0
      %1022 = vmatpush1.bf16.msra.mxu0 %v952
      %1023 = vmatprep.subr.bf16.mxu0 0
      %1024 = vmatpush1.bf16.msra.mxu0 %v951
      %1025 = vmatprep.subr.bf16.mxu0 0
      %1026 = vmatpush1.bf16.msra.mxu0 %v950
      %1027 = vmatprep.subr.bf16.mxu0 0
      %1028 = vmatpush1.bf16.msra.mxu0 %v949
      %1029 = vmatprep.subr.bf16.mxu0 0
      %1030 = vmatpush2.bf16.msra.mxu0 %v964
      %1031 = vmatprep.subr.bf16.mxu0 0
      %1032 = vmatpush2.bf16.msra.mxu0 %v963
      %1033 = vmatprep.subr.bf16.mxu0 0
      %1034 = vmatpush2.bf16.msra.mxu0 %v962
      %1035 = vmatprep.subr.bf16.mxu0 0
      %1036 = vmatpush2.bf16.msra.mxu0 %v961
      %1037 = vmatprep.subr.bf16.mxu0 0
      %1038 = vmatpush2.bf16.msra.mxu0 %v960
      %1039 = vmatprep.subr.bf16.mxu0 0
      %1040 = vmatpush2.bf16.msra.mxu0 %v959
      %1041 = vmatprep.subr.bf16.mxu0 0
      %1042 = vmatpush2.bf16.msra.mxu0 %v958
      %1043 = vmatprep.subr.bf16.mxu0 0
      %1044 = vmatpush2.bf16.msra.mxu0 %v957
      %1045 = vmatprep.mubr.bf16.mxu0 %v806
      %1046 = vmatmul.mubr.bf16.gmra.mxu0 %v805
      %v1047 = vpop.f32.mrf.mxu0
      %v1048 = vadd.f32 %v774, %v1047
      %v1049 = vpop.f32.mrf.mxu0
      %v1050 = vpop.f32.mrf.mxu0
      %v1051 = vadd.f32 %v777, %v1050
      %v1052 = vpop.f32.mrf.mxu0
      %1053 = vmatprep.mubr.bf16.mxu0 %v810
      %1054 = vmatmul.mubr.bf16.gmra.mxu0 %v809
      %v1055 = vpop.f32.mrf.mxu0
      %v1056 = vadd.f32 %v782, %v1055
      %v1057 = vpop.f32.mrf.mxu0
      %v1058 = vpop.f32.mrf.mxu0
      %v1059 = vpop.f32.mrf.mxu0
      %1060 = vdwg.mxu0
      %1061 = vmatprep.subr.bf16.mxu0 0
      %1062 = vmatpush1.bf16.msra.mxu0 %v972
      %1063 = vmatprep.subr.bf16.mxu0 0
      %1064 = vmatpush1.bf16.msra.mxu0 %v971
      %1065 = vmatprep.subr.bf16.mxu0 0
      %1066 = vmatpush1.bf16.msra.mxu0 %v970
      %1067 = vmatprep.subr.bf16.mxu0 0
      %1068 = vmatpush1.bf16.msra.mxu0 %v969
      %1069 = vmatprep.subr.bf16.mxu0 0
      %1070 = vmatpush1.bf16.msra.mxu0 %v968
      %1071 = vmatprep.subr.bf16.mxu0 0
      %1072 = vmatpush1.bf16.msra.mxu0 %v967
      %1073 = vmatprep.subr.bf16.mxu0 0
      %1074 = vmatpush1.bf16.msra.mxu0 %v966
      %1075 = vmatprep.subr.bf16.mxu0 0
      %1076 = vmatpush1.bf16.msra.mxu0 %v965
      %1077 = vmatprep.subr.bf16.mxu0 0
      %1078 = vmatpush2.bf16.msra.mxu0 %v980
      %1079 = vmatprep.subr.bf16.mxu0 0
      %1080 = vmatpush2.bf16.msra.mxu0 %v979
      %1081 = vmatprep.subr.bf16.mxu0 0
      %1082 = vmatpush2.bf16.msra.mxu0 %v978
      %1083 = vmatprep.subr.bf16.mxu0 0
      %1084 = vmatpush2.bf16.msra.mxu0 %v977
      %1085 = vmatprep.subr.bf16.mxu0 0
      %1086 = vmatpush2.bf16.msra.mxu0 %v976
      %1087 = vmatprep.subr.bf16.mxu0 0
      %1088 = vmatpush2.bf16.msra.mxu0 %v975
      %1089 = vmatprep.subr.bf16.mxu0 0
      %1090 = vmatpush2.bf16.msra.mxu0 %v974
      %1091 = vmatprep.subr.bf16.mxu0 0
      %1092 = vmatpush2.bf16.msra.mxu0 %v973
      %1093 = vmatprep.mubr.bf16.mxu0 %v808
      %1094 = vmatmul.mubr.bf16.gmra.mxu0 %v807
      %v1095 = vpop.f32.mrf.mxu0
      %v1096 = vadd.f32 %v1048, %v1095
      %v1097 = vpop.f32.mrf.mxu0
      %v1098 = vpop.f32.mrf.mxu0
      %v1099 = vadd.f32 %v1051, %v1098
      %v1100 = vpop.f32.mrf.mxu0
      %1101 = vmatprep.mubr.bf16.mxu0 %v812
      %1102 = vmatmul.mubr.bf16.gmra.mxu0 %v811
      %v1103 = vpop.f32.mrf.mxu0
      %v1104 = vadd.f32 %v1056, %v1103
      %v1105 = vpop.f32.mrf.mxu0
      %v1106 = vpop.f32.mrf.mxu0
      %v1107 = vpop.f32.mrf.mxu0
      %1108 = vdwg.mxu0
      %v1109 = vld [vmem:[%s233] sm:$0xcc]
      %v1110 = vld [vmem:[%s233 + $0x8] sm:$0xcc]
      %v1111 = vld [vmem:[%s233 + $0x30] sm:$0x77]
      %v1112 = vld [vmem:[%s233 + $0x38] sm:$0x77]
      %s1113 = scalar_lea.vmem %s237, 512
      %v1114 = vld [vmem:[%s1113] sm:$0xf]
      %v1115 = vld [vmem:[%s1113 + $0x4] sm:$0xf]
      %v1116 = vld [vmem:[%s1113 + $0x8] sm:$0xf]
      %v1117 = vld [vmem:[%s1113 + $0xc] sm:$0xf]
      %v1118 = vld [vmem:[%s1113 + $0x10] sm:$0xf]
      %v1119 = vld [vmem:[%s1113 + $0x14] sm:$0xf]
      %v1120 = vld [vmem:[%s1113 + $0x18] sm:$0xf]
      %v1121 = vld [vmem:[%s1113 + $0x1c] sm:$0xf]
      %v1122 = vld [vmem:[%s1113 + $0x20] sm:$0xf]
      %v1123 = vld [vmem:[%s1113 + $0x24] sm:$0xf]
      %v1124 = vld [vmem:[%s1113 + $0x28] sm:$0xf]
      %v1125 = vld [vmem:[%s1113 + $0x2c] sm:$0xf]
      %v1126 = vld [vmem:[%s1113 + $0x30] sm:$0xf]
      %v1127 = vld [vmem:[%s1113 + $0x34] sm:$0xf]
      %v1128 = vld [vmem:[%s1113 + $0x38] sm:$0xf]
      %v1129 = vld [vmem:[%s1113 + $0x3c] sm:$0xf]
      %v1130 = vld [vmem:[%s1113 + $0x40] sm:$0xf]
      %v1131 = vld [vmem:[%s1113 + $0x44] sm:$0xf]
      %v1132 = vld [vmem:[%s1113 + $0x48] sm:$0xf]
      %v1133 = vld [vmem:[%s1113 + $0x4c] sm:$0xf]
      %v1134 = vld [vmem:[%s1113 + $0x50] sm:$0xf]
      %v1135 = vld [vmem:[%s1113 + $0x54] sm:$0xf]
      %v1136 = vld [vmem:[%s1113 + $0x58] sm:$0xf]
      %v1137 = vld [vmem:[%s1113 + $0x5c] sm:$0xf]
      %v1138 = vld [vmem:[%s1113 + $0x60] sm:$0xf]
      %v1139 = vld [vmem:[%s1113 + $0x64] sm:$0xf]
      %v1140 = vld [vmem:[%s1113 + $0x68] sm:$0xf]
      %v1141 = vld [vmem:[%s1113 + $0x6c] sm:$0xf]
      %v1142 = vld [vmem:[%s1113 + $0x70] sm:$0xf]
      %v1143 = vld [vmem:[%s1113 + $0x74] sm:$0xf]
      %v1144 = vld [vmem:[%s1113 + $0x78] sm:$0xf]
      %v1145 = vld [vmem:[%s1113 + $0x7c] sm:$0xf]
      %v1146 = vld [vmem:[%s1113 + $0x80] sm:$0xf]
      %v1147 = vld [vmem:[%s1113 + $0x84] sm:$0xf]
      %v1148 = vld [vmem:[%s1113 + $0x88] sm:$0xf]
      %v1149 = vld [vmem:[%s1113 + $0x8c] sm:$0xf]
      %v1150 = vld [vmem:[%s1113 + $0x90] sm:$0xf]
      %v1151 = vld [vmem:[%s1113 + $0x94] sm:$0xf]
      %v1152 = vld [vmem:[%s1113 + $0x98] sm:$0xf]
      %v1153 = vld [vmem:[%s1113 + $0x9c] sm:$0xf]
      %v1154 = vld [vmem:[%s1113 + $0xa0] sm:$0xf]
      %v1155 = vld [vmem:[%s1113 + $0xa4] sm:$0xf]
      %v1156 = vld [vmem:[%s1113 + $0xa8] sm:$0xf]
      %v1157 = vld [vmem:[%s1113 + $0xac] sm:$0xf]
      %v1158 = vld [vmem:[%s1113 + $0xb0] sm:$0xf]
      %v1159 = vld [vmem:[%s1113 + $0xb4] sm:$0xf]
      %v1160 = vld [vmem:[%s1113 + $0xb8] sm:$0xf]
      %v1161 = vld [vmem:[%s1113 + $0xbc] sm:$0xf]
      %v1162 = vld [vmem:[%s1113 + $0xc0] sm:$0xf]
      %v1163 = vld [vmem:[%s1113 + $0xc4] sm:$0xf]
      %v1164 = vld [vmem:[%s1113 + $0xc8] sm:$0xf]
      %v1165 = vld [vmem:[%s1113 + $0xcc] sm:$0xf]
      %v1166 = vld [vmem:[%s1113 + $0xd0] sm:$0xf]
      %v1167 = vld [vmem:[%s1113 + $0xd4] sm:$0xf]
      %v1168 = vld [vmem:[%s1113 + $0xd8] sm:$0xf]
      %v1169 = vld [vmem:[%s1113 + $0xdc] sm:$0xf]
      %v1170 = vld [vmem:[%s1113 + $0xe0] sm:$0xf]
      %v1171 = vld [vmem:[%s1113 + $0xe4] sm:$0xf]
      %v1172 = vld [vmem:[%s1113 + $0xe8] sm:$0xf]
      %v1173 = vld [vmem:[%s1113 + $0xec] sm:$0xf]
      %v1174 = vld [vmem:[%s1113 + $0xf0] sm:$0xf]
      %v1175 = vld [vmem:[%s1113 + $0xf4] sm:$0xf]
      %v1176 = vld [vmem:[%s1113 + $0xf8] sm:$0xf]
      %v1177 = vld [vmem:[%s1113 + $0xfc] sm:$0xf]
      %v1182 = vunpack.c.l.b16 %v1109
      %v1183 = vunpack.c.h.b16 %v1109
      %v1184 = vunpack.c.l.b16 %v1110
      %v1185 = vunpack.c.h.b16 %v1110
      %v1186 = vunpack.c.l.b16 %v1111
      %v1187 = vunpack.c.h.b16 %v1111
      %v1188 = vunpack.c.l.b16 %v1112
      %v1189 = vunpack.c.h.b16 %v1112
      %v1190 = vpack.c.b16 %v410, %v1182
      %v1191 = vpack.c.b16 %v411, %v1183
      %v1192 = vpack.c.b16 %v412, %v1184
      %v1193 = vpack.c.b16 %v413, %v1185
      %v1194 = vpack.c.b16 %v1186, %v414
      %v1195 = vpack.c.b16 %v1187, %v415
      %v1196 = vpack.c.b16 %v1188, %v416
      %v1197 = vpack.c.b16 %v1189, %v417
      %vm1198 = vsmask.f32 5376
      %v1200 = vshrl.u32 %v1190, 16
      %v1202 = vrot.slane %v1200, 2
      %v1203 = vshll.u32 %v1190, 16
      %v1205 = vrot.slane %v1203, 3
      %v1206 = vor.u32 %v1202, %v1205
      %v1208 = vshrl.u32 %v1194, 16
      %v1210 = vrot.slane %v1208, 2
      %v1211 = vshll.u32 %v1194, 16
      %v1213 = vrot.slane %v1211, 3
      %v1214 = vor.u32 %v1210, %v1213
      %v1215 = vsel %vm1198, %v1206, %v1214
      %v1217 = vshrl.u32 %v1191, 16
      %v1219 = vrot.slane %v1217, 2
      %v1220 = vshll.u32 %v1191, 16
      %v1222 = vrot.slane %v1220, 3
      %v1223 = vor.u32 %v1219, %v1222
      %v1225 = vshrl.u32 %v1195, 16
      %v1227 = vrot.slane %v1225, 2
      %v1228 = vshll.u32 %v1195, 16
      %v1230 = vrot.slane %v1228, 3
      %v1231 = vor.u32 %v1227, %v1230
      %v1232 = vsel %vm1198, %v1223, %v1231
      %v1234 = vshrl.u32 %v1192, 16
      %v1236 = vrot.slane %v1234, 2
      %v1237 = vshll.u32 %v1192, 16
      %v1239 = vrot.slane %v1237, 3
      %v1240 = vor.u32 %v1236, %v1239
      %v1242 = vshrl.u32 %v1196, 16
      %v1244 = vrot.slane %v1242, 2
      %v1245 = vshll.u32 %v1196, 16
      %v1247 = vrot.slane %v1245, 3
      %v1248 = vor.u32 %v1244, %v1247
      %v1249 = vsel %vm1198, %v1240, %v1248
      %v1251 = vshrl.u32 %v1193, 16
      %v1253 = vrot.slane %v1251, 2
      %v1254 = vshll.u32 %v1193, 16
      %v1256 = vrot.slane %v1254, 3
      %v1257 = vor.u32 %v1253, %v1256
      %v1259 = vshrl.u32 %v1197, 16
      %v1261 = vrot.slane %v1259, 2
      %v1262 = vshll.u32 %v1197, 16
      %v1264 = vrot.slane %v1262, 3
      %v1265 = vor.u32 %v1261, %v1264
      %v1266 = vsel %vm1198, %v1257, %v1265
      %v1339 = vunpack.c.l.b16 %v1114
      %v1340 = vunpack.c.l.b16 %v1115
      %v1341 = vunpack.c.l.b16 %v1116
      %v1342 = vunpack.c.l.b16 %v1117
      %v1343 = vunpack.c.l.b16 %v1118
      %v1344 = vunpack.c.l.b16 %v1119
      %v1345 = vunpack.c.l.b16 %v1120
      %v1346 = vunpack.c.l.b16 %v1121
      %v1347 = vunpack.c.l.b16 %v1122
      %v1348 = vunpack.c.l.b16 %v1123
      %v1349 = vunpack.c.l.b16 %v1124
      %v1350 = vunpack.c.l.b16 %v1125
      %v1351 = vunpack.c.l.b16 %v1126
      %v1352 = vunpack.c.l.b16 %v1127
      %v1353 = vunpack.c.l.b16 %v1128
      %v1354 = vunpack.c.l.b16 %v1129
      %v1355 = vunpack.c.l.b16 %v1130
      %v1356 = vunpack.c.l.b16 %v1131
      %v1357 = vunpack.c.l.b16 %v1132
      %v1358 = vunpack.c.l.b16 %v1133
      %v1359 = vunpack.c.l.b16 %v1134
      %v1360 = vunpack.c.l.b16 %v1135
      %v1361 = vunpack.c.l.b16 %v1136
      %v1362 = vunpack.c.l.b16 %v1137
      %v1363 = vunpack.c.l.b16 %v1138
      %v1364 = vunpack.c.l.b16 %v1139
      %v1365 = vunpack.c.l.b16 %v1140
      %v1366 = vunpack.c.l.b16 %v1141
      %v1367 = vunpack.c.l.b16 %v1142
      %v1368 = vunpack.c.l.b16 %v1143
      %v1369 = vunpack.c.l.b16 %v1144
      %v1370 = vunpack.c.l.b16 %v1145
      %v1371 = vunpack.c.l.b16 %v1146
      %v1372 = vunpack.c.l.b16 %v1147
      %v1373 = vunpack.c.l.b16 %v1148
      %v1374 = vunpack.c.l.b16 %v1149
      %v1375 = vunpack.c.l.b16 %v1150
      %v1376 = vunpack.c.l.b16 %v1151
      %v1377 = vunpack.c.l.b16 %v1152
      %v1378 = vunpack.c.l.b16 %v1153
      %v1379 = vunpack.c.l.b16 %v1154
      %v1380 = vunpack.c.l.b16 %v1155
      %v1381 = vunpack.c.l.b16 %v1156
      %v1382 = vunpack.c.l.b16 %v1157
      %v1383 = vunpack.c.l.b16 %v1158
      %v1384 = vunpack.c.l.b16 %v1159
      %v1385 = vunpack.c.l.b16 %v1160
      %v1386 = vunpack.c.l.b16 %v1161
      %v1387 = vunpack.c.l.b16 %v1162
      %v1388 = vunpack.c.l.b16 %v1163
      %v1389 = vunpack.c.l.b16 %v1164
      %v1390 = vunpack.c.l.b16 %v1165
      %v1391 = vunpack.c.l.b16 %v1166
      %v1392 = vunpack.c.l.b16 %v1167
      %v1393 = vunpack.c.l.b16 %v1168
      %v1394 = vunpack.c.l.b16 %v1169
      %v1395 = vunpack.c.l.b16 %v1170
      %v1396 = vunpack.c.l.b16 %v1171
      %v1397 = vunpack.c.l.b16 %v1172
      %v1398 = vunpack.c.l.b16 %v1173
      %v1399 = vunpack.c.l.b16 %v1174
      %v1400 = vunpack.c.l.b16 %v1175
      %v1401 = vunpack.c.l.b16 %v1176
      %v1402 = vunpack.c.l.b16 %v1177
      %v1403 = vpack.c.b16 %v1340, %v1339
      %v1404 = vpack.c.b16 %v1342, %v1341
      %v1405 = vpack.c.b16 %v1344, %v1343
      %v1406 = vpack.c.b16 %v1346, %v1345
      %v1407 = vpack.c.b16 %v1348, %v1347
      %v1408 = vpack.c.b16 %v1350, %v1349
      %v1409 = vpack.c.b16 %v1352, %v1351
      %v1410 = vpack.c.b16 %v1354, %v1353
      %v1411 = vpack.c.b16 %v1356, %v1355
      %v1412 = vpack.c.b16 %v1358, %v1357
      %v1413 = vpack.c.b16 %v1360, %v1359
      %v1414 = vpack.c.b16 %v1362, %v1361
      %v1415 = vpack.c.b16 %v1364, %v1363
      %v1416 = vpack.c.b16 %v1366, %v1365
      %v1417 = vpack.c.b16 %v1368, %v1367
      %v1418 = vpack.c.b16 %v1370, %v1369
      %v1419 = vpack.c.b16 %v1372, %v1371
      %v1420 = vpack.c.b16 %v1374, %v1373
      %v1421 = vpack.c.b16 %v1376, %v1375
      %v1422 = vpack.c.b16 %v1378, %v1377
      %v1423 = vpack.c.b16 %v1380, %v1379
      %v1424 = vpack.c.b16 %v1382, %v1381
      %v1425 = vpack.c.b16 %v1384, %v1383
      %v1426 = vpack.c.b16 %v1386, %v1385
      %v1427 = vpack.c.b16 %v1388, %v1387
      %v1428 = vpack.c.b16 %v1390, %v1389
      %v1429 = vpack.c.b16 %v1392, %v1391
      %v1430 = vpack.c.b16 %v1394, %v1393
      %v1431 = vpack.c.b16 %v1396, %v1395
      %v1432 = vpack.c.b16 %v1398, %v1397
      %v1433 = vpack.c.b16 %v1400, %v1399
      %v1434 = vpack.c.b16 %v1402, %v1401
      %1467 = vmatprep.subr.bf16.mxu0 0
      %1468 = vmatpush1.bf16.msra.mxu0 %v1410
      %1469 = vmatprep.subr.bf16.mxu0 0
      %1470 = vmatpush1.bf16.msra.mxu0 %v1409
      %1471 = vmatprep.subr.bf16.mxu0 0
      %1472 = vmatpush1.bf16.msra.mxu0 %v1408
      %1473 = vmatprep.subr.bf16.mxu0 0
      %1474 = vmatpush1.bf16.msra.mxu0 %v1407
      %1475 = vmatprep.subr.bf16.mxu0 0
      %1476 = vmatpush1.bf16.msra.mxu0 %v1406
      %1477 = vmatprep.subr.bf16.mxu0 0
      %1478 = vmatpush1.bf16.msra.mxu0 %v1405
      %1479 = vmatprep.subr.bf16.mxu0 0
      %1480 = vmatpush1.bf16.msra.mxu0 %v1404
      %1481 = vmatprep.subr.bf16.mxu0 0
      %1482 = vmatpush1.bf16.msra.mxu0 %v1403
      %1483 = vmatprep.subr.bf16.mxu0 0
      %1484 = vmatpush2.bf16.msra.mxu0 %v1418
      %1485 = vmatprep.subr.bf16.mxu0 0
      %1486 = vmatpush2.bf16.msra.mxu0 %v1417
      %1487 = vmatprep.subr.bf16.mxu0 0
      %1488 = vmatpush2.bf16.msra.mxu0 %v1416
      %1489 = vmatprep.subr.bf16.mxu0 0
      %1490 = vmatpush2.bf16.msra.mxu0 %v1415
      %1491 = vmatprep.subr.bf16.mxu0 0
      %1492 = vmatpush2.bf16.msra.mxu0 %v1414
      %1493 = vmatprep.subr.bf16.mxu0 0
      %1494 = vmatpush2.bf16.msra.mxu0 %v1413
      %1495 = vmatprep.subr.bf16.mxu0 0
      %1496 = vmatpush2.bf16.msra.mxu0 %v1412
      %1497 = vmatprep.subr.bf16.mxu0 0
      %1498 = vmatpush2.bf16.msra.mxu0 %v1411
      %1499 = vmatprep.mubr.bf16.mxu0 %v1232
      %1500 = vmatmul.mubr.bf16.gmra.mxu0 %v1215
      %v1501 = vpop.f32.mrf.mxu0
      %v1502 = vadd.f32 0.0, %v1501
      %v1503 = vpop.f32.mrf.mxu0
      %v1504 = vpop.f32.mrf.mxu0
      %v1505 = vadd.f32 0.0, %v1504
      %v1506 = vpop.f32.mrf.mxu0
      %1507 = vmatprep.mubr.bf16.mxu0 %v1231
      %1508 = vmatmul.mubr.bf16.gmra.mxu0 %v1214
      %v1509 = vpop.f32.mrf.mxu0
      %v1510 = vadd.f32 0.0, %v1509
      %v1511 = vpop.f32.mrf.mxu0
      %v1512 = vpop.f32.mrf.mxu0
      %v1513 = vpop.f32.mrf.mxu0
      %1514 = vdwg.mxu0
      %1515 = vmatprep.subr.bf16.mxu0 0
      %1516 = vmatpush1.bf16.msra.mxu0 %v1426
      %1517 = vmatprep.subr.bf16.mxu0 0
      %1518 = vmatpush1.bf16.msra.mxu0 %v1425
      %1519 = vmatprep.subr.bf16.mxu0 0
      %1520 = vmatpush1.bf16.msra.mxu0 %v1424
      %1521 = vmatprep.subr.bf16.mxu0 0
      %1522 = vmatpush1.bf16.msra.mxu0 %v1423
      %1523 = vmatprep.subr.bf16.mxu0 0
      %1524 = vmatpush1.bf16.msra.mxu0 %v1422
      %1525 = vmatprep.subr.bf16.mxu0 0
      %1526 = vmatpush1.bf16.msra.mxu0 %v1421
      %1527 = vmatprep.subr.bf16.mxu0 0
      %1528 = vmatpush1.bf16.msra.mxu0 %v1420
      %1529 = vmatprep.subr.bf16.mxu0 0
      %1530 = vmatpush1.bf16.msra.mxu0 %v1419
      %1531 = vmatprep.subr.bf16.mxu0 0
      %1532 = vmatpush2.bf16.msra.mxu0 %v1434
      %1533 = vmatprep.subr.bf16.mxu0 0
      %1534 = vmatpush2.bf16.msra.mxu0 %v1433
      %1535 = vmatprep.subr.bf16.mxu0 0
      %1536 = vmatpush2.bf16.msra.mxu0 %v1432
      %1537 = vmatprep.subr.bf16.mxu0 0
      %1538 = vmatpush2.bf16.msra.mxu0 %v1431
      %1539 = vmatprep.subr.bf16.mxu0 0
      %1540 = vmatpush2.bf16.msra.mxu0 %v1430
      %1541 = vmatprep.subr.bf16.mxu0 0
      %1542 = vmatpush2.bf16.msra.mxu0 %v1429
      %1543 = vmatprep.subr.bf16.mxu0 0
      %1544 = vmatpush2.bf16.msra.mxu0 %v1428
      %1545 = vmatprep.subr.bf16.mxu0 0
      %1546 = vmatpush2.bf16.msra.mxu0 %v1427
      %1547 = vmatprep.mubr.bf16.mxu0 %v1266
      %1548 = vmatmul.mubr.bf16.gmra.mxu0 %v1249
      %v1549 = vpop.f32.mrf.mxu0
      %v1550 = vadd.f32 %v1502, %v1549
      %v1551 = vpop.f32.mrf.mxu0
      %v1552 = vpop.f32.mrf.mxu0
      %v1553 = vadd.f32 %v1505, %v1552
      %v1554 = vpop.f32.mrf.mxu0
      %1555 = vmatprep.mubr.bf16.mxu0 %v1265
      %1556 = vmatmul.mubr.bf16.gmra.mxu0 %v1248
      %v1557 = vpop.f32.mrf.mxu0
      %v1558 = vadd.f32 %v1510, %v1557
      %v1559 = vpop.f32.mrf.mxu0
      %v1560 = vpop.f32.mrf.mxu0
      %v1561 = vpop.f32.mrf.mxu0
      %1562 = vdwg.mxu0
      %v1563 = vadd.f32 %v1096, %v1550
      %v1564 = vadd.f32 %v1099, %v1553
      %v1565 = vadd.f32 %v1104, %v1558
      %v1566 = vld [vmem:[%s233] sm:$0x88]
      %v1567 = vld [vmem:[%s233 + $0x8] sm:$0x88]
      %s1568 = scalar_lea.vmem %s237, 768
      %v1569 = vld [vmem:[%s1568] sm:$0xf]
      %v1570 = vld [vmem:[%s1568 + $0x4] sm:$0xf]
      %v1571 = vld [vmem:[%s1568 + $0x8] sm:$0xf]
      %v1572 = vld [vmem:[%s1568 + $0xc] sm:$0xf]
      %v1573 = vld [vmem:[%s1568 + $0x10] sm:$0xf]
      %v1574 = vld [vmem:[%s1568 + $0x14] sm:$0xf]
      %v1575 = vld [vmem:[%s1568 + $0x18] sm:$0xf]
      %v1576 = vld [vmem:[%s1568 + $0x1c] sm:$0xf]
      %v1577 = vld [vmem:[%s1568 + $0x20] sm:$0xf]
      %v1578 = vld [vmem:[%s1568 + $0x24] sm:$0xf]
      %v1579 = vld [vmem:[%s1568 + $0x28] sm:$0xf]
      %v1580 = vld [vmem:[%s1568 + $0x2c] sm:$0xf]
      %v1581 = vld [vmem:[%s1568 + $0x30] sm:$0xf]
      %v1582 = vld [vmem:[%s1568 + $0x34] sm:$0xf]
      %v1583 = vld [vmem:[%s1568 + $0x38] sm:$0xf]
      %v1584 = vld [vmem:[%s1568 + $0x3c] sm:$0xf]
      %v1585 = vld [vmem:[%s1568 + $0x40] sm:$0xf]
      %v1586 = vld [vmem:[%s1568 + $0x44] sm:$0xf]
      %v1587 = vld [vmem:[%s1568 + $0x48] sm:$0xf]
      %v1588 = vld [vmem:[%s1568 + $0x4c] sm:$0xf]
      %v1589 = vld [vmem:[%s1568 + $0x50] sm:$0xf]
      %v1590 = vld [vmem:[%s1568 + $0x54] sm:$0xf]
      %v1591 = vld [vmem:[%s1568 + $0x58] sm:$0xf]
      %v1592 = vld [vmem:[%s1568 + $0x5c] sm:$0xf]
      %v1593 = vld [vmem:[%s1568 + $0x60] sm:$0xf]
      %v1594 = vld [vmem:[%s1568 + $0x64] sm:$0xf]
      %v1595 = vld [vmem:[%s1568 + $0x68] sm:$0xf]
      %v1596 = vld [vmem:[%s1568 + $0x6c] sm:$0xf]
      %v1597 = vld [vmem:[%s1568 + $0x70] sm:$0xf]
      %v1598 = vld [vmem:[%s1568 + $0x74] sm:$0xf]
      %v1599 = vld [vmem:[%s1568 + $0x78] sm:$0xf]
      %v1600 = vld [vmem:[%s1568 + $0x7c] sm:$0xf]
      %v1601 = vld [vmem:[%s1568 + $0x80] sm:$0xf]
      %v1602 = vld [vmem:[%s1568 + $0x84] sm:$0xf]
      %v1603 = vld [vmem:[%s1568 + $0x88] sm:$0xf]
      %v1604 = vld [vmem:[%s1568 + $0x8c] sm:$0xf]
      %v1605 = vld [vmem:[%s1568 + $0x90] sm:$0xf]
      %v1606 = vld [vmem:[%s1568 + $0x94] sm:$0xf]
      %v1607 = vld [vmem:[%s1568 + $0x98] sm:$0xf]
      %v1608 = vld [vmem:[%s1568 + $0x9c] sm:$0xf]
      %v1609 = vld [vmem:[%s1568 + $0xa0] sm:$0xf]
      %v1610 = vld [vmem:[%s1568 + $0xa4] sm:$0xf]
      %v1611 = vld [vmem:[%s1568 + $0xa8] sm:$0xf]
      %v1612 = vld [vmem:[%s1568 + $0xac] sm:$0xf]
      %v1613 = vld [vmem:[%s1568 + $0xb0] sm:$0xf]
      %v1614 = vld [vmem:[%s1568 + $0xb4] sm:$0xf]
      %v1615 = vld [vmem:[%s1568 + $0xb8] sm:$0xf]
      %v1616 = vld [vmem:[%s1568 + $0xbc] sm:$0xf]
      %v1617 = vld [vmem:[%s1568 + $0xc0] sm:$0xf]
      %v1618 = vld [vmem:[%s1568 + $0xc4] sm:$0xf]
      %v1619 = vld [vmem:[%s1568 + $0xc8] sm:$0xf]
      %v1620 = vld [vmem:[%s1568 + $0xcc] sm:$0xf]
      %v1621 = vld [vmem:[%s1568 + $0xd0] sm:$0xf]
      %v1622 = vld [vmem:[%s1568 + $0xd4] sm:$0xf]
      %v1623 = vld [vmem:[%s1568 + $0xd8] sm:$0xf]
      %v1624 = vld [vmem:[%s1568 + $0xdc] sm:$0xf]
      %v1625 = vld [vmem:[%s1568 + $0xe0] sm:$0xf]
      %v1626 = vld [vmem:[%s1568 + $0xe4] sm:$0xf]
      %v1627 = vld [vmem:[%s1568 + $0xe8] sm:$0xf]
      %v1628 = vld [vmem:[%s1568 + $0xec] sm:$0xf]
      %v1629 = vld [vmem:[%s1568 + $0xf0] sm:$0xf]
      %v1630 = vld [vmem:[%s1568 + $0xf4] sm:$0xf]
      %v1631 = vld [vmem:[%s1568 + $0xf8] sm:$0xf]
      %v1632 = vld [vmem:[%s1568 + $0xfc] sm:$0xf]
      %v1635 = vunpack.c.l.b16 %v1566
      %v1636 = vunpack.c.h.b16 %v1566
      %v1637 = vunpack.c.l.b16 %v1567
      %v1638 = vunpack.c.h.b16 %v1567
      %v1639 = vpack.c.b16 %v410, %v1635
      %v1640 = vpack.c.b16 %v411, %v1636
      %v1641 = vpack.c.b16 %v412, %v1637
      %v1642 = vpack.c.b16 %v413, %v1638
      %vm1643 = vcmask 1044480
      %v1644 = vrot.slane %v1639, 3
      %v1645 = vrot.slane %v1194, 3
      %v1646 = vsel %vm1643, %v1644, %v1645
      %v1647 = vrot.slane %v1640, 3
      %v1648 = vrot.slane %v1195, 3
      %v1649 = vsel %vm1643, %v1647, %v1648
      %v1650 = vrot.slane %v1641, 3
      %v1651 = vrot.slane %v1196, 3
      %v1652 = vsel %vm1643, %v1650, %v1651
      %v1653 = vrot.slane %v1642, 3
      %v1654 = vrot.slane %v1197, 3
      %v1655 = vsel %vm1643, %v1653, %v1654
      %v1728 = vunpack.c.l.b16 %v1569
      %v1729 = vunpack.c.l.b16 %v1570
      %v1730 = vunpack.c.l.b16 %v1571
      %v1731 = vunpack.c.l.b16 %v1572
      %v1732 = vunpack.c.l.b16 %v1573
      %v1733 = vunpack.c.l.b16 %v1574
      %v1734 = vunpack.c.l.b16 %v1575
      %v1735 = vunpack.c.l.b16 %v1576
      %v1736 = vunpack.c.l.b16 %v1577
      %v1737 = vunpack.c.l.b16 %v1578
      %v1738 = vunpack.c.l.b16 %v1579
      %v1739 = vunpack.c.l.b16 %v1580
      %v1740 = vunpack.c.l.b16 %v1581
      %v1741 = vunpack.c.l.b16 %v1582
      %v1742 = vunpack.c.l.b16 %v1583
      %v1743 = vunpack.c.l.b16 %v1584
      %v1744 = vunpack.c.l.b16 %v1585
      %v1745 = vunpack.c.l.b16 %v1586
      %v1746 = vunpack.c.l.b16 %v1587
      %v1747 = vunpack.c.l.b16 %v1588
      %v1748 = vunpack.c.l.b16 %v1589
      %v1749 = vunpack.c.l.b16 %v1590
      %v1750 = vunpack.c.l.b16 %v1591
      %v1751 = vunpack.c.l.b16 %v1592
      %v1752 = vunpack.c.l.b16 %v1593
      %v1753 = vunpack.c.l.b16 %v1594
      %v1754 = vunpack.c.l.b16 %v1595
      %v1755 = vunpack.c.l.b16 %v1596
      %v1756 = vunpack.c.l.b16 %v1597
      %v1757 = vunpack.c.l.b16 %v1598
      %v1758 = vunpack.c.l.b16 %v1599
      %v1759 = vunpack.c.l.b16 %v1600
      %v1760 = vunpack.c.l.b16 %v1601
      %v1761 = vunpack.c.l.b16 %v1602
      %v1762 = vunpack.c.l.b16 %v1603
      %v1763 = vunpack.c.l.b16 %v1604
      %v1764 = vunpack.c.l.b16 %v1605
      %v1765 = vunpack.c.l.b16 %v1606
      %v1766 = vunpack.c.l.b16 %v1607
      %v1767 = vunpack.c.l.b16 %v1608
      %v1768 = vunpack.c.l.b16 %v1609
      %v1769 = vunpack.c.l.b16 %v1610
      %v1770 = vunpack.c.l.b16 %v1611
      %v1771 = vunpack.c.l.b16 %v1612
      %v1772 = vunpack.c.l.b16 %v1613
      %v1773 = vunpack.c.l.b16 %v1614
      %v1774 = vunpack.c.l.b16 %v1615
      %v1775 = vunpack.c.l.b16 %v1616
      %v1776 = vunpack.c.l.b16 %v1617
      %v1777 = vunpack.c.l.b16 %v1618
      %v1778 = vunpack.c.l.b16 %v1619
      %v1779 = vunpack.c.l.b16 %v1620
      %v1780 = vunpack.c.l.b16 %v1621
      %v1781 = vunpack.c.l.b16 %v1622
      %v1782 = vunpack.c.l.b16 %v1623
      %v1783 = vunpack.c.l.b16 %v1624
      %v1784 = vunpack.c.l.b16 %v1625
      %v1785 = vunpack.c.l.b16 %v1626
      %v1786 = vunpack.c.l.b16 %v1627
      %v1787 = vunpack.c.l.b16 %v1628
      %v1788 = vunpack.c.l.b16 %v1629
      %v1789 = vunpack.c.l.b16 %v1630
      %v1790 = vunpack.c.l.b16 %v1631
      %v1791 = vunpack.c.l.b16 %v1632
      %v1792 = vpack.c.b16 %v1729, %v1728
      %v1793 = vpack.c.b16 %v1731, %v1730
      %v1794 = vpack.c.b16 %v1733, %v1732
      %v1795 = vpack.c.b16 %v1735, %v1734
      %v1796 = vpack.c.b16 %v1737, %v1736
      %v1797 = vpack.c.b16 %v1739, %v1738
      %v1798 = vpack.c.b16 %v1741, %v1740
      %v1799 = vpack.c.b16 %v1743, %v1742
      %v1800 = vpack.c.b16 %v1745, %v1744
      %v1801 = vpack.c.b16 %v1747, %v1746
      %v1802 = vpack.c.b16 %v1749, %v1748
      %v1803 = vpack.c.b16 %v1751, %v1750
      %v1804 = vpack.c.b16 %v1753, %v1752
      %v1805 = vpack.c.b16 %v1755, %v1754
      %v1806 = vpack.c.b16 %v1757, %v1756
      %v1807 = vpack.c.b16 %v1759, %v1758
      %v1808 = vpack.c.b16 %v1761, %v1760
      %v1809 = vpack.c.b16 %v1763, %v1762
      %v1810 = vpack.c.b16 %v1765, %v1764
      %v1811 = vpack.c.b16 %v1767, %v1766
      %v1812 = vpack.c.b16 %v1769, %v1768
      %v1813 = vpack.c.b16 %v1771, %v1770
      %v1814 = vpack.c.b16 %v1773, %v1772
      %v1815 = vpack.c.b16 %v1775, %v1774
      %v1816 = vpack.c.b16 %v1777, %v1776
      %v1817 = vpack.c.b16 %v1779, %v1778
      %v1818 = vpack.c.b16 %v1781, %v1780
      %v1819 = vpack.c.b16 %v1783, %v1782
      %v1820 = vpack.c.b16 %v1785, %v1784
      %v1821 = vpack.c.b16 %v1787, %v1786
      %v1822 = vpack.c.b16 %v1789, %v1788
      %v1823 = vpack.c.b16 %v1791, %v1790
      %1856 = vmatprep.subr.bf16.mxu0 0
      %1857 = vmatpush1.bf16.msra.mxu0 %v1799
      %1858 = vmatprep.subr.bf16.mxu0 0
      %1859 = vmatpush1.bf16.msra.mxu0 %v1798
      %1860 = vmatprep.subr.bf16.mxu0 0
      %1861 = vmatpush1.bf16.msra.mxu0 %v1797
      %1862 = vmatprep.subr.bf16.mxu0 0
      %1863 = vmatpush1.bf16.msra.mxu0 %v1796
      %1864 = vmatprep.subr.bf16.mxu0 0
      %1865 = vmatpush1.bf16.msra.mxu0 %v1795
      %1866 = vmatprep.subr.bf16.mxu0 0
      %1867 = vmatpush1.bf16.msra.mxu0 %v1794
      %1868 = vmatprep.subr.bf16.mxu0 0
      %1869 = vmatpush1.bf16.msra.mxu0 %v1793
      %1870 = vmatprep.subr.bf16.mxu0 0
      %1871 = vmatpush1.bf16.msra.mxu0 %v1792
      %1872 = vmatprep.subr.bf16.mxu0 0
      %1873 = vmatpush2.bf16.msra.mxu0 %v1807
      %1874 = vmatprep.subr.bf16.mxu0 0
      %1875 = vmatpush2.bf16.msra.mxu0 %v1806
      %1876 = vmatprep.subr.bf16.mxu0 0
      %1877 = vmatpush2.bf16.msra.mxu0 %v1805
      %1878 = vmatprep.subr.bf16.mxu0 0
      %1879 = vmatpush2.bf16.msra.mxu0 %v1804
      %1880 = vmatprep.subr.bf16.mxu0 0
      %1881 = vmatpush2.bf16.msra.mxu0 %v1803
      %1882 = vmatprep.subr.bf16.mxu0 0
      %1883 = vmatpush2.bf16.msra.mxu0 %v1802
      %1884 = vmatprep.subr.bf16.mxu0 0
      %1885 = vmatpush2.bf16.msra.mxu0 %v1801
      %1886 = vmatprep.subr.bf16.mxu0 0
      %1887 = vmatpush2.bf16.msra.mxu0 %v1800
      %1888 = vmatprep.mubr.bf16.mxu0 %v1649
      %1889 = vmatmul.mubr.bf16.gmra.mxu0 %v1646
      %v1890 = vpop.f32.mrf.mxu0
      %v1891 = vadd.f32 0.0, %v1890
      %v1892 = vpop.f32.mrf.mxu0
      %v1893 = vpop.f32.mrf.mxu0
      %v1894 = vadd.f32 0.0, %v1893
      %v1895 = vpop.f32.mrf.mxu0
      %1896 = vmatprep.mubr.bf16.mxu0 %v1648
      %1897 = vmatmul.mubr.bf16.gmra.mxu0 %v1645
      %v1898 = vpop.f32.mrf.mxu0
      %v1899 = vadd.f32 0.0, %v1898
      %v1900 = vpop.f32.mrf.mxu0
      %v1901 = vpop.f32.mrf.mxu0
      %v1902 = vpop.f32.mrf.mxu0
      %1903 = vdwg.mxu0
      %1904 = vmatprep.subr.bf16.mxu0 0
      %1905 = vmatpush1.bf16.msra.mxu0 %v1815
      %1906 = vmatprep.subr.bf16.mxu0 0
      %1907 = vmatpush1.bf16.msra.mxu0 %v1814
      %1908 = vmatprep.subr.bf16.mxu0 0
      %1909 = vmatpush1.bf16.msra.mxu0 %v1813
      %1910 = vmatprep.subr.bf16.mxu0 0
      %1911 = vmatpush1.bf16.msra.mxu0 %v1812
      %1912 = vmatprep.subr.bf16.mxu0 0
      %1913 = vmatpush1.bf16.msra.mxu0 %v1811
      %1914 = vmatprep.subr.bf16.mxu0 0
      %1915 = vmatpush1.bf16.msra.mxu0 %v1810
      %1916 = vmatprep.subr.bf16.mxu0 0
      %1917 = vmatpush1.bf16.msra.mxu0 %v1809
      %1918 = vmatprep.subr.bf16.mxu0 0
      %1919 = vmatpush1.bf16.msra.mxu0 %v1808
      %1920 = vmatprep.subr.bf16.mxu0 0
      %1921 = vmatpush2.bf16.msra.mxu0 %v1823
      %1922 = vmatprep.subr.bf16.mxu0 0
      %1923 = vmatpush2.bf16.msra.mxu0 %v1822
      %1924 = vmatprep.subr.bf16.mxu0 0
      %1925 = vmatpush2.bf16.msra.mxu0 %v1821
      %1926 = vmatprep.subr.bf16.mxu0 0
      %1927 = vmatpush2.bf16.msra.mxu0 %v1820
      %1928 = vmatprep.subr.bf16.mxu0 0
      %1929 = vmatpush2.bf16.msra.mxu0 %v1819
      %1930 = vmatprep.subr.bf16.mxu0 0
      %1931 = vmatpush2.bf16.msra.mxu0 %v1818
      %1932 = vmatprep.subr.bf16.mxu0 0
      %1933 = vmatpush2.bf16.msra.mxu0 %v1817
      %1934 = vmatprep.subr.bf16.mxu0 0
      %1935 = vmatpush2.bf16.msra.mxu0 %v1816
      %1936 = vmatprep.mubr.bf16.mxu0 %v1655
      %1937 = vmatmul.mubr.bf16.gmra.mxu0 %v1652
      %v1938 = vpop.f32.mrf.mxu0
      %v1939 = vadd.f32 %v1891, %v1938
      %v1940 = vpop.f32.mrf.mxu0
      %v1941 = vpop.f32.mrf.mxu0
      %v1942 = vadd.f32 %v1894, %v1941
      %v1943 = vpop.f32.mrf.mxu0
      %1944 = vmatprep.mubr.bf16.mxu0 %v1654
      %1945 = vmatmul.mubr.bf16.gmra.mxu0 %v1651
      %v1946 = vpop.f32.mrf.mxu0
      %v1947 = vadd.f32 %v1899, %v1946
      %v1948 = vpop.f32.mrf.mxu0
      %v1949 = vpop.f32.mrf.mxu0
      %v1950 = vpop.f32.mrf.mxu0
      %1951 = vdwg.mxu0
      %v1952 = vadd.f32 %v1563, %v1939
      %v1953 = vadd.f32 %v1564, %v1942
      %v1954 = vadd.f32 %v1565, %v1947
      %v1955 = vld [vmem:[%s240] sm:$0x1]
      %v1957 = vlaneseq
      %v1958 = vshrl.u32 %v1957, 7
      %v1959 = vsub.s32 0, %v1958
      %v1960 = vrot.slane %v1955, %v1959
      %v1962 = vadd.f32 %v1952, %v1960
      %v1963 = vadd.f32 %v1953, %v1960
      %v1964 = vadd.f32 %v1954, %v1960
      %vm1965 = vcmp.ge.f32.partialorder %v1962, 0.0
      %vm1966 = vcmp.ge.f32.partialorder %v1963, 0.0
      %vm1967 = vcmp.ge.f32.partialorder %v1964, 0.0
      %v1968 = vmul.f32 %v1962, 0.2
      %v1969 = vmul.f32 %v1963, 0.2
      %v1970 = vmul.f32 %v1964, 0.2
      %v1971 = vsel %vm1965, %v1962, %v1968
      %v1972 = vsel %vm1966, %v1963, %v1969
      %v1973 = vsel %vm1967, %v1964, %v1970
      %v1974 = vpack.c.bf16 %v1972, %v1971
      %v1975 = vpack.c.bf16 %v1973, %v1973
      %v1978 = vunpack.c.l.b16 %v1974
      %v1979 = vunpack.c.h.b16 %v1974
      %v1980 = vunpack.c.l.b16 %v1975
      %v1981 = vpack.c.b16 %v1978, %v1978
      %v1982 = vpack.c.b16 %v1979, %v1979
      %v1983 = vpack.c.b16 %v1980, %v1980
      %1987 = vst [vmem:[%s252] sm:$0xf] %v1981
      %1988 = vst [vmem:[%s252 + $0x4] sm:$0xf] %v1982
      %1989 = vst [vmem:[%s252 + $0x8] sm:$0xf] %v1983
      %s1990 = smul.u32 3, %s20
      %p1991 = scmp.lt.s32.totalorder %s19, 1
      %s1992 = scalar_select %p1991, %s19, 1
      %p1993 = scmp.lt.s32.totalorder %s1990, 2
      %s1994 = scalar_select %p1993, %s1990, 2
      %p1995 = scmp.lt.s32.totalorder %s21, 0
      %s1996 = scalar_select %p1995, %s21, 0
      %s1997 = sadd.s32 %s1996, %s1994
      %s1998 = smul.addr %s1992, 3
      %s1999 = sadd.s32 %s1997, %s1998
      %s2000 = smul.addr %s1999, 4
      %s2001 = scalar_lea.vmem %s3, %s2000
      // Predicated region
      $region33: #{discriminator_forward.6} parent=31 // pred_check
        %p2002 = pneg %p135
      $region34: #{discriminator_forward.6} parent=31 // pred_check_branch
        %2004 = sbr.rel (%p2002) target = $region36
      $region35: #{discriminator_forward.6} parent=31 // pred_region
        %s2005 = smul.u32 3, %s20
      $region36: #{discriminator_forward.6} parent=31 // pred_fallthru
        _
    $region32: #{discriminator_forward.6} parent=5 // pred_fallthru
      _
    %p2006 = scmp.le.s32.totalorder 2, %s9
    // Predicated region
    $region37: #{discriminator_forward.6} parent=5 // pred_check
      %p2007 = pneg %p2006
    $region38: #{discriminator_forward.6} parent=5 // pred_check_branch
      %2009 = sbr.rel (%p2007) target = $region40
    $region39: #{discriminator_forward.6} parent=5 // pred_region
      %s2010 = ssub.s32 %s9, 2
      // Predicated region
      $region41: #{discriminator_forward.6} parent=39 // pred_check
        %p2011 = pneg %p141
      $region42: #{discriminator_forward.6} parent=39 // pred_check_branch
        %2013 = sbr.rel (%p2011) target = $region44
      $region43: #{discriminator_forward.6} parent=39 // pred_region
        %s2014 = smul.u32 3, %s23
        %p2015 = scmp.lt.s32.totalorder %s22, 1
        %s2016 = scalar_select %p2015, %s22, 1
        %p2017 = scmp.lt.s32.totalorder %s2014, 2
        %s2018 = scalar_select %p2017, %s2014, 2
        %p2019 = scmp.lt.s32.totalorder %s24, 0
        %s2020 = scalar_select %p2019, %s24, 0
        %s2021 = sadd.s32 %s2020, %s2018
        %s2022 = smul.addr %s2016, 3
        %s2023 = sadd.s32 %s2021, %s2022
        %s2024 = smul.addr %s2023, 4
        %s2025 = scalar_lea.vmem %s3, %s2024
      $region44: #{discriminator_forward.6} parent=39 // pred_fallthru
        _
    $region40: #{discriminator_forward.6} parent=5 // pred_fallthru
      _
  $region6: #{discriminator_forward.6} parent=0 // loop_footer
    %s13 = sadd.s32 1, %s9
  $region7: #{discriminator_forward.6} parent=0 // loop_footer_branch
    %8 = sbr.rel target = $region3
  $region8: #{discriminator_forward.6} parent=0 // loop_exit
    _

// kernel: discriminator_forward.7
$region0: #{discriminator_forward.7}
  #allocation0 [shape = 'u32[]', space=smem, size = 0x4, offset = 0x4, fixed_abs, tag = 'smem constant byte address 0x4 - core index']
  #allocation1 [shape = 'u32[144,128]{1,0:T(1,128)}', space=vmem, size = 0x12000, scoped, tag = 'internal scratch']
  %s0 = inlined_call_operand.vmem [shape: bf16[2,1,16,512], index: 0, kind: input, shape index: {}]
  %s1 = inlined_call_operand.vmem [shape: bf16[2,2,512,128], index: 1, kind: input, shape index: {}]
  %s2 = inlined_call_operand.vmem [shape: f32[1,128], index: 2, kind: input, shape index: {}]
  %s3 = inlined_call_operand.vmem [shape: bf16[2,8,128], index: 3, kind: output, shape index: {}]
  %s4 = sld [smem:[#allocation0]]
  $region45: #{discriminator_forward.7} parent=0
    _
  %s6 = ssub.s32 1, %s4
  %s7 = scalar_select 0, %s6, %s4
  loop: start=0, step=1, limit=4
  $region2: #{discriminator_forward.7} parent=0 // loop_pre_header
    _
  $region3: #{discriminator_forward.7} parent=0 // loop_header
    %s9 = sphi 0, %s13
    %p10 = scmp.ge.s32.totalorder %s9, 4
    %s16 = sphi 0, %s35
    %s17 = sphi 0, %s31
    %s18 = sphi 0, %s27
    %s19 = sphi 0, %s16
    %s20 = sphi 0, %s17
    %s21 = sphi 0, %s18
    %s22 = sphi 0, %s19
    %s23 = sphi 0, %s20
    %s24 = sphi 0, %s21
    %s40 = sphi 0, %s42
    %s43 = sphi 0, %s40
    %s44 = sphi 0, %s43
    %s60 = sphi 0, %s44
    %s66 = sphi 0, %s68
    %s69 = sphi 0, %s66
    %s70 = sphi 0, %s69
    %s86 = sphi 0, %s70
    %s92 = sphi 0, %s94
    %s95 = sphi 0, %s92
    %s96 = sphi 0, %s95
    %s112 = sphi 0, %s96
    %s122 = sphi 0, %s124
    %s125 = sphi 0, %s122
    %s126 = sphi 0, %s125
    %s142 = sphi 0, %s126
  $region4: #{discriminator_forward.7} parent=0 // loop_header_branch
    %12 = sbr.rel (%p10) target = $region8
  $region5: #{discriminator_forward.7} parent=0 // loop_body
    %s14 = ssub.s32 %s9, 1
    %s15 = ssub.s32 %s9, 2
    %s25 = sadd.s32 1, %s18
    %p26 = scmp.ge.s32.totalorder %s25, 1
    %s27 = scalar_select %p26, 0, %s25
    %s28 = sadd.s32 1, %s17
    %s29 = scalar_select %p26, %s28, %s17
    %p30 = scmp.ge.s32.totalorder %s29, 1
    %s31 = scalar_select %p30, 0, %s29
    %s32 = sadd.s32 1, %s16
    %s33 = scalar_select %p30, %s32, %s16
    %p34 = scmp.ge.s32.totalorder %s33, 2
    %s35 = scalar_select %p34, 0, %s33
    %s36 = ssub.s32 %s16, %s35
    %s37 = ssub.s32 %s17, %s31
    %s38 = sor.u32 %s36, %s37
    %p39 = scmp.eq.s32.totalorder %s38, 0
    %s41 = sadd.s32 %s40, 1
    %s42 = scalar_select %p39, %s40, %s41
    %p45 = pneg %p39
    %p46 = scmp.eq.s32.totalorder %s9, 1
    %p47 = por %p45, %p46
    %p48 = scmp.ne.s32.totalorder %s40, %s43
    %p49 = scmp.eq.s32.totalorder %s9, 0
    %p50 = por %p48, %p49
    %p51 = scmp.ne.s32.totalorder %s40, %s43
    %p52 = scmp.eq.s32.totalorder %s14, 1
    %p53 = por %p51, %p52
    %p54 = scmp.ne.s32.totalorder %s43, %s44
    %p55 = scmp.eq.s32.totalorder %s14, 0
    %p56 = por %p54, %p55
    %p57 = scmp.ne.s32.totalorder %s43, %s44
    %p58 = scmp.eq.s32.totalorder %s15, 1
    %p59 = por %p57, %p58
    %p61 = scmp.ne.s32.totalorder %s44, %s60
    %p62 = scmp.eq.s32.totalorder %s15, 0
    %p63 = por %p61, %p62
    %s64 = ssub.s32 %s18, %s27
    %p65 = scmp.eq.s32.totalorder %s64, 0
    %s67 = sadd.s32 %s66, 1
    %s68 = scalar_select %p65, %s66, %s67
    %p71 = pneg %p65
    %p72 = scmp.eq.s32.totalorder %s9, 1
    %p73 = por %p71, %p72
    %p74 = scmp.ne.s32.totalorder %s66, %s69
    %p75 = scmp.eq.s32.totalorder %s9, 0
    %p76 = por %p74, %p75
    %p77 = scmp.ne.s32.totalorder %s66, %s69
    %p78 = scmp.eq.s32.totalorder %s14, 1
    %p79 = por %p77, %p78
    %p80 = scmp.ne.s32.totalorder %s69, %s70
    %p81 = scmp.eq.s32.totalorder %s14, 0
    %p82 = por %p80, %p81
    %p83 = scmp.ne.s32.totalorder %s69, %s70
    %p84 = scmp.eq.s32.totalorder %s15, 1
    %p85 = por %p83, %p84
    %p87 = scmp.ne.s32.totalorder %s70, %s86
    %p88 = scmp.eq.s32.totalorder %s15, 0
    %p89 = por %p87, %p88
    %s90 = ssub.s32 %s18, %s27
    %p91 = scmp.eq.s32.totalorder %s90, 0
    %s93 = sadd.s32 %s92, 1
    %s94 = scalar_select %p91, %s92, %s93
    %p97 = pneg %p91
    %p98 = scmp.eq.s32.totalorder %s9, 1
    %p99 = por %p97, %p98
    %p100 = scmp.ne.s32.totalorder %s92, %s95
    %p101 = scmp.eq.s32.totalorder %s9, 0
    %p102 = por %p100, %p101
    %p103 = scmp.ne.s32.totalorder %s92, %s95
    %p104 = scmp.eq.s32.totalorder %s14, 1
    %p105 = por %p103, %p104
    %p106 = scmp.ne.s32.totalorder %s95, %s96
    %p107 = scmp.eq.s32.totalorder %s14, 0
    %p108 = por %p106, %p107
    %p109 = scmp.ne.s32.totalorder %s95, %s96
    %p110 = scmp.eq.s32.totalorder %s15, 1
    %p111 = por %p109, %p110
    %p113 = scmp.ne.s32.totalorder %s96, %s112
    %p114 = scmp.eq.s32.totalorder %s15, 0
    %p115 = por %p113, %p114
    %s116 = ssub.s32 %s16, %s35
    %s117 = ssub.s32 %s17, %s31
    %s118 = sor.u32 %s116, %s117
    %s119 = ssub.s32 %s18, %s27
    %s120 = sor.u32 %s118, %s119
    %p121 = scmp.eq.s32.totalorder %s120, 0
    %s123 = sadd.s32 %s122, 1
    %s124 = scalar_select %p121, %s122, %s123
    %p127 = pneg %p121
    %p128 = scmp.eq.s32.totalorder %s9, 1
    %p129 = por %p127, %p128
    %p130 = scmp.ne.s32.totalorder %s122, %s125
    %p131 = scmp.eq.s32.totalorder %s9, 0
    %p132 = por %p130, %p131
    %p133 = scmp.ne.s32.totalorder %s122, %s125
    %p134 = scmp.eq.s32.totalorder %s14, 1
    %p135 = por %p133, %p134
    %p136 = scmp.ne.s32.totalorder %s125, %s126
    %p137 = scmp.eq.s32.totalorder %s14, 0
    %p138 = por %p136, %p137
    %p139 = scmp.ne.s32.totalorder %s125, %s126
    %p140 = scmp.eq.s32.totalorder %s15, 1
    %p141 = por %p139, %p140
    %p143 = scmp.ne.s32.totalorder %s126, %s142
    %p144 = scmp.eq.s32.totalorder %s15, 0
    %p145 = por %p143, %p144
    %p146 = scmp.le.s32.totalorder 1, %s9
    %p147 = scmp.lt.s32.totalorder %s9, 3
    %p148 = pnand %p146, %p147
    %p149 = pneg %p148
    // Predicated region
    $region9: #{discriminator_forward.7} parent=5 // pred_check
      _
    $region10: #{discriminator_forward.7} parent=5 // pred_check_branch
      %151 = sbr.rel (%p148) target = $region12
    $region11: #{discriminator_forward.7} parent=5 // pred_region
      %s152 = ssub.s32 %s9, 1
      // Predicated region
      $region13: #{discriminator_forward.7} parent=11 // pred_check
        %p153 = pneg %p82
      $region14: #{discriminator_forward.7} parent=11 // pred_check_branch
        %155 = sbr.rel (%p153) target = $region16
      $region15: #{discriminator_forward.7} parent=11 // pred_region
        %p156 = scmp.lt.s32.totalorder %s21, 0
        %s157 = scalar_select %p156, %s21, 0
        %s158 = smul.addr %s157, 4
        %s159 = scalar_lea.vmem %s1, %s158
      $region16: #{discriminator_forward.7} parent=11 // pred_fallthru
        _
      // Predicated region
      $region17: #{discriminator_forward.7} parent=11 // pred_check
        %p160 = pneg %p108
      $region18: #{discriminator_forward.7} parent=11 // pred_check_branch
        %162 = sbr.rel (%p160) target = $region20
      $region19: #{discriminator_forward.7} parent=11 // pred_region
        %p163 = scmp.lt.s32.totalorder %s21, 0
        %s164 = scalar_select %p163, %s21, 0
        %s165 = scalar_lea.vmem %s2, %s164
      $region20: #{discriminator_forward.7} parent=11 // pred_fallthru
        _
    $region12: #{discriminator_forward.7} parent=5 // pred_fallthru
      _
    %p166 = scmp.lt.s32.totalorder %s9, 2
    // Predicated region
    $region21: #{discriminator_forward.7} parent=5 // pred_check
      %p167 = pneg %p166
    $region22: #{discriminator_forward.7} parent=5 // pred_check_branch
      %169 = sbr.rel (%p167) target = $region24
    $region23: #{discriminator_forward.7} parent=5 // pred_region
      // Predicated region
      $region25: #{discriminator_forward.7} parent=23 // pred_check
        %p170 = pneg %p50
      $region26: #{discriminator_forward.7} parent=23 // pred_check_branch
        %172 = sbr.rel (%p170) target = $region28
      $region27: #{discriminator_forward.7} parent=23 // pred_region
        %p173 = scmp.lt.s32.totalorder %s16, 1
        %s174 = scalar_select %p173, %s16, 1
        %p175 = scmp.lt.s32.totalorder %s17, 0
        %s176 = scalar_select %p175, %s17, 0
        %s177 = smul.addr %s176, 8
        %s178 = smul.addr %s174, 8
        %s179 = sadd.s32 %s177, %s178
        %s180 = smul.addr %s179, 4
        %s181 = scalar_lea.vmem %s0, %s180
      $region28: #{discriminator_forward.7} parent=23 // pred_fallthru
        _
    $region24: #{discriminator_forward.7} parent=5 // pred_fallthru
      _
    %p182 = scmp.le.s32.totalorder 1, %s9
    %p183 = scmp.lt.s32.totalorder %s9, 3
    %p184 = pnand %p182, %p183
    %p185 = pneg %p184
    // Predicated region
    $region29: #{discriminator_forward.7} parent=5 // pred_check
      _
    $region30: #{discriminator_forward.7} parent=5 // pred_check_branch
      %187 = sbr.rel (%p184) target = $region32
    $region31: #{discriminator_forward.7} parent=5 // pred_region
      %s188 = ssub.s32 %s9, 1
      %p189 = scmp.lt.s32.totalorder %s19, 1
      %s190 = scalar_select %p189, %s19, 1
      %p191 = scmp.lt.s32.totalorder %s20, 0
      %s192 = scalar_select %p191, %s20, 0
      %s193 = smul.addr %s192, 8
      %s194 = smul.addr %s190, 8
      %s195 = sadd.s32 %s193, %s194
      %s196 = smul.addr %s195, 4
      %s197 = scalar_lea.vmem %s0, %s196
      %p198 = pneg %p56
      %p199 = pneg %p53
      %p200 = scmp.lt.s32.totalorder %s21, 0
      %s201 = scalar_select %p200, %s21, 0
      %s202 = smul.addr %s201, 4
      %s203 = scalar_lea.vmem %s1, %s202
      %p204 = pneg %p82
      %p205 = pneg %p79
      %p206 = scmp.lt.s32.totalorder %s21, 0
      %s207 = scalar_select %p206, %s21, 0
      %s208 = scalar_lea.vmem %s2, %s207
      %p209 = pneg %p108
      %p210 = pneg %p105
      %p211 = pneg %p138
      %p212 = pneg %p135
      %p213 = scmp.lt.s32.totalorder %s19, 1
      %s214 = scalar_select %p213, %s19, 1
      %p215 = scmp.lt.s32.totalorder %s20, 0
      %s216 = scalar_select %p215, %s20, 0
      %p217 = scmp.lt.s32.totalorder %s21, 0
      %s218 = scalar_select %p217, %s21, 0
      %s219 = sadd.s32 %s218, %s216
      %s220 = sadd.s32 %s219, %s214
      %s221 = smul.addr %s220, 4
      %s222 = scalar_lea.vmem %s3, %s221
      %p223 = scmp.lt.s32.totalorder %s19, 1
      %s224 = scalar_select %p223, %s19, 1
      %p225 = scmp.lt.s32.totalorder %s20, 0
      %s226 = scalar_select %p225, %s20, 0
      %s227 = smul.addr %s226, 8
      %s228 = smul.addr %s224, 8
      %s229 = sadd.s32 %s227, %s228
      %s230 = smul.addr %s229, 4
      %s231 = scalar_lea.vmem %s0, %s230
      %p232 = scmp.lt.s32.totalorder %s21, 0
      %s233 = scalar_select %p232, %s21, 0
      %s234 = smul.addr %s233, 4
      %s235 = scalar_lea.vmem %s1, %s234
      %p236 = scmp.lt.s32.totalorder %s21, 0
      %s237 = scalar_select %p236, %s21, 0
      %s238 = scalar_lea.vmem %s2, %s237
      %p239 = scmp.lt.s32.totalorder %s19, 1
      %s240 = scalar_select %p239, %s19, 1
      %p241 = scmp.lt.s32.totalorder %s20, 0
      %s242 = scalar_select %p241, %s20, 0
      %p243 = scmp.lt.s32.totalorder %s21, 0
      %s244 = scalar_select %p243, %s21, 0
      %s245 = sadd.s32 %s244, %s242
      %s246 = sadd.s32 %s245, %s240
      %s247 = smul.addr %s246, 4
      %s248 = scalar_lea.vmem %s3, %s247
      %v250 = vld [vmem:[%s231] sm:$0xff]
      %v251 = vld [vmem:[%s231 + $0x8] sm:$0xff]
      %v252 = vld [vmem:[%s235] sm:$0xf]
      %v253 = vld [vmem:[%s235 + $0x4] sm:$0xf]
      %v254 = vld [vmem:[%s235 + $0x8] sm:$0xf]
      %v255 = vld [vmem:[%s235 + $0xc] sm:$0xf]
      %v256 = vld [vmem:[%s235 + $0x10] sm:$0xf]
      %v257 = vld [vmem:[%s235 + $0x14] sm:$0xf]
      %v258 = vld [vmem:[%s235 + $0x18] sm:$0xf]
      %v259 = vld [vmem:[%s235 + $0x1c] sm:$0xf]
      %v260 = vld [vmem:[%s235 + $0x20] sm:$0xf]
      %v261 = vld [vmem:[%s235 + $0x24] sm:$0xf]
      %v262 = vld [vmem:[%s235 + $0x28] sm:$0xf]
      %v263 = vld [vmem:[%s235 + $0x2c] sm:$0xf]
      %v264 = vld [vmem:[%s235 + $0x30] sm:$0xf]
      %v265 = vld [vmem:[%s235 + $0x34] sm:$0xf]
      %v266 = vld [vmem:[%s235 + $0x38] sm:$0xf]
      %v267 = vld [vmem:[%s235 + $0x3c] sm:$0xf]
      %v268 = vld [vmem:[%s235 + $0x40] sm:$0xf]
      %v269 = vld [vmem:[%s235 + $0x44] sm:$0xf]
      %v270 = vld [vmem:[%s235 + $0x48] sm:$0xf]
      %v271 = vld [vmem:[%s235 + $0x4c] sm:$0xf]
      %v272 = vld [vmem:[%s235 + $0x50] sm:$0xf]
      %v273 = vld [vmem:[%s235 + $0x54] sm:$0xf]
      %v274 = vld [vmem:[%s235 + $0x58] sm:$0xf]
      %v275 = vld [vmem:[%s235 + $0x5c] sm:$0xf]
      %v276 = vld [vmem:[%s235 + $0x60] sm:$0xf]
      %v277 = vld [vmem:[%s235 + $0x64] sm:$0xf]
      %v278 = vld [vmem:[%s235 + $0x68] sm:$0xf]
      %v279 = vld [vmem:[%s235 + $0x6c] sm:$0xf]
      %v280 = vld [vmem:[%s235 + $0x70] sm:$0xf]
      %v281 = vld [vmem:[%s235 + $0x74] sm:$0xf]
      %v282 = vld [vmem:[%s235 + $0x78] sm:$0xf]
      %v283 = vld [vmem:[%s235 + $0x7c] sm:$0xf]
      %v284 = vld [vmem:[%s235 + $0x80] sm:$0xf]
      %v285 = vld [vmem:[%s235 + $0x84] sm:$0xf]
      %v286 = vld [vmem:[%s235 + $0x88] sm:$0xf]
      %v287 = vld [vmem:[%s235 + $0x8c] sm:$0xf]
      %v288 = vld [vmem:[%s235 + $0x90] sm:$0xf]
      %v289 = vld [vmem:[%s235 + $0x94] sm:$0xf]
      %v290 = vld [vmem:[%s235 + $0x98] sm:$0xf]
      %v291 = vld [vmem:[%s235 + $0x9c] sm:$0xf]
      %v292 = vld [vmem:[%s235 + $0xa0] sm:$0xf]
      %v293 = vld [vmem:[%s235 + $0xa4] sm:$0xf]
      %v294 = vld [vmem:[%s235 + $0xa8] sm:$0xf]
      %v295 = vld [vmem:[%s235 + $0xac] sm:$0xf]
      %v296 = vld [vmem:[%s235 + $0xb0] sm:$0xf]
      %v297 = vld [vmem:[%s235 + $0xb4] sm:$0xf]
      %v298 = vld [vmem:[%s235 + $0xb8] sm:$0xf]
      %v299 = vld [vmem:[%s235 + $0xbc] sm:$0xf]
      %v300 = vld [vmem:[%s235 + $0xc0] sm:$0xf]
      %v301 = vld [vmem:[%s235 + $0xc4] sm:$0xf]
      %v302 = vld [vmem:[%s235 + $0xc8] sm:$0xf]
      %v303 = vld [vmem:[%s235 + $0xcc] sm:$0xf]
      %v304 = vld [vmem:[%s235 + $0xd0] sm:$0xf]
      %v305 = vld [vmem:[%s235 + $0xd4] sm:$0xf]
      %v306 = vld [vmem:[%s235 + $0xd8] sm:$0xf]
      %v307 = vld [vmem:[%s235 + $0xdc] sm:$0xf]
      %v308 = vld [vmem:[%s235 + $0xe0] sm:$0xf]
      %v309 = vld [vmem:[%s235 + $0xe4] sm:$0xf]
      %v310 = vld [vmem:[%s235 + $0xe8] sm:$0xf]
      %v311 = vld [vmem:[%s235 + $0xec] sm:$0xf]
      %v312 = vld [vmem:[%s235 + $0xf0] sm:$0xf]
      %v313 = vld [vmem:[%s235 + $0xf4] sm:$0xf]
      %v314 = vld [vmem:[%s235 + $0xf8] sm:$0xf]
      %v315 = vld [vmem:[%s235 + $0xfc] sm:$0xf]
      %v316 = vld [vmem:[%s231] sm:$0xff]
      %v317 = vld [vmem:[%s231 + $0x8] sm:$0xff]
      %v318 = vld [vmem:[%s231 + $0x10] sm:$0x11]
      %v319 = vld [vmem:[%s231 + $0x18] sm:$0x11]
      %s320 = scalar_lea.vmem %s235, 256
      %v321 = vld [vmem:[%s320] sm:$0xf]
      %v322 = vld [vmem:[%s320 + $0x4] sm:$0xf]
      %v323 = vld [vmem:[%s320 + $0x8] sm:$0xf]
      %v324 = vld [vmem:[%s320 + $0xc] sm:$0xf]
      %v325 = vld [vmem:[%s320 + $0x10] sm:$0xf]
      %v326 = vld [vmem:[%s320 + $0x14] sm:$0xf]
      %v327 = vld [vmem:[%s320 + $0x18] sm:$0xf]
      %v328 = vld [vmem:[%s320 + $0x1c] sm:$0xf]
      %v329 = vld [vmem:[%s320 + $0x20] sm:$0xf]
      %v330 = vld [vmem:[%s320 + $0x24] sm:$0xf]
      %v331 = vld [vmem:[%s320 + $0x28] sm:$0xf]
      %v332 = vld [vmem:[%s320 + $0x2c] sm:$0xf]
      %v333 = vld [vmem:[%s320 + $0x30] sm:$0xf]
      %v334 = vld [vmem:[%s320 + $0x34] sm:$0xf]
      %v335 = vld [vmem:[%s320 + $0x38] sm:$0xf]
      %v336 = vld [vmem:[%s320 + $0x3c] sm:$0xf]
      %v337 = vld [vmem:[%s320 + $0x40] sm:$0xf]
      %v338 = vld [vmem:[%s320 + $0x44] sm:$0xf]
      %v339 = vld [vmem:[%s320 + $0x48] sm:$0xf]
      %v340 = vld [vmem:[%s320 + $0x4c] sm:$0xf]
      %v341 = vld [vmem:[%s320 + $0x50] sm:$0xf]
      %v342 = vld [vmem:[%s320 + $0x54] sm:$0xf]
      %v343 = vld [vmem:[%s320 + $0x58] sm:$0xf]
      %v344 = vld [vmem:[%s320 + $0x5c] sm:$0xf]
      %v345 = vld [vmem:[%s320 + $0x60] sm:$0xf]
      %v346 = vld [vmem:[%s320 + $0x64] sm:$0xf]
      %v347 = vld [vmem:[%s320 + $0x68] sm:$0xf]
      %v348 = vld [vmem:[%s320 + $0x6c] sm:$0xf]
      %v349 = vld [vmem:[%s320 + $0x70] sm:$0xf]
      %v350 = vld [vmem:[%s320 + $0x74] sm:$0xf]
      %v351 = vld [vmem:[%s320 + $0x78] sm:$0xf]
      %v352 = vld [vmem:[%s320 + $0x7c] sm:$0xf]
      %v353 = vld [vmem:[%s320 + $0x80] sm:$0xf]
      %v354 = vld [vmem:[%s320 + $0x84] sm:$0xf]
      %v355 = vld [vmem:[%s320 + $0x88] sm:$0xf]
      %v356 = vld [vmem:[%s320 + $0x8c] sm:$0xf]
      %v357 = vld [vmem:[%s320 + $0x90] sm:$0xf]
      %v358 = vld [vmem:[%s320 + $0x94] sm:$0xf]
      %v359 = vld [vmem:[%s320 + $0x98] sm:$0xf]
      %v360 = vld [vmem:[%s320 + $0x9c] sm:$0xf]
      %v361 = vld [vmem:[%s320 + $0xa0] sm:$0xf]
      %v362 = vld [vmem:[%s320 + $0xa4] sm:$0xf]
      %v363 = vld [vmem:[%s320 + $0xa8] sm:$0xf]
      %v364 = vld [vmem:[%s320 + $0xac] sm:$0xf]
      %v365 = vld [vmem:[%s320 + $0xb0] sm:$0xf]
      %v366 = vld [vmem:[%s320 + $0xb4] sm:$0xf]
      %v367 = vld [vmem:[%s320 + $0xb8] sm:$0xf]
      %v368 = vld [vmem:[%s320 + $0xbc] sm:$0xf]
      %v369 = vld [vmem:[%s320 + $0xc0] sm:$0xf]
      %v370 = vld [vmem:[%s320 + $0xc4] sm:$0xf]
      %v371 = vld [vmem:[%s320 + $0xc8] sm:$0xf]
      %v372 = vld [vmem:[%s320 + $0xcc] sm:$0xf]
      %v373 = vld [vmem:[%s320 + $0xd0] sm:$0xf]
      %v374 = vld [vmem:[%s320 + $0xd4] sm:$0xf]
      %v375 = vld [vmem:[%s320 + $0xd8] sm:$0xf]
      %v376 = vld [vmem:[%s320 + $0xdc] sm:$0xf]
      %v377 = vld [vmem:[%s320 + $0xe0] sm:$0xf]
      %v378 = vld [vmem:[%s320 + $0xe4] sm:$0xf]
      %v379 = vld [vmem:[%s320 + $0xe8] sm:$0xf]
      %v380 = vld [vmem:[%s320 + $0xec] sm:$0xf]
      %v381 = vld [vmem:[%s320 + $0xf0] sm:$0xf]
      %v382 = vld [vmem:[%s320 + $0xf4] sm:$0xf]
      %v383 = vld [vmem:[%s320 + $0xf8] sm:$0xf]
      %v384 = vld [vmem:[%s320 + $0xfc] sm:$0xf]
      %v389 = vunpack.c.l.b16 %v316
      %v390 = vunpack.c.h.b16 %v316
      %v391 = vunpack.c.l.b16 %v317
      %v392 = vunpack.c.h.b16 %v317
      %v393 = vunpack.c.l.b16 %v318
      %v394 = vunpack.c.h.b16 %v318
      %v395 = vunpack.c.l.b16 %v319
      %v396 = vunpack.c.h.b16 %v319
      %v397 = vpack.c.b16 %v393, %v389
      %v398 = vpack.c.b16 %v394, %v390
      %v399 = vpack.c.b16 %v395, %v391
      %v400 = vpack.c.b16 %v396, %v392
      %v402 = vshrl.u32 %v397, 16
      %v404 = vshll.u32 %v397, 16
      %v406 = vrot.slane %v404, 1
      %v407 = vor.u32 %v402, %v406
      %v409 = vshrl.u32 %v398, 16
      %v411 = vshll.u32 %v398, 16
      %v413 = vrot.slane %v411, 1
      %v414 = vor.u32 %v409, %v413
      %v416 = vshrl.u32 %v399, 16
      %v418 = vshll.u32 %v399, 16
      %v420 = vrot.slane %v418, 1
      %v421 = vor.u32 %v416, %v420
      %v423 = vshrl.u32 %v400, 16
      %v425 = vshll.u32 %v400, 16
      %v427 = vrot.slane %v425, 1
      %v428 = vor.u32 %v423, %v427
      %v497 = vunpack.c.l.b16 %v321
      %v498 = vunpack.c.l.b16 %v322
      %v499 = vunpack.c.l.b16 %v323
      %v500 = vunpack.c.l.b16 %v324
      %v501 = vunpack.c.l.b16 %v325
      %v502 = vunpack.c.l.b16 %v326
      %v503 = vunpack.c.l.b16 %v327
      %v504 = vunpack.c.l.b16 %v328
      %v505 = vunpack.c.l.b16 %v329
      %v506 = vunpack.c.l.b16 %v330
      %v507 = vunpack.c.l.b16 %v331
      %v508 = vunpack.c.l.b16 %v332
      %v509 = vunpack.c.l.b16 %v333
      %v510 = vunpack.c.l.b16 %v334
      %v511 = vunpack.c.l.b16 %v335
      %v512 = vunpack.c.l.b16 %v336
      %v513 = vunpack.c.l.b16 %v337
      %v514 = vunpack.c.l.b16 %v338
      %v515 = vunpack.c.l.b16 %v339
      %v516 = vunpack.c.l.b16 %v340
      %v517 = vunpack.c.l.b16 %v341
      %v518 = vunpack.c.l.b16 %v342
      %v519 = vunpack.c.l.b16 %v343
      %v520 = vunpack.c.l.b16 %v344
      %v521 = vunpack.c.l.b16 %v345
      %v522 = vunpack.c.l.b16 %v346
      %v523 = vunpack.c.l.b16 %v347
      %v524 = vunpack.c.l.b16 %v348
      %v525 = vunpack.c.l.b16 %v349
      %v526 = vunpack.c.l.b16 %v350
      %v527 = vunpack.c.l.b16 %v351
      %v528 = vunpack.c.l.b16 %v352
      %v529 = vunpack.c.l.b16 %v353
      %v530 = vunpack.c.l.b16 %v354
      %v531 = vunpack.c.l.b16 %v355
      %v532 = vunpack.c.l.b16 %v356
      %v533 = vunpack.c.l.b16 %v357
      %v534 = vunpack.c.l.b16 %v358
      %v535 = vunpack.c.l.b16 %v359
      %v536 = vunpack.c.l.b16 %v360
      %v537 = vunpack.c.l.b16 %v361
      %v538 = vunpack.c.l.b16 %v362
      %v539 = vunpack.c.l.b16 %v363
      %v540 = vunpack.c.l.b16 %v364
      %v541 = vunpack.c.l.b16 %v365
      %v542 = vunpack.c.l.b16 %v366
      %v543 = vunpack.c.l.b16 %v367
      %v544 = vunpack.c.l.b16 %v368
      %v545 = vunpack.c.l.b16 %v369
      %v546 = vunpack.c.l.b16 %v370
      %v547 = vunpack.c.l.b16 %v371
      %v548 = vunpack.c.l.b16 %v372
      %v549 = vunpack.c.l.b16 %v373
      %v550 = vunpack.c.l.b16 %v374
      %v551 = vunpack.c.l.b16 %v375
      %v552 = vunpack.c.l.b16 %v376
      %v553 = vunpack.c.l.b16 %v377
      %v554 = vunpack.c.l.b16 %v378
      %v555 = vunpack.c.l.b16 %v379
      %v556 = vunpack.c.l.b16 %v380
      %v557 = vunpack.c.l.b16 %v381
      %v558 = vunpack.c.l.b16 %v382
      %v559 = vunpack.c.l.b16 %v383
      %v560 = vunpack.c.l.b16 %v384
      %v561 = vpack.c.b16 %v498, %v497
      %v562 = vpack.c.b16 %v500, %v499
      %v563 = vpack.c.b16 %v502, %v501
      %v564 = vpack.c.b16 %v504, %v503
      %v565 = vpack.c.b16 %v506, %v505
      %v566 = vpack.c.b16 %v508, %v507
      %v567 = vpack.c.b16 %v510, %v509
      %v568 = vpack.c.b16 %v512, %v511
      %v569 = vpack.c.b16 %v514, %v513
      %v570 = vpack.c.b16 %v516, %v515
      %v571 = vpack.c.b16 %v518, %v517
      %v572 = vpack.c.b16 %v520, %v519
      %v573 = vpack.c.b16 %v522, %v521
      %v574 = vpack.c.b16 %v524, %v523
      %v575 = vpack.c.b16 %v526, %v525
      %v576 = vpack.c.b16 %v528, %v527
      %v577 = vpack.c.b16 %v530, %v529
      %v578 = vpack.c.b16 %v532, %v531
      %v579 = vpack.c.b16 %v534, %v533
      %v580 = vpack.c.b16 %v536, %v535
      %v581 = vpack.c.b16 %v538, %v537
      %v582 = vpack.c.b16 %v540, %v539
      %v583 = vpack.c.b16 %v542, %v541
      %v584 = vpack.c.b16 %v544, %v543
      %v585 = vpack.c.b16 %v546, %v545
      %v586 = vpack.c.b16 %v548, %v547
      %v587 = vpack.c.b16 %v550, %v549
      %v588 = vpack.c.b16 %v552, %v551
      %v589 = vpack.c.b16 %v554, %v553
      %v590 = vpack.c.b16 %v556, %v555
      %v591 = vpack.c.b16 %v558, %v557
      %v592 = vpack.c.b16 %v560, %v559
      %625 = vmatprep.subr.bf16.mxu0 0
      %626 = vmatpush1.bf16.msra.mxu0 %v568
      %627 = vmatprep.subr.bf16.mxu0 0
      %628 = vmatpush1.bf16.msra.mxu0 %v567
      %629 = vmatprep.subr.bf16.mxu0 0
      %630 = vmatpush1.bf16.msra.mxu0 %v566
      %631 = vmatprep.subr.bf16.mxu0 0
      %632 = vmatpush1.bf16.msra.mxu0 %v565
      %633 = vmatprep.subr.bf16.mxu0 0
      %634 = vmatpush1.bf16.msra.mxu0 %v564
      %635 = vmatprep.subr.bf16.mxu0 0
      %636 = vmatpush1.bf16.msra.mxu0 %v563
      %637 = vmatprep.subr.bf16.mxu0 0
      %638 = vmatpush1.bf16.msra.mxu0 %v562
      %639 = vmatprep.subr.bf16.mxu0 0
      %640 = vmatpush1.bf16.msra.mxu0 %v561
      %641 = vmatprep.subr.bf16.mxu0 0
      %642 = vmatpush2.bf16.msra.mxu0 %v576
      %643 = vmatprep.subr.bf16.mxu0 0
      %644 = vmatpush2.bf16.msra.mxu0 %v575
      %645 = vmatprep.subr.bf16.mxu0 0
      %646 = vmatpush2.bf16.msra.mxu0 %v574
      %647 = vmatprep.subr.bf16.mxu0 0
      %648 = vmatpush2.bf16.msra.mxu0 %v573
      %649 = vmatprep.subr.bf16.mxu0 0
      %650 = vmatpush2.bf16.msra.mxu0 %v572
      %651 = vmatprep.subr.bf16.mxu0 0
      %652 = vmatpush2.bf16.msra.mxu0 %v571
      %653 = vmatprep.subr.bf16.mxu0 0
      %654 = vmatpush2.bf16.msra.mxu0 %v570
      %655 = vmatprep.subr.bf16.mxu0 0
      %656 = vmatpush2.bf16.msra.mxu0 %v569
      %657 = vmatprep.mubr.bf16.mxu0 %v414
      %658 = vmatmul.mubr.bf16.gmra.mxu0 %v407
      %v659 = vpop.f32.mrf.mxu0
      %v660 = vadd.f32 0.0, %v659
      %v661 = vpop.f32.mrf.mxu0
      %v662 = vpop.f32.mrf.mxu0
      %v663 = vpop.f32.mrf.mxu0
      %664 = vdwg.mxu0
      %665 = vmatprep.subr.bf16.mxu0 0
      %666 = vmatpush1.bf16.msra.mxu0 %v584
      %667 = vmatprep.subr.bf16.mxu0 0
      %668 = vmatpush1.bf16.msra.mxu0 %v583
      %669 = vmatprep.subr.bf16.mxu0 0
      %670 = vmatpush1.bf16.msra.mxu0 %v582
      %671 = vmatprep.subr.bf16.mxu0 0
      %672 = vmatpush1.bf16.msra.mxu0 %v581
      %673 = vmatprep.subr.bf16.mxu0 0
      %674 = vmatpush1.bf16.msra.mxu0 %v580
      %675 = vmatprep.subr.bf16.mxu0 0
      %676 = vmatpush1.bf16.msra.mxu0 %v579
      %677 = vmatprep.subr.bf16.mxu0 0
      %678 = vmatpush1.bf16.msra.mxu0 %v578
      %679 = vmatprep.subr.bf16.mxu0 0
      %680 = vmatpush1.bf16.msra.mxu0 %v577
      %681 = vmatprep.subr.bf16.mxu0 0
      %682 = vmatpush2.bf16.msra.mxu0 %v592
      %683 = vmatprep.subr.bf16.mxu0 0
      %684 = vmatpush2.bf16.msra.mxu0 %v591
      %685 = vmatprep.subr.bf16.mxu0 0
      %686 = vmatpush2.bf16.msra.mxu0 %v590
      %687 = vmatprep.subr.bf16.mxu0 0
      %688 = vmatpush2.bf16.msra.mxu0 %v589
      %689 = vmatprep.subr.bf16.mxu0 0
      %690 = vmatpush2.bf16.msra.mxu0 %v588
      %691 = vmatprep.subr.bf16.mxu0 0
      %692 = vmatpush2.bf16.msra.mxu0 %v587
      %693 = vmatprep.subr.bf16.mxu0 0
      %694 = vmatpush2.bf16.msra.mxu0 %v586
      %695 = vmatprep.subr.bf16.mxu0 0
      %696 = vmatpush2.bf16.msra.mxu0 %v585
      %697 = vmatprep.mubr.bf16.mxu0 %v428
      %698 = vmatmul.mubr.bf16.gmra.mxu0 %v421
      %v699 = vpop.f32.mrf.mxu0
      %v700 = vadd.f32 %v660, %v699
      %v701 = vpop.f32.mrf.mxu0
      %v702 = vpop.f32.mrf.mxu0
      %v703 = vpop.f32.mrf.mxu0
      %704 = vdwg.mxu0
      %v707 = vunpack.c.l.b16 %v250
      %v708 = vunpack.c.h.b16 %v250
      %v709 = vunpack.c.l.b16 %v251
      %v710 = vunpack.c.h.b16 %v251
      %v711 = vpack.c.b16 %v707, %v707
      %v712 = vpack.c.b16 %v708, %v708
      %v713 = vpack.c.b16 %v709, %v709
      %v714 = vpack.c.b16 %v710, %v710
      %v783 = vunpack.c.l.b16 %v252
      %v784 = vunpack.c.l.b16 %v253
      %v785 = vunpack.c.l.b16 %v254
      %v786 = vunpack.c.l.b16 %v255
      %v787 = vunpack.c.l.b16 %v256
      %v788 = vunpack.c.l.b16 %v257
      %v789 = vunpack.c.l.b16 %v258
      %v790 = vunpack.c.l.b16 %v259
      %v791 = vunpack.c.l.b16 %v260
      %v792 = vunpack.c.l.b16 %v261
      %v793 = vunpack.c.l.b16 %v262
      %v794 = vunpack.c.l.b16 %v263
      %v795 = vunpack.c.l.b16 %v264
      %v796 = vunpack.c.l.b16 %v265
      %v797 = vunpack.c.l.b16 %v266
      %v798 = vunpack.c.l.b16 %v267
      %v799 = vunpack.c.l.b16 %v268
      %v800 = vunpack.c.l.b16 %v269
      %v801 = vunpack.c.l.b16 %v270
      %v802 = vunpack.c.l.b16 %v271
      %v803 = vunpack.c.l.b16 %v272
      %v804 = vunpack.c.l.b16 %v273
      %v805 = vunpack.c.l.b16 %v274
      %v806 = vunpack.c.l.b16 %v275
      %v807 = vunpack.c.l.b16 %v276
      %v808 = vunpack.c.l.b16 %v277
      %v809 = vunpack.c.l.b16 %v278
      %v810 = vunpack.c.l.b16 %v279
      %v811 = vunpack.c.l.b16 %v280
      %v812 = vunpack.c.l.b16 %v281
      %v813 = vunpack.c.l.b16 %v282
      %v814 = vunpack.c.l.b16 %v283
      %v815 = vunpack.c.l.b16 %v284
      %v816 = vunpack.c.l.b16 %v285
      %v817 = vunpack.c.l.b16 %v286
      %v818 = vunpack.c.l.b16 %v287
      %v819 = vunpack.c.l.b16 %v288
      %v820 = vunpack.c.l.b16 %v289
      %v821 = vunpack.c.l.b16 %v290
      %v822 = vunpack.c.l.b16 %v291
      %v823 = vunpack.c.l.b16 %v292
      %v824 = vunpack.c.l.b16 %v293
      %v825 = vunpack.c.l.b16 %v294
      %v826 = vunpack.c.l.b16 %v295
      %v827 = vunpack.c.l.b16 %v296
      %v828 = vunpack.c.l.b16 %v297
      %v829 = vunpack.c.l.b16 %v298
      %v830 = vunpack.c.l.b16 %v299
      %v831 = vunpack.c.l.b16 %v300
      %v832 = vunpack.c.l.b16 %v301
      %v833 = vunpack.c.l.b16 %v302
      %v834 = vunpack.c.l.b16 %v303
      %v835 = vunpack.c.l.b16 %v304
      %v836 = vunpack.c.l.b16 %v305
      %v837 = vunpack.c.l.b16 %v306
      %v838 = vunpack.c.l.b16 %v307
      %v839 = vunpack.c.l.b16 %v308
      %v840 = vunpack.c.l.b16 %v309
      %v841 = vunpack.c.l.b16 %v310
      %v842 = vunpack.c.l.b16 %v311
      %v843 = vunpack.c.l.b16 %v312
      %v844 = vunpack.c.l.b16 %v313
      %v845 = vunpack.c.l.b16 %v314
      %v846 = vunpack.c.l.b16 %v315
      %v847 = vpack.c.b16 %v784, %v783
      %v848 = vpack.c.b16 %v786, %v785
      %v849 = vpack.c.b16 %v788, %v787
      %v850 = vpack.c.b16 %v790, %v789
      %v851 = vpack.c.b16 %v792, %v791
      %v852 = vpack.c.b16 %v794, %v793
      %v853 = vpack.c.b16 %v796, %v795
      %v854 = vpack.c.b16 %v798, %v797
      %v855 = vpack.c.b16 %v800, %v799
      %v856 = vpack.c.b16 %v802, %v801
      %v857 = vpack.c.b16 %v804, %v803
      %v858 = vpack.c.b16 %v806, %v805
      %v859 = vpack.c.b16 %v808, %v807
      %v860 = vpack.c.b16 %v810, %v809
      %v861 = vpack.c.b16 %v812, %v811
      %v862 = vpack.c.b16 %v814, %v813
      %v863 = vpack.c.b16 %v816, %v815
      %v864 = vpack.c.b16 %v818, %v817
      %v865 = vpack.c.b16 %v820, %v819
      %v866 = vpack.c.b16 %v822, %v821
      %v867 = vpack.c.b16 %v824, %v823
      %v868 = vpack.c.b16 %v826, %v825
      %v869 = vpack.c.b16 %v828, %v827
      %v870 = vpack.c.b16 %v830, %v829
      %v871 = vpack.c.b16 %v832, %v831
      %v872 = vpack.c.b16 %v834, %v833
      %v873 = vpack.c.b16 %v836, %v835
      %v874 = vpack.c.b16 %v838, %v837
      %v875 = vpack.c.b16 %v840, %v839
      %v876 = vpack.c.b16 %v842, %v841
      %v877 = vpack.c.b16 %v844, %v843
      %v878 = vpack.c.b16 %v846, %v845
      %911 = vmatprep.subr.bf16.mxu0 0
      %912 = vmatpush1.bf16.msra.mxu0 %v854
      %913 = vmatprep.subr.bf16.mxu0 0
      %914 = vmatpush1.bf16.msra.mxu0 %v853
      %915 = vmatprep.subr.bf16.mxu0 0
      %916 = vmatpush1.bf16.msra.mxu0 %v852
      %917 = vmatprep.subr.bf16.mxu0 0
      %918 = vmatpush1.bf16.msra.mxu0 %v851
      %919 = vmatprep.subr.bf16.mxu0 0
      %920 = vmatpush1.bf16.msra.mxu0 %v850
      %921 = vmatprep.subr.bf16.mxu0 0
      %922 = vmatpush1.bf16.msra.mxu0 %v849
      %923 = vmatprep.subr.bf16.mxu0 0
      %924 = vmatpush1.bf16.msra.mxu0 %v848
      %925 = vmatprep.subr.bf16.mxu0 0
      %926 = vmatpush1.bf16.msra.mxu0 %v847
      %927 = vmatprep.subr.bf16.mxu0 0
      %928 = vmatpush2.bf16.msra.mxu0 %v862
      %929 = vmatprep.subr.bf16.mxu0 0
      %930 = vmatpush2.bf16.msra.mxu0 %v861
      %931 = vmatprep.subr.bf16.mxu0 0
      %932 = vmatpush2.bf16.msra.mxu0 %v860
      %933 = vmatprep.subr.bf16.mxu0 0
      %934 = vmatpush2.bf16.msra.mxu0 %v859
      %935 = vmatprep.subr.bf16.mxu0 0
      %936 = vmatpush2.bf16.msra.mxu0 %v858
      %937 = vmatprep.subr.bf16.mxu0 0
      %938 = vmatpush2.bf16.msra.mxu0 %v857
      %939 = vmatprep.subr.bf16.mxu0 0
      %940 = vmatpush2.bf16.msra.mxu0 %v856
      %941 = vmatprep.subr.bf16.mxu0 0
      %942 = vmatpush2.bf16.msra.mxu0 %v855
      %943 = vmatprep.mubr.bf16.mxu0 %v712
      %944 = vmatmul.mubr.bf16.gmra.mxu0 %v711
      %v945 = vpop.f32.mrf.mxu0
      %v946 = vadd.f32 %v700, %v945
      %v947 = vpop.f32.mrf.mxu0
      %v948 = vpop.f32.mrf.mxu0
      %v949 = vpop.f32.mrf.mxu0
      %950 = vdwg.mxu0
      %951 = vmatprep.subr.bf16.mxu0 0
      %952 = vmatpush1.bf16.msra.mxu0 %v870
      %953 = vmatprep.subr.bf16.mxu0 0
      %954 = vmatpush1.bf16.msra.mxu0 %v869
      %955 = vmatprep.subr.bf16.mxu0 0
      %956 = vmatpush1.bf16.msra.mxu0 %v868
      %957 = vmatprep.subr.bf16.mxu0 0
      %958 = vmatpush1.bf16.msra.mxu0 %v867
      %959 = vmatprep.subr.bf16.mxu0 0
      %960 = vmatpush1.bf16.msra.mxu0 %v866
      %961 = vmatprep.subr.bf16.mxu0 0
      %962 = vmatpush1.bf16.msra.mxu0 %v865
      %963 = vmatprep.subr.bf16.mxu0 0
      %964 = vmatpush1.bf16.msra.mxu0 %v864
      %965 = vmatprep.subr.bf16.mxu0 0
      %966 = vmatpush1.bf16.msra.mxu0 %v863
      %967 = vmatprep.subr.bf16.mxu0 0
      %968 = vmatpush2.bf16.msra.mxu0 %v878
      %969 = vmatprep.subr.bf16.mxu0 0
      %970 = vmatpush2.bf16.msra.mxu0 %v877
      %971 = vmatprep.subr.bf16.mxu0 0
      %972 = vmatpush2.bf16.msra.mxu0 %v876
      %973 = vmatprep.subr.bf16.mxu0 0
      %974 = vmatpush2.bf16.msra.mxu0 %v875
      %975 = vmatprep.subr.bf16.mxu0 0
      %976 = vmatpush2.bf16.msra.mxu0 %v874
      %977 = vmatprep.subr.bf16.mxu0 0
      %978 = vmatpush2.bf16.msra.mxu0 %v873
      %979 = vmatprep.subr.bf16.mxu0 0
      %980 = vmatpush2.bf16.msra.mxu0 %v872
      %981 = vmatprep.subr.bf16.mxu0 0
      %982 = vmatpush2.bf16.msra.mxu0 %v871
      %983 = vmatprep.mubr.bf16.mxu0 %v714
      %984 = vmatmul.mubr.bf16.gmra.mxu0 %v713
      %v985 = vpop.f32.mrf.mxu0
      %v986 = vadd.f32 %v946, %v985
      %v987 = vpop.f32.mrf.mxu0
      %v988 = vpop.f32.mrf.mxu0
      %v989 = vpop.f32.mrf.mxu0
      %990 = vdwg.mxu0
      %v991 = vld [vmem:[%s231] sm:$0xee]
      %v992 = vld [vmem:[%s231 + $0x8] sm:$0xee]
      %v993 = vld [vmem:[%s231 + $0x10] sm:$0x33]
      %v994 = vld [vmem:[%s231 + $0x18] sm:$0x33]
      %s995 = scalar_lea.vmem %s235, 512
      %v996 = vld [vmem:[%s995] sm:$0xf]
      %v997 = vld [vmem:[%s995 + $0x4] sm:$0xf]
      %v998 = vld [vmem:[%s995 + $0x8] sm:$0xf]
      %v999 = vld [vmem:[%s995 + $0xc] sm:$0xf]
      %v1000 = vld [vmem:[%s995 + $0x10] sm:$0xf]
      %v1001 = vld [vmem:[%s995 + $0x14] sm:$0xf]
      %v1002 = vld [vmem:[%s995 + $0x18] sm:$0xf]
      %v1003 = vld [vmem:[%s995 + $0x1c] sm:$0xf]
      %v1004 = vld [vmem:[%s995 + $0x20] sm:$0xf]
      %v1005 = vld [vmem:[%s995 + $0x24] sm:$0xf]
      %v1006 = vld [vmem:[%s995 + $0x28] sm:$0xf]
      %v1007 = vld [vmem:[%s995 + $0x2c] sm:$0xf]
      %v1008 = vld [vmem:[%s995 + $0x30] sm:$0xf]
      %v1009 = vld [vmem:[%s995 + $0x34] sm:$0xf]
      %v1010 = vld [vmem:[%s995 + $0x38] sm:$0xf]
      %v1011 = vld [vmem:[%s995 + $0x3c] sm:$0xf]
      %v1012 = vld [vmem:[%s995 + $0x40] sm:$0xf]
      %v1013 = vld [vmem:[%s995 + $0x44] sm:$0xf]
      %v1014 = vld [vmem:[%s995 + $0x48] sm:$0xf]
      %v1015 = vld [vmem:[%s995 + $0x4c] sm:$0xf]
      %v1016 = vld [vmem:[%s995 + $0x50] sm:$0xf]
      %v1017 = vld [vmem:[%s995 + $0x54] sm:$0xf]
      %v1018 = vld [vmem:[%s995 + $0x58] sm:$0xf]
      %v1019 = vld [vmem:[%s995 + $0x5c] sm:$0xf]
      %v1020 = vld [vmem:[%s995 + $0x60] sm:$0xf]
      %v1021 = vld [vmem:[%s995 + $0x64] sm:$0xf]
      %v1022 = vld [vmem:[%s995 + $0x68] sm:$0xf]
      %v1023 = vld [vmem:[%s995 + $0x6c] sm:$0xf]
      %v1024 = vld [vmem:[%s995 + $0x70] sm:$0xf]
      %v1025 = vld [vmem:[%s995 + $0x74] sm:$0xf]
      %v1026 = vld [vmem:[%s995 + $0x78] sm:$0xf]
      %v1027 = vld [vmem:[%s995 + $0x7c] sm:$0xf]
      %v1028 = vld [vmem:[%s995 + $0x80] sm:$0xf]
      %v1029 = vld [vmem:[%s995 + $0x84] sm:$0xf]
      %v1030 = vld [vmem:[%s995 + $0x88] sm:$0xf]
      %v1031 = vld [vmem:[%s995 + $0x8c] sm:$0xf]
      %v1032 = vld [vmem:[%s995 + $0x90] sm:$0xf]
      %v1033 = vld [vmem:[%s995 + $0x94] sm:$0xf]
      %v1034 = vld [vmem:[%s995 + $0x98] sm:$0xf]
      %v1035 = vld [vmem:[%s995 + $0x9c] sm:$0xf]
      %v1036 = vld [vmem:[%s995 + $0xa0] sm:$0xf]
      %v1037 = vld [vmem:[%s995 + $0xa4] sm:$0xf]
      %v1038 = vld [vmem:[%s995 + $0xa8] sm:$0xf]
      %v1039 = vld [vmem:[%s995 + $0xac] sm:$0xf]
      %v1040 = vld [vmem:[%s995 + $0xb0] sm:$0xf]
      %v1041 = vld [vmem:[%s995 + $0xb4] sm:$0xf]
      %v1042 = vld [vmem:[%s995 + $0xb8] sm:$0xf]
      %v1043 = vld [vmem:[%s995 + $0xbc] sm:$0xf]
      %v1044 = vld [vmem:[%s995 + $0xc0] sm:$0xf]
      %v1045 = vld [vmem:[%s995 + $0xc4] sm:$0xf]
      %v1046 = vld [vmem:[%s995 + $0xc8] sm:$0xf]
      %v1047 = vld [vmem:[%s995 + $0xcc] sm:$0xf]
      %v1048 = vld [vmem:[%s995 + $0xd0] sm:$0xf]
      %v1049 = vld [vmem:[%s995 + $0xd4] sm:$0xf]
      %v1050 = vld [vmem:[%s995 + $0xd8] sm:$0xf]
      %v1051 = vld [vmem:[%s995 + $0xdc] sm:$0xf]
      %v1052 = vld [vmem:[%s995 + $0xe0] sm:$0xf]
      %v1053 = vld [vmem:[%s995 + $0xe4] sm:$0xf]
      %v1054 = vld [vmem:[%s995 + $0xe8] sm:$0xf]
      %v1055 = vld [vmem:[%s995 + $0xec] sm:$0xf]
      %v1056 = vld [vmem:[%s995 + $0xf0] sm:$0xf]
      %v1057 = vld [vmem:[%s995 + $0xf4] sm:$0xf]
      %v1058 = vld [vmem:[%s995 + $0xf8] sm:$0xf]
      %v1059 = vld [vmem:[%s995 + $0xfc] sm:$0xf]
      %v1064 = vunpack.c.l.b16 %v991
      %v1065 = vunpack.c.h.b16 %v991
      %v1066 = vunpack.c.l.b16 %v992
      %v1067 = vunpack.c.h.b16 %v992
      %v1068 = vunpack.c.l.b16 %v993
      %v1069 = vunpack.c.h.b16 %v993
      %v1070 = vunpack.c.l.b16 %v994
      %v1071 = vunpack.c.h.b16 %v994
      %v1072 = vpack.c.b16 %v1068, %v1064
      %v1073 = vpack.c.b16 %v1069, %v1065
      %v1074 = vpack.c.b16 %v1070, %v1066
      %v1075 = vpack.c.b16 %v1071, %v1067
      %v1077 = vshrl.u32 %v1072, 16
      %v1079 = vrot.slane %v1077, 1
      %v1080 = vshll.u32 %v1072, 16
      %v1082 = vrot.slane %v1080, 2
      %v1083 = vor.u32 %v1079, %v1082
      %v1085 = vshrl.u32 %v1073, 16
      %v1087 = vrot.slane %v1085, 1
      %v1088 = vshll.u32 %v1073, 16
      %v1090 = vrot.slane %v1088, 2
      %v1091 = vor.u32 %v1087, %v1090
      %v1093 = vshrl.u32 %v1074, 16
      %v1095 = vrot.slane %v1093, 1
      %v1096 = vshll.u32 %v1074, 16
      %v1098 = vrot.slane %v1096, 2
      %v1099 = vor.u32 %v1095, %v1098
      %v1101 = vshrl.u32 %v1075, 16
      %v1103 = vrot.slane %v1101, 1
      %v1104 = vshll.u32 %v1075, 16
      %v1106 = vrot.slane %v1104, 2
      %v1107 = vor.u32 %v1103, %v1106
      %v1176 = vunpack.c.l.b16 %v996
      %v1177 = vunpack.c.l.b16 %v997
      %v1178 = vunpack.c.l.b16 %v998
      %v1179 = vunpack.c.l.b16 %v999
      %v1180 = vunpack.c.l.b16 %v1000
      %v1181 = vunpack.c.l.b16 %v1001
      %v1182 = vunpack.c.l.b16 %v1002
      %v1183 = vunpack.c.l.b16 %v1003
      %v1184 = vunpack.c.l.b16 %v1004
      %v1185 = vunpack.c.l.b16 %v1005
      %v1186 = vunpack.c.l.b16 %v1006
      %v1187 = vunpack.c.l.b16 %v1007
      %v1188 = vunpack.c.l.b16 %v1008
      %v1189 = vunpack.c.l.b16 %v1009
      %v1190 = vunpack.c.l.b16 %v1010
      %v1191 = vunpack.c.l.b16 %v1011
      %v1192 = vunpack.c.l.b16 %v1012
      %v1193 = vunpack.c.l.b16 %v1013
      %v1194 = vunpack.c.l.b16 %v1014
      %v1195 = vunpack.c.l.b16 %v1015
      %v1196 = vunpack.c.l.b16 %v1016
      %v1197 = vunpack.c.l.b16 %v1017
      %v1198 = vunpack.c.l.b16 %v1018
      %v1199 = vunpack.c.l.b16 %v1019
      %v1200 = vunpack.c.l.b16 %v1020
      %v1201 = vunpack.c.l.b16 %v1021
      %v1202 = vunpack.c.l.b16 %v1022
      %v1203 = vunpack.c.l.b16 %v1023
      %v1204 = vunpack.c.l.b16 %v1024
      %v1205 = vunpack.c.l.b16 %v1025
      %v1206 = vunpack.c.l.b16 %v1026
      %v1207 = vunpack.c.l.b16 %v1027
      %v1208 = vunpack.c.l.b16 %v1028
      %v1209 = vunpack.c.l.b16 %v1029
      %v1210 = vunpack.c.l.b16 %v1030
      %v1211 = vunpack.c.l.b16 %v1031
      %v1212 = vunpack.c.l.b16 %v1032
      %v1213 = vunpack.c.l.b16 %v1033
      %v1214 = vunpack.c.l.b16 %v1034
      %v1215 = vunpack.c.l.b16 %v1035
      %v1216 = vunpack.c.l.b16 %v1036
      %v1217 = vunpack.c.l.b16 %v1037
      %v1218 = vunpack.c.l.b16 %v1038
      %v1219 = vunpack.c.l.b16 %v1039
      %v1220 = vunpack.c.l.b16 %v1040
      %v1221 = vunpack.c.l.b16 %v1041
      %v1222 = vunpack.c.l.b16 %v1042
      %v1223 = vunpack.c.l.b16 %v1043
      %v1224 = vunpack.c.l.b16 %v1044
      %v1225 = vunpack.c.l.b16 %v1045
      %v1226 = vunpack.c.l.b16 %v1046
      %v1227 = vunpack.c.l.b16 %v1047
      %v1228 = vunpack.c.l.b16 %v1048
      %v1229 = vunpack.c.l.b16 %v1049
      %v1230 = vunpack.c.l.b16 %v1050
      %v1231 = vunpack.c.l.b16 %v1051
      %v1232 = vunpack.c.l.b16 %v1052
      %v1233 = vunpack.c.l.b16 %v1053
      %v1234 = vunpack.c.l.b16 %v1054
      %v1235 = vunpack.c.l.b16 %v1055
      %v1236 = vunpack.c.l.b16 %v1056
      %v1237 = vunpack.c.l.b16 %v1057
      %v1238 = vunpack.c.l.b16 %v1058
      %v1239 = vunpack.c.l.b16 %v1059
      %v1240 = vpack.c.b16 %v1177, %v1176
      %v1241 = vpack.c.b16 %v1179, %v1178
      %v1242 = vpack.c.b16 %v1181, %v1180
      %v1243 = vpack.c.b16 %v1183, %v1182
      %v1244 = vpack.c.b16 %v1185, %v1184
      %v1245 = vpack.c.b16 %v1187, %v1186
      %v1246 = vpack.c.b16 %v1189, %v1188
      %v1247 = vpack.c.b16 %v1191, %v1190
      %v1248 = vpack.c.b16 %v1193, %v1192
      %v1249 = vpack.c.b16 %v1195, %v1194
      %v1250 = vpack.c.b16 %v1197, %v1196
      %v1251 = vpack.c.b16 %v1199, %v1198
      %v1252 = vpack.c.b16 %v1201, %v1200
      %v1253 = vpack.c.b16 %v1203, %v1202
      %v1254 = vpack.c.b16 %v1205, %v1204
      %v1255 = vpack.c.b16 %v1207, %v1206
      %v1256 = vpack.c.b16 %v1209, %v1208
      %v1257 = vpack.c.b16 %v1211, %v1210
      %v1258 = vpack.c.b16 %v1213, %v1212
      %v1259 = vpack.c.b16 %v1215, %v1214
      %v1260 = vpack.c.b16 %v1217, %v1216
      %v1261 = vpack.c.b16 %v1219, %v1218
      %v1262 = vpack.c.b16 %v1221, %v1220
      %v1263 = vpack.c.b16 %v1223, %v1222
      %v1264 = vpack.c.b16 %v1225, %v1224
      %v1265 = vpack.c.b16 %v1227, %v1226
      %v1266 = vpack.c.b16 %v1229, %v1228
      %v1267 = vpack.c.b16 %v1231, %v1230
      %v1268 = vpack.c.b16 %v1233, %v1232
      %v1269 = vpack.c.b16 %v1235, %v1234
      %v1270 = vpack.c.b16 %v1237, %v1236
      %v1271 = vpack.c.b16 %v1239, %v1238
      %1304 = vmatprep.subr.bf16.mxu0 0
      %1305 = vmatpush1.bf16.msra.mxu0 %v1247
      %1306 = vmatprep.subr.bf16.mxu0 0
      %1307 = vmatpush1.bf16.msra.mxu0 %v1246
      %1308 = vmatprep.subr.bf16.mxu0 0
      %1309 = vmatpush1.bf16.msra.mxu0 %v1245
      %1310 = vmatprep.subr.bf16.mxu0 0
      %1311 = vmatpush1.bf16.msra.mxu0 %v1244
      %1312 = vmatprep.subr.bf16.mxu0 0
      %1313 = vmatpush1.bf16.msra.mxu0 %v1243
      %1314 = vmatprep.subr.bf16.mxu0 0
      %1315 = vmatpush1.bf16.msra.mxu0 %v1242
      %1316 = vmatprep.subr.bf16.mxu0 0
      %1317 = vmatpush1.bf16.msra.mxu0 %v1241
      %1318 = vmatprep.subr.bf16.mxu0 0
      %1319 = vmatpush1.bf16.msra.mxu0 %v1240
      %1320 = vmatprep.subr.bf16.mxu0 0
      %1321 = vmatpush2.bf16.msra.mxu0 %v1255
      %1322 = vmatprep.subr.bf16.mxu0 0
      %1323 = vmatpush2.bf16.msra.mxu0 %v1254
      %1324 = vmatprep.subr.bf16.mxu0 0
      %1325 = vmatpush2.bf16.msra.mxu0 %v1253
      %1326 = vmatprep.subr.bf16.mxu0 0
      %1327 = vmatpush2.bf16.msra.mxu0 %v1252
      %1328 = vmatprep.subr.bf16.mxu0 0
      %1329 = vmatpush2.bf16.msra.mxu0 %v1251
      %1330 = vmatprep.subr.bf16.mxu0 0
      %1331 = vmatpush2.bf16.msra.mxu0 %v1250
      %1332 = vmatprep.subr.bf16.mxu0 0
      %1333 = vmatpush2.bf16.msra.mxu0 %v1249
      %1334 = vmatprep.subr.bf16.mxu0 0
      %1335 = vmatpush2.bf16.msra.mxu0 %v1248
      %1336 = vmatprep.mubr.bf16.mxu0 %v1091
      %1337 = vmatmul.mubr.bf16.gmra.mxu0 %v1083
      %v1338 = vpop.f32.mrf.mxu0
      %v1339 = vadd.f32 0.0, %v1338
      %v1340 = vpop.f32.mrf.mxu0
      %v1341 = vpop.f32.mrf.mxu0
      %v1342 = vpop.f32.mrf.mxu0
      %1343 = vdwg.mxu0
      %1344 = vmatprep.subr.bf16.mxu0 0
      %1345 = vmatpush1.bf16.msra.mxu0 %v1263
      %1346 = vmatprep.subr.bf16.mxu0 0
      %1347 = vmatpush1.bf16.msra.mxu0 %v1262
      %1348 = vmatprep.subr.bf16.mxu0 0
      %1349 = vmatpush1.bf16.msra.mxu0 %v1261
      %1350 = vmatprep.subr.bf16.mxu0 0
      %1351 = vmatpush1.bf16.msra.mxu0 %v1260
      %1352 = vmatprep.subr.bf16.mxu0 0
      %1353 = vmatpush1.bf16.msra.mxu0 %v1259
      %1354 = vmatprep.subr.bf16.mxu0 0
      %1355 = vmatpush1.bf16.msra.mxu0 %v1258
      %1356 = vmatprep.subr.bf16.mxu0 0
      %1357 = vmatpush1.bf16.msra.mxu0 %v1257
      %1358 = vmatprep.subr.bf16.mxu0 0
      %1359 = vmatpush1.bf16.msra.mxu0 %v1256
      %1360 = vmatprep.subr.bf16.mxu0 0
      %1361 = vmatpush2.bf16.msra.mxu0 %v1271
      %1362 = vmatprep.subr.bf16.mxu0 0
      %1363 = vmatpush2.bf16.msra.mxu0 %v1270
      %1364 = vmatprep.subr.bf16.mxu0 0
      %1365 = vmatpush2.bf16.msra.mxu0 %v1269
      %1366 = vmatprep.subr.bf16.mxu0 0
      %1367 = vmatpush2.bf16.msra.mxu0 %v1268
      %1368 = vmatprep.subr.bf16.mxu0 0
      %1369 = vmatpush2.bf16.msra.mxu0 %v1267
      %1370 = vmatprep.subr.bf16.mxu0 0
      %1371 = vmatpush2.bf16.msra.mxu0 %v1266
      %1372 = vmatprep.subr.bf16.mxu0 0
      %1373 = vmatpush2.bf16.msra.mxu0 %v1265
      %1374 = vmatprep.subr.bf16.mxu0 0
      %1375 = vmatpush2.bf16.msra.mxu0 %v1264
      %1376 = vmatprep.mubr.bf16.mxu0 %v1107
      %1377 = vmatmul.mubr.bf16.gmra.mxu0 %v1099
      %v1378 = vpop.f32.mrf.mxu0
      %v1379 = vadd.f32 %v1339, %v1378
      %v1380 = vpop.f32.mrf.mxu0
      %v1381 = vpop.f32.mrf.mxu0
      %v1382 = vpop.f32.mrf.mxu0
      %1383 = vdwg.mxu0
      %v1384 = vadd.f32 %v986, %v1379
      %v1385 = vld [vmem:[%s231] sm:$0xcc]
      %v1386 = vld [vmem:[%s231 + $0x8] sm:$0xcc]
      %s1387 = scalar_lea.vmem %s235, 768
      %v1388 = vld [vmem:[%s1387] sm:$0xf]
      %v1389 = vld [vmem:[%s1387 + $0x4] sm:$0xf]
      %v1390 = vld [vmem:[%s1387 + $0x8] sm:$0xf]
      %v1391 = vld [vmem:[%s1387 + $0xc] sm:$0xf]
      %v1392 = vld [vmem:[%s1387 + $0x10] sm:$0xf]
      %v1393 = vld [vmem:[%s1387 + $0x14] sm:$0xf]
      %v1394 = vld [vmem:[%s1387 + $0x18] sm:$0xf]
      %v1395 = vld [vmem:[%s1387 + $0x1c] sm:$0xf]
      %v1396 = vld [vmem:[%s1387 + $0x20] sm:$0xf]
      %v1397 = vld [vmem:[%s1387 + $0x24] sm:$0xf]
      %v1398 = vld [vmem:[%s1387 + $0x28] sm:$0xf]
      %v1399 = vld [vmem:[%s1387 + $0x2c] sm:$0xf]
      %v1400 = vld [vmem:[%s1387 + $0x30] sm:$0xf]
      %v1401 = vld [vmem:[%s1387 + $0x34] sm:$0xf]
      %v1402 = vld [vmem:[%s1387 + $0x38] sm:$0xf]
      %v1403 = vld [vmem:[%s1387 + $0x3c] sm:$0xf]
      %v1404 = vld [vmem:[%s1387 + $0x40] sm:$0xf]
      %v1405 = vld [vmem:[%s1387 + $0x44] sm:$0xf]
      %v1406 = vld [vmem:[%s1387 + $0x48] sm:$0xf]
      %v1407 = vld [vmem:[%s1387 + $0x4c] sm:$0xf]
      %v1408 = vld [vmem:[%s1387 + $0x50] sm:$0xf]
      %v1409 = vld [vmem:[%s1387 + $0x54] sm:$0xf]
      %v1410 = vld [vmem:[%s1387 + $0x58] sm:$0xf]
      %v1411 = vld [vmem:[%s1387 + $0x5c] sm:$0xf]
      %v1412 = vld [vmem:[%s1387 + $0x60] sm:$0xf]
      %v1413 = vld [vmem:[%s1387 + $0x64] sm:$0xf]
      %v1414 = vld [vmem:[%s1387 + $0x68] sm:$0xf]
      %v1415 = vld [vmem:[%s1387 + $0x6c] sm:$0xf]
      %v1416 = vld [vmem:[%s1387 + $0x70] sm:$0xf]
      %v1417 = vld [vmem:[%s1387 + $0x74] sm:$0xf]
      %v1418 = vld [vmem:[%s1387 + $0x78] sm:$0xf]
      %v1419 = vld [vmem:[%s1387 + $0x7c] sm:$0xf]
      %v1420 = vld [vmem:[%s1387 + $0x80] sm:$0xf]
      %v1421 = vld [vmem:[%s1387 + $0x84] sm:$0xf]
      %v1422 = vld [vmem:[%s1387 + $0x88] sm:$0xf]
      %v1423 = vld [vmem:[%s1387 + $0x8c] sm:$0xf]
      %v1424 = vld [vmem:[%s1387 + $0x90] sm:$0xf]
      %v1425 = vld [vmem:[%s1387 + $0x94] sm:$0xf]
      %v1426 = vld [vmem:[%s1387 + $0x98] sm:$0xf]
      %v1427 = vld [vmem:[%s1387 + $0x9c] sm:$0xf]
      %v1428 = vld [vmem:[%s1387 + $0xa0] sm:$0xf]
      %v1429 = vld [vmem:[%s1387 + $0xa4] sm:$0xf]
      %v1430 = vld [vmem:[%s1387 + $0xa8] sm:$0xf]
      %v1431 = vld [vmem:[%s1387 + $0xac] sm:$0xf]
      %v1432 = vld [vmem:[%s1387 + $0xb0] sm:$0xf]
      %v1433 = vld [vmem:[%s1387 + $0xb4] sm:$0xf]
      %v1434 = vld [vmem:[%s1387 + $0xb8] sm:$0xf]
      %v1435 = vld [vmem:[%s1387 + $0xbc] sm:$0xf]
      %v1436 = vld [vmem:[%s1387 + $0xc0] sm:$0xf]
      %v1437 = vld [vmem:[%s1387 + $0xc4] sm:$0xf]
      %v1438 = vld [vmem:[%s1387 + $0xc8] sm:$0xf]
      %v1439 = vld [vmem:[%s1387 + $0xcc] sm:$0xf]
      %v1440 = vld [vmem:[%s1387 + $0xd0] sm:$0xf]
      %v1441 = vld [vmem:[%s1387 + $0xd4] sm:$0xf]
      %v1442 = vld [vmem:[%s1387 + $0xd8] sm:$0xf]
      %v1443 = vld [vmem:[%s1387 + $0xdc] sm:$0xf]
      %v1444 = vld [vmem:[%s1387 + $0xe0] sm:$0xf]
      %v1445 = vld [vmem:[%s1387 + $0xe4] sm:$0xf]
      %v1446 = vld [vmem:[%s1387 + $0xe8] sm:$0xf]
      %v1447 = vld [vmem:[%s1387 + $0xec] sm:$0xf]
      %v1448 = vld [vmem:[%s1387 + $0xf0] sm:$0xf]
      %v1449 = vld [vmem:[%s1387 + $0xf4] sm:$0xf]
      %v1450 = vld [vmem:[%s1387 + $0xf8] sm:$0xf]
      %v1451 = vld [vmem:[%s1387 + $0xfc] sm:$0xf]
      %v1454 = vunpack.c.l.b16 %v1385
      %v1455 = vunpack.c.h.b16 %v1385
      %v1456 = vunpack.c.l.b16 %v1386
      %v1457 = vunpack.c.h.b16 %v1386
      %v1458 = vpack.c.b16 %v1068, %v1454
      %v1459 = vpack.c.b16 %v1069, %v1455
      %v1460 = vpack.c.b16 %v1070, %v1456
      %v1461 = vpack.c.b16 %v1071, %v1457
      %v1462 = vrot.slane %v1458, 2
      %v1463 = vrot.slane %v1459, 2
      %v1464 = vrot.slane %v1460, 2
      %v1465 = vrot.slane %v1461, 2
      %v1534 = vunpack.c.l.b16 %v1388
      %v1535 = vunpack.c.l.b16 %v1389
      %v1536 = vunpack.c.l.b16 %v1390
      %v1537 = vunpack.c.l.b16 %v1391
      %v1538 = vunpack.c.l.b16 %v1392
      %v1539 = vunpack.c.l.b16 %v1393
      %v1540 = vunpack.c.l.b16 %v1394
      %v1541 = vunpack.c.l.b16 %v1395
      %v1542 = vunpack.c.l.b16 %v1396
      %v1543 = vunpack.c.l.b16 %v1397
      %v1544 = vunpack.c.l.b16 %v1398
      %v1545 = vunpack.c.l.b16 %v1399
      %v1546 = vunpack.c.l.b16 %v1400
      %v1547 = vunpack.c.l.b16 %v1401
      %v1548 = vunpack.c.l.b16 %v1402
      %v1549 = vunpack.c.l.b16 %v1403
      %v1550 = vunpack.c.l.b16 %v1404
      %v1551 = vunpack.c.l.b16 %v1405
      %v1552 = vunpack.c.l.b16 %v1406
      %v1553 = vunpack.c.l.b16 %v1407
      %v1554 = vunpack.c.l.b16 %v1408
      %v1555 = vunpack.c.l.b16 %v1409
      %v1556 = vunpack.c.l.b16 %v1410
      %v1557 = vunpack.c.l.b16 %v1411
      %v1558 = vunpack.c.l.b16 %v1412
      %v1559 = vunpack.c.l.b16 %v1413
      %v1560 = vunpack.c.l.b16 %v1414
      %v1561 = vunpack.c.l.b16 %v1415
      %v1562 = vunpack.c.l.b16 %v1416
      %v1563 = vunpack.c.l.b16 %v1417
      %v1564 = vunpack.c.l.b16 %v1418
      %v1565 = vunpack.c.l.b16 %v1419
      %v1566 = vunpack.c.l.b16 %v1420
      %v1567 = vunpack.c.l.b16 %v1421
      %v1568 = vunpack.c.l.b16 %v1422
      %v1569 = vunpack.c.l.b16 %v1423
      %v1570 = vunpack.c.l.b16 %v1424
      %v1571 = vunpack.c.l.b16 %v1425
      %v1572 = vunpack.c.l.b16 %v1426
      %v1573 = vunpack.c.l.b16 %v1427
      %v1574 = vunpack.c.l.b16 %v1428
      %v1575 = vunpack.c.l.b16 %v1429
      %v1576 = vunpack.c.l.b16 %v1430
      %v1577 = vunpack.c.l.b16 %v1431
      %v1578 = vunpack.c.l.b16 %v1432
      %v1579 = vunpack.c.l.b16 %v1433
      %v1580 = vunpack.c.l.b16 %v1434
      %v1581 = vunpack.c.l.b16 %v1435
      %v1582 = vunpack.c.l.b16 %v1436
      %v1583 = vunpack.c.l.b16 %v1437
      %v1584 = vunpack.c.l.b16 %v1438
      %v1585 = vunpack.c.l.b16 %v1439
      %v1586 = vunpack.c.l.b16 %v1440
      %v1587 = vunpack.c.l.b16 %v1441
      %v1588 = vunpack.c.l.b16 %v1442
      %v1589 = vunpack.c.l.b16 %v1443
      %v1590 = vunpack.c.l.b16 %v1444
      %v1591 = vunpack.c.l.b16 %v1445
      %v1592 = vunpack.c.l.b16 %v1446
      %v1593 = vunpack.c.l.b16 %v1447
      %v1594 = vunpack.c.l.b16 %v1448
      %v1595 = vunpack.c.l.b16 %v1449
      %v1596 = vunpack.c.l.b16 %v1450
      %v1597 = vunpack.c.l.b16 %v1451
      %v1598 = vpack.c.b16 %v1535, %v1534
      %v1599 = vpack.c.b16 %v1537, %v1536
      %v1600 = vpack.c.b16 %v1539, %v1538
      %v1601 = vpack.c.b16 %v1541, %v1540
      %v1602 = vpack.c.b16 %v1543, %v1542
      %v1603 = vpack.c.b16 %v1545, %v1544
      %v1604 = vpack.c.b16 %v1547, %v1546
      %v1605 = vpack.c.b16 %v1549, %v1548
      %v1606 = vpack.c.b16 %v1551, %v1550
      %v1607 = vpack.c.b16 %v1553, %v1552
      %v1608 = vpack.c.b16 %v1555, %v1554
      %v1609 = vpack.c.b16 %v1557, %v1556
      %v1610 = vpack.c.b16 %v1559, %v1558
      %v1611 = vpack.c.b16 %v1561, %v1560
      %v1612 = vpack.c.b16 %v1563, %v1562
      %v1613 = vpack.c.b16 %v1565, %v1564
      %v1614 = vpack.c.b16 %v1567, %v1566
      %v1615 = vpack.c.b16 %v1569, %v1568
      %v1616 = vpack.c.b16 %v1571, %v1570
      %v1617 = vpack.c.b16 %v1573, %v1572
      %v1618 = vpack.c.b16 %v1575, %v1574
      %v1619 = vpack.c.b16 %v1577, %v1576
      %v1620 = vpack.c.b16 %v1579, %v1578
      %v1621 = vpack.c.b16 %v1581, %v1580
      %v1622 = vpack.c.b16 %v1583, %v1582
      %v1623 = vpack.c.b16 %v1585, %v1584
      %v1624 = vpack.c.b16 %v1587, %v1586
      %v1625 = vpack.c.b16 %v1589, %v1588
      %v1626 = vpack.c.b16 %v1591, %v1590
      %v1627 = vpack.c.b16 %v1593, %v1592
      %v1628 = vpack.c.b16 %v1595, %v1594
      %v1629 = vpack.c.b16 %v1597, %v1596
      %1662 = vmatprep.subr.bf16.mxu0 0
      %1663 = vmatpush1.bf16.msra.mxu0 %v1605
      %1664 = vmatprep.subr.bf16.mxu0 0
      %1665 = vmatpush1.bf16.msra.mxu0 %v1604
      %1666 = vmatprep.subr.bf16.mxu0 0
      %1667 = vmatpush1.bf16.msra.mxu0 %v1603
      %1668 = vmatprep.subr.bf16.mxu0 0
      %1669 = vmatpush1.bf16.msra.mxu0 %v1602
      %1670 = vmatprep.subr.bf16.mxu0 0
      %1671 = vmatpush1.bf16.msra.mxu0 %v1601
      %1672 = vmatprep.subr.bf16.mxu0 0
      %1673 = vmatpush1.bf16.msra.mxu0 %v1600
      %1674 = vmatprep.subr.bf16.mxu0 0
      %1675 = vmatpush1.bf16.msra.mxu0 %v1599
      %1676 = vmatprep.subr.bf16.mxu0 0
      %1677 = vmatpush1.bf16.msra.mxu0 %v1598
      %1678 = vmatprep.subr.bf16.mxu0 0
      %1679 = vmatpush2.bf16.msra.mxu0 %v1613
      %1680 = vmatprep.subr.bf16.mxu0 0
      %1681 = vmatpush2.bf16.msra.mxu0 %v1612
      %1682 = vmatprep.subr.bf16.mxu0 0
      %1683 = vmatpush2.bf16.msra.mxu0 %v1611
      %1684 = vmatprep.subr.bf16.mxu0 0
      %1685 = vmatpush2.bf16.msra.mxu0 %v1610
      %1686 = vmatprep.subr.bf16.mxu0 0
      %1687 = vmatpush2.bf16.msra.mxu0 %v1609
      %1688 = vmatprep.subr.bf16.mxu0 0
      %1689 = vmatpush2.bf16.msra.mxu0 %v1608
      %1690 = vmatprep.subr.bf16.mxu0 0
      %1691 = vmatpush2.bf16.msra.mxu0 %v1607
      %1692 = vmatprep.subr.bf16.mxu0 0
      %1693 = vmatpush2.bf16.msra.mxu0 %v1606
      %1694 = vmatprep.mubr.bf16.mxu0 %v1463
      %1695 = vmatmul.mubr.bf16.gmra.mxu0 %v1462
      %v1696 = vpop.f32.mrf.mxu0
      %v1697 = vadd.f32 0.0, %v1696
      %v1698 = vpop.f32.mrf.mxu0
      %v1699 = vpop.f32.mrf.mxu0
      %v1700 = vpop.f32.mrf.mxu0
      %1701 = vdwg.mxu0
      %1702 = vmatprep.subr.bf16.mxu0 0
      %1703 = vmatpush1.bf16.msra.mxu0 %v1621
      %1704 = vmatprep.subr.bf16.mxu0 0
      %1705 = vmatpush1.bf16.msra.mxu0 %v1620
      %1706 = vmatprep.subr.bf16.mxu0 0
      %1707 = vmatpush1.bf16.msra.mxu0 %v1619
      %1708 = vmatprep.subr.bf16.mxu0 0
      %1709 = vmatpush1.bf16.msra.mxu0 %v1618
      %1710 = vmatprep.subr.bf16.mxu0 0
      %1711 = vmatpush1.bf16.msra.mxu0 %v1617
      %1712 = vmatprep.subr.bf16.mxu0 0
      %1713 = vmatpush1.bf16.msra.mxu0 %v1616
      %1714 = vmatprep.subr.bf16.mxu0 0
      %1715 = vmatpush1.bf16.msra.mxu0 %v1615
      %1716 = vmatprep.subr.bf16.mxu0 0
      %1717 = vmatpush1.bf16.msra.mxu0 %v1614
      %1718 = vmatprep.subr.bf16.mxu0 0
      %1719 = vmatpush2.bf16.msra.mxu0 %v1629
      %1720 = vmatprep.subr.bf16.mxu0 0
      %1721 = vmatpush2.bf16.msra.mxu0 %v1628
      %1722 = vmatprep.subr.bf16.mxu0 0
      %1723 = vmatpush2.bf16.msra.mxu0 %v1627
      %1724 = vmatprep.subr.bf16.mxu0 0
      %1725 = vmatpush2.bf16.msra.mxu0 %v1626
      %1726 = vmatprep.subr.bf16.mxu0 0
      %1727 = vmatpush2.bf16.msra.mxu0 %v1625
      %1728 = vmatprep.subr.bf16.mxu0 0
      %1729 = vmatpush2.bf16.msra.mxu0 %v1624
      %1730 = vmatprep.subr.bf16.mxu0 0
      %1731 = vmatpush2.bf16.msra.mxu0 %v1623
      %1732 = vmatprep.subr.bf16.mxu0 0
      %1733 = vmatpush2.bf16.msra.mxu0 %v1622
      %1734 = vmatprep.mubr.bf16.mxu0 %v1465
      %1735 = vmatmul.mubr.bf16.gmra.mxu0 %v1464
      %v1736 = vpop.f32.mrf.mxu0
      %v1737 = vadd.f32 %v1697, %v1736
      %v1738 = vpop.f32.mrf.mxu0
      %v1739 = vpop.f32.mrf.mxu0
      %v1740 = vpop.f32.mrf.mxu0
      %1741 = vdwg.mxu0
      %v1742 = vadd.f32 %v1384, %v1737
      %v1743 = vld [vmem:[%s238] sm:$0x1]
      %v1745 = vlaneseq
      %v1746 = vshrl.u32 %v1745, 7
      %v1747 = vsub.s32 0, %v1746
      %v1748 = vrot.slane %v1743, %v1747
      %v1750 = vadd.f32 %v1742, %v1748
      %vm1751 = vcmp.ge.f32.partialorder %v1750, 0.0
      %v1752 = vmul.f32 %v1750, 0.2
      %v1753 = vsel %vm1751, %v1750, %v1752
      %v1754 = vpack.c.bf16 %v1753, %v1753
      %1755 = vst [vmem:[%s248] sm:$0xf] %v1754
      %p1756 = scmp.lt.s32.totalorder %s19, 1
      %s1757 = scalar_select %p1756, %s19, 1
      %p1758 = scmp.lt.s32.totalorder %s20, 0
      %s1759 = scalar_select %p1758, %s20, 0
      %p1760 = scmp.lt.s32.totalorder %s21, 0
      %s1761 = scalar_select %p1760, %s21, 0
      %s1762 = sadd.s32 %s1761, %s1759
      %s1763 = sadd.s32 %s1762, %s1757
      %s1764 = smul.addr %s1763, 4
      %s1765 = scalar_lea.vmem %s3, %s1764
      // Predicated region
      $region33: #{discriminator_forward.7} parent=31 // pred_check
        %p1766 = pneg %p135
      $region34: #{discriminator_forward.7} parent=31 // pred_check_branch
        %1768 = sbr.rel (%p1766) target = $region36
      $region35: #{discriminator_forward.7} parent=31 // pred_region
        _
      $region36: #{discriminator_forward.7} parent=31 // pred_fallthru
        _
    $region32: #{discriminator_forward.7} parent=5 // pred_fallthru
      _
    %p1769 = scmp.le.s32.totalorder 2, %s9
    // Predicated region
    $region37: #{discriminator_forward.7} parent=5 // pred_check
      %p1770 = pneg %p1769
    $region38: #{discriminator_forward.7} parent=5 // pred_check_branch
      %1772 = sbr.rel (%p1770) target = $region40
    $region39: #{discriminator_forward.7} parent=5 // pred_region
      %s1773 = ssub.s32 %s9, 2
      // Predicated region
      $region41: #{discriminator_forward.7} parent=39 // pred_check
        %p1774 = pneg %p141
      $region42: #{discriminator_forward.7} parent=39 // pred_check_branch
        %1776 = sbr.rel (%p1774) target = $region44
      $region43: #{discriminator_forward.7} parent=39 // pred_region
        %p1777 = scmp.lt.s32.totalorder %s22, 1
        %s1778 = scalar_select %p1777, %s22, 1
        %p1779 = scmp.lt.s32.totalorder %s23, 0
        %s1780 = scalar_select %p1779, %s23, 0
        %p1781 = scmp.lt.s32.totalorder %s24, 0
        %s1782 = scalar_select %p1781, %s24, 0
        %s1783 = sadd.s32 %s1782, %s1780
        %s1784 = sadd.s32 %s1783, %s1778
        %s1785 = smul.addr %s1784, 4
        %s1786 = scalar_lea.vmem %s3, %s1785
      $region44: #{discriminator_forward.7} parent=39 // pred_fallthru
        _
    $region40: #{discriminator_forward.7} parent=5 // pred_fallthru
      _
  $region6: #{discriminator_forward.7} parent=0 // loop_footer
    %s13 = sadd.s32 1, %s9
  $region7: #{discriminator_forward.7} parent=0 // loop_footer_branch
    %8 = sbr.rel target = $region3
  $region8: #{discriminator_forward.7} parent=0 // loop_exit
    _

// kernel: discriminator_forward.8
$region0: #{discriminator_forward.8}
  #allocation0 [shape = 'u32[]', space=smem, size = 0x4, offset = 0x4, fixed_abs, tag = 'smem constant byte address 0x4 - core index']
  #allocation1 [shape = 'u32[144,128]{1,0:T(1,128)}', space=vmem, size = 0x12000, scoped, tag = 'internal scratch']
  %s0 = inlined_call_operand.vmem [shape: bf16[2,1,16,512], index: 0, kind: input, shape index: {}]
  %s1 = inlined_call_operand.vmem [shape: bf16[2,2,512,128], index: 1, kind: input, shape index: {}]
  %s2 = inlined_call_operand.vmem [shape: f32[1,128], index: 2, kind: input, shape index: {}]
  %s3 = inlined_call_operand.vmem [shape: bf16[2,8,128], index: 3, kind: output, shape index: {}]
  %s4 = sld [smem:[#allocation0]]
  $region45: #{discriminator_forward.8} parent=0
    _
  %s6 = ssub.s32 1, %s4
  %s7 = scalar_select 0, %s6, %s4
  loop: start=0, step=1, limit=4
  $region2: #{discriminator_forward.8} parent=0 // loop_pre_header
    _
  $region3: #{discriminator_forward.8} parent=0 // loop_header
    %s9 = sphi 0, %s13
    %p10 = scmp.ge.s32.totalorder %s9, 4
    %s16 = sphi 0, %s35
    %s17 = sphi 0, %s31
    %s18 = sphi 0, %s27
    %s19 = sphi 0, %s16
    %s20 = sphi 0, %s17
    %s21 = sphi 0, %s18
    %s22 = sphi 0, %s19
    %s23 = sphi 0, %s20
    %s24 = sphi 0, %s21
    %s40 = sphi 0, %s42
    %s43 = sphi 0, %s40
    %s44 = sphi 0, %s43
    %s60 = sphi 0, %s44
    %s66 = sphi 0, %s68
    %s69 = sphi 0, %s66
    %s70 = sphi 0, %s69
    %s86 = sphi 0, %s70
    %s92 = sphi 0, %s94
    %s95 = sphi 0, %s92
    %s96 = sphi 0, %s95
    %s112 = sphi 0, %s96
    %s122 = sphi 0, %s124
    %s125 = sphi 0, %s122
    %s126 = sphi 0, %s125
    %s142 = sphi 0, %s126
  $region4: #{discriminator_forward.8} parent=0 // loop_header_branch
    %12 = sbr.rel (%p10) target = $region8
  $region5: #{discriminator_forward.8} parent=0 // loop_body
    %s14 = ssub.s32 %s9, 1
    %s15 = ssub.s32 %s9, 2
    %s25 = sadd.s32 1, %s18
    %p26 = scmp.ge.s32.totalorder %s25, 1
    %s27 = scalar_select %p26, 0, %s25
    %s28 = sadd.s32 1, %s17
    %s29 = scalar_select %p26, %s28, %s17
    %p30 = scmp.ge.s32.totalorder %s29, 1
    %s31 = scalar_select %p30, 0, %s29
    %s32 = sadd.s32 1, %s16
    %s33 = scalar_select %p30, %s32, %s16
    %p34 = scmp.ge.s32.totalorder %s33, 2
    %s35 = scalar_select %p34, 0, %s33
    %s36 = ssub.s32 %s16, %s35
    %s37 = ssub.s32 %s17, %s31
    %s38 = sor.u32 %s36, %s37
    %p39 = scmp.eq.s32.totalorder %s38, 0
    %s41 = sadd.s32 %s40, 1
    %s42 = scalar_select %p39, %s40, %s41
    %p45 = pneg %p39
    %p46 = scmp.eq.s32.totalorder %s9, 1
    %p47 = por %p45, %p46
    %p48 = scmp.ne.s32.totalorder %s40, %s43
    %p49 = scmp.eq.s32.totalorder %s9, 0
    %p50 = por %p48, %p49
    %p51 = scmp.ne.s32.totalorder %s40, %s43
    %p52 = scmp.eq.s32.totalorder %s14, 1
    %p53 = por %p51, %p52
    %p54 = scmp.ne.s32.totalorder %s43, %s44
    %p55 = scmp.eq.s32.totalorder %s14, 0
    %p56 = por %p54, %p55
    %p57 = scmp.ne.s32.totalorder %s43, %s44
    %p58 = scmp.eq.s32.totalorder %s15, 1
    %p59 = por %p57, %p58
    %p61 = scmp.ne.s32.totalorder %s44, %s60
    %p62 = scmp.eq.s32.totalorder %s15, 0
    %p63 = por %p61, %p62
    %s64 = ssub.s32 %s18, %s27
    %p65 = scmp.eq.s32.totalorder %s64, 0
    %s67 = sadd.s32 %s66, 1
    %s68 = scalar_select %p65, %s66, %s67
    %p71 = pneg %p65
    %p72 = scmp.eq.s32.totalorder %s9, 1
    %p73 = por %p71, %p72
    %p74 = scmp.ne.s32.totalorder %s66, %s69
    %p75 = scmp.eq.s32.totalorder %s9, 0
    %p76 = por %p74, %p75
    %p77 = scmp.ne.s32.totalorder %s66, %s69
    %p78 = scmp.eq.s32.totalorder %s14, 1
    %p79 = por %p77, %p78
    %p80 = scmp.ne.s32.totalorder %s69, %s70
    %p81 = scmp.eq.s32.totalorder %s14, 0
    %p82 = por %p80, %p81
    %p83 = scmp.ne.s32.totalorder %s69, %s70
    %p84 = scmp.eq.s32.totalorder %s15, 1
    %p85 = por %p83, %p84
    %p87 = scmp.ne.s32.totalorder %s70, %s86
    %p88 = scmp.eq.s32.totalorder %s15, 0
    %p89 = por %p87, %p88
    %s90 = ssub.s32 %s18, %s27
    %p91 = scmp.eq.s32.totalorder %s90, 0
    %s93 = sadd.s32 %s92, 1
    %s94 = scalar_select %p91, %s92, %s93
    %p97 = pneg %p91
    %p98 = scmp.eq.s32.totalorder %s9, 1
    %p99 = por %p97, %p98
    %p100 = scmp.ne.s32.totalorder %s92, %s95
    %p101 = scmp.eq.s32.totalorder %s9, 0
    %p102 = por %p100, %p101
    %p103 = scmp.ne.s32.totalorder %s92, %s95
    %p104 = scmp.eq.s32.totalorder %s14, 1
    %p105 = por %p103, %p104
    %p106 = scmp.ne.s32.totalorder %s95, %s96
    %p107 = scmp.eq.s32.totalorder %s14, 0
    %p108 = por %p106, %p107
    %p109 = scmp.ne.s32.totalorder %s95, %s96
    %p110 = scmp.eq.s32.totalorder %s15, 1
    %p111 = por %p109, %p110
    %p113 = scmp.ne.s32.totalorder %s96, %s112
    %p114 = scmp.eq.s32.totalorder %s15, 0
    %p115 = por %p113, %p114
    %s116 = ssub.s32 %s16, %s35
    %s117 = ssub.s32 %s17, %s31
    %s118 = sor.u32 %s116, %s117
    %s119 = ssub.s32 %s18, %s27
    %s120 = sor.u32 %s118, %s119
    %p121 = scmp.eq.s32.totalorder %s120, 0
    %s123 = sadd.s32 %s122, 1
    %s124 = scalar_select %p121, %s122, %s123
    %p127 = pneg %p121
    %p128 = scmp.eq.s32.totalorder %s9, 1
    %p129 = por %p127, %p128
    %p130 = scmp.ne.s32.totalorder %s122, %s125
    %p131 = scmp.eq.s32.totalorder %s9, 0
    %p132 = por %p130, %p131
    %p133 = scmp.ne.s32.totalorder %s122, %s125
    %p134 = scmp.eq.s32.totalorder %s14, 1
    %p135 = por %p133, %p134
    %p136 = scmp.ne.s32.totalorder %s125, %s126
    %p137 = scmp.eq.s32.totalorder %s14, 0
    %p138 = por %p136, %p137
    %p139 = scmp.ne.s32.totalorder %s125, %s126
    %p140 = scmp.eq.s32.totalorder %s15, 1
    %p141 = por %p139, %p140
    %p143 = scmp.ne.s32.totalorder %s126, %s142
    %p144 = scmp.eq.s32.totalorder %s15, 0
    %p145 = por %p143, %p144
    %p146 = scmp.le.s32.totalorder 1, %s9
    %p147 = scmp.lt.s32.totalorder %s9, 3
    %p148 = pnand %p146, %p147
    %p149 = pneg %p148
    // Predicated region
    $region9: #{discriminator_forward.8} parent=5 // pred_check
      _
    $region10: #{discriminator_forward.8} parent=5 // pred_check_branch
      %151 = sbr.rel (%p148) target = $region12
    $region11: #{discriminator_forward.8} parent=5 // pred_region
      %s152 = ssub.s32 %s9, 1
      // Predicated region
      $region13: #{discriminator_forward.8} parent=11 // pred_check
        %p153 = pneg %p82
      $region14: #{discriminator_forward.8} parent=11 // pred_check_branch
        %155 = sbr.rel (%p153) target = $region16
      $region15: #{discriminator_forward.8} parent=11 // pred_region
        %p156 = scmp.lt.s32.totalorder %s21, 0
        %s157 = scalar_select %p156, %s21, 0
        %s158 = smul.addr %s157, 4
        %s159 = scalar_lea.vmem %s1, %s158
      $region16: #{discriminator_forward.8} parent=11 // pred_fallthru
        _
      // Predicated region
      $region17: #{discriminator_forward.8} parent=11 // pred_check
        %p160 = pneg %p108
      $region18: #{discriminator_forward.8} parent=11 // pred_check_branch
        %162 = sbr.rel (%p160) target = $region20
      $region19: #{discriminator_forward.8} parent=11 // pred_region
        %p163 = scmp.lt.s32.totalorder %s21, 0
        %s164 = scalar_select %p163, %s21, 0
        %s165 = scalar_lea.vmem %s2, %s164
      $region20: #{discriminator_forward.8} parent=11 // pred_fallthru
        _
    $region12: #{discriminator_forward.8} parent=5 // pred_fallthru
      _
    %p166 = scmp.lt.s32.totalorder %s9, 2
    // Predicated region
    $region21: #{discriminator_forward.8} parent=5 // pred_check
      %p167 = pneg %p166
    $region22: #{discriminator_forward.8} parent=5 // pred_check_branch
      %169 = sbr.rel (%p167) target = $region24
    $region23: #{discriminator_forward.8} parent=5 // pred_region
      // Predicated region
      $region25: #{discriminator_forward.8} parent=23 // pred_check
        %p170 = pneg %p50
      $region26: #{discriminator_forward.8} parent=23 // pred_check_branch
        %172 = sbr.rel (%p170) target = $region28
      $region27: #{discriminator_forward.8} parent=23 // pred_region
        %p173 = scmp.lt.s32.totalorder %s16, 1
        %s174 = scalar_select %p173, %s16, 1
        %p175 = scmp.lt.s32.totalorder %s17, 0
        %s176 = scalar_select %p175, %s17, 0
        %s177 = smul.addr %s176, 8
        %s178 = smul.addr %s174, 8
        %s179 = sadd.s32 %s177, %s178
        %s180 = smul.addr %s179, 4
        %s181 = scalar_lea.vmem %s0, %s180
      $region28: #{discriminator_forward.8} parent=23 // pred_fallthru
        _
    $region24: #{discriminator_forward.8} parent=5 // pred_fallthru
      _
    %p182 = scmp.le.s32.totalorder 1, %s9
    %p183 = scmp.lt.s32.totalorder %s9, 3
    %p184 = pnand %p182, %p183
    %p185 = pneg %p184
    // Predicated region
    $region29: #{discriminator_forward.8} parent=5 // pred_check
      _
    $region30: #{discriminator_forward.8} parent=5 // pred_check_branch
      %187 = sbr.rel (%p184) target = $region32
    $region31: #{discriminator_forward.8} parent=5 // pred_region
      %s188 = ssub.s32 %s9, 1
      %p189 = scmp.lt.s32.totalorder %s19, 1
      %s190 = scalar_select %p189, %s19, 1
      %p191 = scmp.lt.s32.totalorder %s20, 0
      %s192 = scalar_select %p191, %s20, 0
      %s193 = smul.addr %s192, 8
      %s194 = smul.addr %s190, 8
      %s195 = sadd.s32 %s193, %s194
      %s196 = smul.addr %s195, 4
      %s197 = scalar_lea.vmem %s0, %s196
      %p198 = pneg %p56
      %p199 = pneg %p53
      %p200 = scmp.lt.s32.totalorder %s21, 0
      %s201 = scalar_select %p200, %s21, 0
      %s202 = smul.addr %s201, 4
      %s203 = scalar_lea.vmem %s1, %s202
      %p204 = pneg %p82
      %p205 = pneg %p79
      %p206 = scmp.lt.s32.totalorder %s21, 0
      %s207 = scalar_select %p206, %s21, 0
      %s208 = scalar_lea.vmem %s2, %s207
      %p209 = pneg %p108
      %p210 = pneg %p105
      %p211 = pneg %p138
      %p212 = pneg %p135
      %p213 = scmp.lt.s32.totalorder %s19, 1
      %s214 = scalar_select %p213, %s19, 1
      %p215 = scmp.lt.s32.totalorder %s20, 0
      %s216 = scalar_select %p215, %s20, 0
      %p217 = scmp.lt.s32.totalorder %s21, 0
      %s218 = scalar_select %p217, %s21, 0
      %s219 = sadd.s32 %s218, %s216
      %s220 = sadd.s32 %s219, %s214
      %s221 = smul.addr %s220, 4
      %s222 = scalar_lea.vmem %s3, %s221
      %p223 = scmp.lt.s32.totalorder %s19, 1
      %s224 = scalar_select %p223, %s19, 1
      %p225 = scmp.lt.s32.totalorder %s20, 0
      %s226 = scalar_select %p225, %s20, 0
      %s227 = smul.addr %s226, 8
      %s228 = smul.addr %s224, 8
      %s229 = sadd.s32 %s227, %s228
      %s230 = smul.addr %s229, 4
      %s231 = scalar_lea.vmem %s0, %s230
      %p232 = scmp.lt.s32.totalorder %s21, 0
      %s233 = scalar_select %p232, %s21, 0
      %s234 = smul.addr %s233, 4
      %s235 = scalar_lea.vmem %s1, %s234
      %p236 = scmp.lt.s32.totalorder %s21, 0
      %s237 = scalar_select %p236, %s21, 0
      %s238 = scalar_lea.vmem %s2, %s237
      %p239 = scmp.lt.s32.totalorder %s19, 1
      %s240 = scalar_select %p239, %s19, 1
      %p241 = scmp.lt.s32.totalorder %s20, 0
      %s242 = scalar_select %p241, %s20, 0
      %p243 = scmp.lt.s32.totalorder %s21, 0
      %s244 = scalar_select %p243, %s21, 0
      %s245 = sadd.s32 %s244, %s242
      %s246 = sadd.s32 %s245, %s240
      %s247 = smul.addr %s246, 4
      %s248 = scalar_lea.vmem %s3, %s247
      %v250 = vld [vmem:[%s231] sm:$0xff]
      %v251 = vld [vmem:[%s231 + $0x8] sm:$0xff]
      %v252 = vld [vmem:[%s235] sm:$0xf]
      %v253 = vld [vmem:[%s235 + $0x4] sm:$0xf]
      %v254 = vld [vmem:[%s235 + $0x8] sm:$0xf]
      %v255 = vld [vmem:[%s235 + $0xc] sm:$0xf]
      %v256 = vld [vmem:[%s235 + $0x10] sm:$0xf]
      %v257 = vld [vmem:[%s235 + $0x14] sm:$0xf]
      %v258 = vld [vmem:[%s235 + $0x18] sm:$0xf]
      %v259 = vld [vmem:[%s235 + $0x1c] sm:$0xf]
      %v260 = vld [vmem:[%s235 + $0x20] sm:$0xf]
      %v261 = vld [vmem:[%s235 + $0x24] sm:$0xf]
      %v262 = vld [vmem:[%s235 + $0x28] sm:$0xf]
      %v263 = vld [vmem:[%s235 + $0x2c] sm:$0xf]
      %v264 = vld [vmem:[%s235 + $0x30] sm:$0xf]
      %v265 = vld [vmem:[%s235 + $0x34] sm:$0xf]
      %v266 = vld [vmem:[%s235 + $0x38] sm:$0xf]
      %v267 = vld [vmem:[%s235 + $0x3c] sm:$0xf]
      %v268 = vld [vmem:[%s235 + $0x40] sm:$0xf]
      %v269 = vld [vmem:[%s235 + $0x44] sm:$0xf]
      %v270 = vld [vmem:[%s235 + $0x48] sm:$0xf]
      %v271 = vld [vmem:[%s235 + $0x4c] sm:$0xf]
      %v272 = vld [vmem:[%s235 + $0x50] sm:$0xf]
      %v273 = vld [vmem:[%s235 + $0x54] sm:$0xf]
      %v274 = vld [vmem:[%s235 + $0x58] sm:$0xf]
      %v275 = vld [vmem:[%s235 + $0x5c] sm:$0xf]
      %v276 = vld [vmem:[%s235 + $0x60] sm:$0xf]
      %v277 = vld [vmem:[%s235 + $0x64] sm:$0xf]
      %v278 = vld [vmem:[%s235 + $0x68] sm:$0xf]
      %v279 = vld [vmem:[%s235 + $0x6c] sm:$0xf]
      %v280 = vld [vmem:[%s235 + $0x70] sm:$0xf]
      %v281 = vld [vmem:[%s235 + $0x74] sm:$0xf]
      %v282 = vld [vmem:[%s235 + $0x78] sm:$0xf]
      %v283 = vld [vmem:[%s235 + $0x7c] sm:$0xf]
      %v284 = vld [vmem:[%s235 + $0x80] sm:$0xf]
      %v285 = vld [vmem:[%s235 + $0x84] sm:$0xf]
      %v286 = vld [vmem:[%s235 + $0x88] sm:$0xf]
      %v287 = vld [vmem:[%s235 + $0x8c] sm:$0xf]
      %v288 = vld [vmem:[%s235 + $0x90] sm:$0xf]
      %v289 = vld [vmem:[%s235 + $0x94] sm:$0xf]
      %v290 = vld [vmem:[%s235 + $0x98] sm:$0xf]
      %v291 = vld [vmem:[%s235 + $0x9c] sm:$0xf]
      %v292 = vld [vmem:[%s235 + $0xa0] sm:$0xf]
      %v293 = vld [vmem:[%s235 + $0xa4] sm:$0xf]
      %v294 = vld [vmem:[%s235 + $0xa8] sm:$0xf]
      %v295 = vld [vmem:[%s235 + $0xac] sm:$0xf]
      %v296 = vld [vmem:[%s235 + $0xb0] sm:$0xf]
      %v297 = vld [vmem:[%s235 + $0xb4] sm:$0xf]
      %v298 = vld [vmem:[%s235 + $0xb8] sm:$0xf]
      %v299 = vld [vmem:[%s235 + $0xbc] sm:$0xf]
      %v300 = vld [vmem:[%s235 + $0xc0] sm:$0xf]
      %v301 = vld [vmem:[%s235 + $0xc4] sm:$0xf]
      %v302 = vld [vmem:[%s235 + $0xc8] sm:$0xf]
      %v303 = vld [vmem:[%s235 + $0xcc] sm:$0xf]
      %v304 = vld [vmem:[%s235 + $0xd0] sm:$0xf]
      %v305 = vld [vmem:[%s235 + $0xd4] sm:$0xf]
      %v306 = vld [vmem:[%s235 + $0xd8] sm:$0xf]
      %v307 = vld [vmem:[%s235 + $0xdc] sm:$0xf]
      %v308 = vld [vmem:[%s235 + $0xe0] sm:$0xf]
      %v309 = vld [vmem:[%s235 + $0xe4] sm:$0xf]
      %v310 = vld [vmem:[%s235 + $0xe8] sm:$0xf]
      %v311 = vld [vmem:[%s235 + $0xec] sm:$0xf]
      %v312 = vld [vmem:[%s235 + $0xf0] sm:$0xf]
      %v313 = vld [vmem:[%s235 + $0xf4] sm:$0xf]
      %v314 = vld [vmem:[%s235 + $0xf8] sm:$0xf]
      %v315 = vld [vmem:[%s235 + $0xfc] sm:$0xf]
      %v316 = vld [vmem:[%s231] sm:$0xff]
      %v317 = vld [vmem:[%s231 + $0x8] sm:$0xff]
      %v318 = vld [vmem:[%s231 + $0x10] sm:$0x11]
      %v319 = vld [vmem:[%s231 + $0x18] sm:$0x11]
      %s320 = scalar_lea.vmem %s235, 256
      %v321 = vld [vmem:[%s320] sm:$0xf]
      %v322 = vld [vmem:[%s320 + $0x4] sm:$0xf]
      %v323 = vld [vmem:[%s320 + $0x8] sm:$0xf]
      %v324 = vld [vmem:[%s320 + $0xc] sm:$0xf]
      %v325 = vld [vmem:[%s320 + $0x10] sm:$0xf]
      %v326 = vld [vmem:[%s320 + $0x14] sm:$0xf]
      %v327 = vld [vmem:[%s320 + $0x18] sm:$0xf]
      %v328 = vld [vmem:[%s320 + $0x1c] sm:$0xf]
      %v329 = vld [vmem:[%s320 + $0x20] sm:$0xf]
      %v330 = vld [vmem:[%s320 + $0x24] sm:$0xf]
      %v331 = vld [vmem:[%s320 + $0x28] sm:$0xf]
      %v332 = vld [vmem:[%s320 + $0x2c] sm:$0xf]
      %v333 = vld [vmem:[%s320 + $0x30] sm:$0xf]
      %v334 = vld [vmem:[%s320 + $0x34] sm:$0xf]
      %v335 = vld [vmem:[%s320 + $0x38] sm:$0xf]
      %v336 = vld [vmem:[%s320 + $0x3c] sm:$0xf]
      %v337 = vld [vmem:[%s320 + $0x40] sm:$0xf]
      %v338 = vld [vmem:[%s320 + $0x44] sm:$0xf]
      %v339 = vld [vmem:[%s320 + $0x48] sm:$0xf]
      %v340 = vld [vmem:[%s320 + $0x4c] sm:$0xf]
      %v341 = vld [vmem:[%s320 + $0x50] sm:$0xf]
      %v342 = vld [vmem:[%s320 + $0x54] sm:$0xf]
      %v343 = vld [vmem:[%s320 + $0x58] sm:$0xf]
      %v344 = vld [vmem:[%s320 + $0x5c] sm:$0xf]
      %v345 = vld [vmem:[%s320 + $0x60] sm:$0xf]
      %v346 = vld [vmem:[%s320 + $0x64] sm:$0xf]
      %v347 = vld [vmem:[%s320 + $0x68] sm:$0xf]
      %v348 = vld [vmem:[%s320 + $0x6c] sm:$0xf]
      %v349 = vld [vmem:[%s320 + $0x70] sm:$0xf]
      %v350 = vld [vmem:[%s320 + $0x74] sm:$0xf]
      %v351 = vld [vmem:[%s320 + $0x78] sm:$0xf]
      %v352 = vld [vmem:[%s320 + $0x7c] sm:$0xf]
      %v353 = vld [vmem:[%s320 + $0x80] sm:$0xf]
      %v354 = vld [vmem:[%s320 + $0x84] sm:$0xf]
      %v355 = vld [vmem:[%s320 + $0x88] sm:$0xf]
      %v356 = vld [vmem:[%s320 + $0x8c] sm:$0xf]
      %v357 = vld [vmem:[%s320 + $0x90] sm:$0xf]
      %v358 = vld [vmem:[%s320 + $0x94] sm:$0xf]
      %v359 = vld [vmem:[%s320 + $0x98] sm:$0xf]
      %v360 = vld [vmem:[%s320 + $0x9c] sm:$0xf]
      %v361 = vld [vmem:[%s320 + $0xa0] sm:$0xf]
      %v362 = vld [vmem:[%s320 + $0xa4] sm:$0xf]
      %v363 = vld [vmem:[%s320 + $0xa8] sm:$0xf]
      %v364 = vld [vmem:[%s320 + $0xac] sm:$0xf]
      %v365 = vld [vmem:[%s320 + $0xb0] sm:$0xf]
      %v366 = vld [vmem:[%s320 + $0xb4] sm:$0xf]
      %v367 = vld [vmem:[%s320 + $0xb8] sm:$0xf]
      %v368 = vld [vmem:[%s320 + $0xbc] sm:$0xf]
      %v369 = vld [vmem:[%s320 + $0xc0] sm:$0xf]
      %v370 = vld [vmem:[%s320 + $0xc4] sm:$0xf]
      %v371 = vld [vmem:[%s320 + $0xc8] sm:$0xf]
      %v372 = vld [vmem:[%s320 + $0xcc] sm:$0xf]
      %v373 = vld [vmem:[%s320 + $0xd0] sm:$0xf]
      %v374 = vld [vmem:[%s320 + $0xd4] sm:$0xf]
      %v375 = vld [vmem:[%s320 + $0xd8] sm:$0xf]
      %v376 = vld [vmem:[%s320 + $0xdc] sm:$0xf]
      %v377 = vld [vmem:[%s320 + $0xe0] sm:$0xf]
      %v378 = vld [vmem:[%s320 + $0xe4] sm:$0xf]
      %v379 = vld [vmem:[%s320 + $0xe8] sm:$0xf]
      %v380 = vld [vmem:[%s320 + $0xec] sm:$0xf]
      %v381 = vld [vmem:[%s320 + $0xf0] sm:$0xf]
      %v382 = vld [vmem:[%s320 + $0xf4] sm:$0xf]
      %v383 = vld [vmem:[%s320 + $0xf8] sm:$0xf]
      %v384 = vld [vmem:[%s320 + $0xfc] sm:$0xf]
      %v389 = vunpack.c.l.b16 %v316
      %v390 = vunpack.c.h.b16 %v316
      %v391 = vunpack.c.l.b16 %v317
      %v392 = vunpack.c.h.b16 %v317
      %v393 = vunpack.c.l.b16 %v318
      %v394 = vunpack.c.h.b16 %v318
      %v395 = vunpack.c.l.b16 %v319
      %v396 = vunpack.c.h.b16 %v319
      %v397 = vpack.c.b16 %v393, %v389
      %v398 = vpack.c.b16 %v394, %v390
      %v399 = vpack.c.b16 %v395, %v391
      %v400 = vpack.c.b16 %v396, %v392
      %v402 = vshrl.u32 %v397, 16
      %v404 = vshll.u32 %v397, 16
      %v406 = vrot.slane %v404, 1
      %v407 = vor.u32 %v402, %v406
      %v409 = vshrl.u32 %v398, 16
      %v411 = vshll.u32 %v398, 16
      %v413 = vrot.slane %v411, 1
      %v414 = vor.u32 %v409, %v413
      %v416 = vshrl.u32 %v399, 16
      %v418 = vshll.u32 %v399, 16
      %v420 = vrot.slane %v418, 1
      %v421 = vor.u32 %v416, %v420
      %v423 = vshrl.u32 %v400, 16
      %v425 = vshll.u32 %v400, 16
      %v427 = vrot.slane %v425, 1
      %v428 = vor.u32 %v423, %v427
      %v497 = vunpack.c.l.b16 %v321
      %v498 = vunpack.c.l.b16 %v322
      %v499 = vunpack.c.l.b16 %v323
      %v500 = vunpack.c.l.b16 %v324
      %v501 = vunpack.c.l.b16 %v325
      %v502 = vunpack.c.l.b16 %v326
      %v503 = vunpack.c.l.b16 %v327
      %v504 = vunpack.c.l.b16 %v328
      %v505 = vunpack.c.l.b16 %v329
      %v506 = vunpack.c.l.b16 %v330
      %v507 = vunpack.c.l.b16 %v331
      %v508 = vunpack.c.l.b16 %v332
      %v509 = vunpack.c.l.b16 %v333
      %v510 = vunpack.c.l.b16 %v334
      %v511 = vunpack.c.l.b16 %v335
      %v512 = vunpack.c.l.b16 %v336
      %v513 = vunpack.c.l.b16 %v337
      %v514 = vunpack.c.l.b16 %v338
      %v515 = vunpack.c.l.b16 %v339
      %v516 = vunpack.c.l.b16 %v340
      %v517 = vunpack.c.l.b16 %v341
      %v518 = vunpack.c.l.b16 %v342
      %v519 = vunpack.c.l.b16 %v343
      %v520 = vunpack.c.l.b16 %v344
      %v521 = vunpack.c.l.b16 %v345
      %v522 = vunpack.c.l.b16 %v346
      %v523 = vunpack.c.l.b16 %v347
      %v524 = vunpack.c.l.b16 %v348
      %v525 = vunpack.c.l.b16 %v349
      %v526 = vunpack.c.l.b16 %v350
      %v527 = vunpack.c.l.b16 %v351
      %v528 = vunpack.c.l.b16 %v352
      %v529 = vunpack.c.l.b16 %v353
      %v530 = vunpack.c.l.b16 %v354
      %v531 = vunpack.c.l.b16 %v355
      %v532 = vunpack.c.l.b16 %v356
      %v533 = vunpack.c.l.b16 %v357
      %v534 = vunpack.c.l.b16 %v358
      %v535 = vunpack.c.l.b16 %v359
      %v536 = vunpack.c.l.b16 %v360
      %v537 = vunpack.c.l.b16 %v361
      %v538 = vunpack.c.l.b16 %v362
      %v539 = vunpack.c.l.b16 %v363
      %v540 = vunpack.c.l.b16 %v364
      %v541 = vunpack.c.l.b16 %v365
      %v542 = vunpack.c.l.b16 %v366
      %v543 = vunpack.c.l.b16 %v367
      %v544 = vunpack.c.l.b16 %v368
      %v545 = vunpack.c.l.b16 %v369
      %v546 = vunpack.c.l.b16 %v370
      %v547 = vunpack.c.l.b16 %v371
      %v548 = vunpack.c.l.b16 %v372
      %v549 = vunpack.c.l.b16 %v373
      %v550 = vunpack.c.l.b16 %v374
      %v551 = vunpack.c.l.b16 %v375
      %v552 = vunpack.c.l.b16 %v376
      %v553 = vunpack.c.l.b16 %v377
      %v554 = vunpack.c.l.b16 %v378
      %v555 = vunpack.c.l.b16 %v379
      %v556 = vunpack.c.l.b16 %v380
      %v557 = vunpack.c.l.b16 %v381
      %v558 = vunpack.c.l.b16 %v382
      %v559 = vunpack.c.l.b16 %v383
      %v560 = vunpack.c.l.b16 %v384
      %v561 = vpack.c.b16 %v498, %v497
      %v562 = vpack.c.b16 %v500, %v499
      %v563 = vpack.c.b16 %v502, %v501
      %v564 = vpack.c.b16 %v504, %v503
      %v565 = vpack.c.b16 %v506, %v505
      %v566 = vpack.c.b16 %v508, %v507
      %v567 = vpack.c.b16 %v510, %v509
      %v568 = vpack.c.b16 %v512, %v511
      %v569 = vpack.c.b16 %v514, %v513
      %v570 = vpack.c.b16 %v516, %v515
      %v571 = vpack.c.b16 %v518, %v517
      %v572 = vpack.c.b16 %v520, %v519
      %v573 = vpack.c.b16 %v522, %v521
      %v574 = vpack.c.b16 %v524, %v523
      %v575 = vpack.c.b16 %v526, %v525
      %v576 = vpack.c.b16 %v528, %v527
      %v577 = vpack.c.b16 %v530, %v529
      %v578 = vpack.c.b16 %v532, %v531
      %v579 = vpack.c.b16 %v534, %v533
      %v580 = vpack.c.b16 %v536, %v535
      %v581 = vpack.c.b16 %v538, %v537
      %v582 = vpack.c.b16 %v540, %v539
      %v583 = vpack.c.b16 %v542, %v541
      %v584 = vpack.c.b16 %v544, %v543
      %v585 = vpack.c.b16 %v546, %v545
      %v586 = vpack.c.b16 %v548, %v547
      %v587 = vpack.c.b16 %v550, %v549
      %v588 = vpack.c.b16 %v552, %v551
      %v589 = vpack.c.b16 %v554, %v553
      %v590 = vpack.c.b16 %v556, %v555
      %v591 = vpack.c.b16 %v558, %v557
      %v592 = vpack.c.b16 %v560, %v559
      %625 = vmatprep.subr.bf16.mxu0 0
      %626 = vmatpush1.bf16.msra.mxu0 %v568
      %627 = vmatprep.subr.bf16.mxu0 0
      %628 = vmatpush1.bf16.msra.mxu0 %v567
      %629 = vmatprep.subr.bf16.mxu0 0
      %630 = vmatpush1.bf16.msra.mxu0 %v566
      %631 = vmatprep.subr.bf16.mxu0 0
      %632 = vmatpush1.bf16.msra.mxu0 %v565
      %633 = vmatprep.subr.bf16.mxu0 0
      %634 = vmatpush1.bf16.msra.mxu0 %v564
      %635 = vmatprep.subr.bf16.mxu0 0
      %636 = vmatpush1.bf16.msra.mxu0 %v563
      %637 = vmatprep.subr.bf16.mxu0 0
      %638 = vmatpush1.bf16.msra.mxu0 %v562
      %639 = vmatprep.subr.bf16.mxu0 0
      %640 = vmatpush1.bf16.msra.mxu0 %v561
      %641 = vmatprep.subr.bf16.mxu0 0
      %642 = vmatpush2.bf16.msra.mxu0 %v576
      %643 = vmatprep.subr.bf16.mxu0 0
      %644 = vmatpush2.bf16.msra.mxu0 %v575
      %645 = vmatprep.subr.bf16.mxu0 0
      %646 = vmatpush2.bf16.msra.mxu0 %v574
      %647 = vmatprep.subr.bf16.mxu0 0
      %648 = vmatpush2.bf16.msra.mxu0 %v573
      %649 = vmatprep.subr.bf16.mxu0 0
      %650 = vmatpush2.bf16.msra.mxu0 %v572
      %651 = vmatprep.subr.bf16.mxu0 0
      %652 = vmatpush2.bf16.msra.mxu0 %v571
      %653 = vmatprep.subr.bf16.mxu0 0
      %654 = vmatpush2.bf16.msra.mxu0 %v570
      %655 = vmatprep.subr.bf16.mxu0 0
      %656 = vmatpush2.bf16.msra.mxu0 %v569
      %657 = vmatprep.mubr.bf16.mxu0 %v414
      %658 = vmatmul.mubr.bf16.gmra.mxu0 %v407
      %v659 = vpop.f32.mrf.mxu0
      %v660 = vadd.f32 0.0, %v659
      %v661 = vpop.f32.mrf.mxu0
      %v662 = vpop.f32.mrf.mxu0
      %v663 = vpop.f32.mrf.mxu0
      %664 = vdwg.mxu0
      %665 = vmatprep.subr.bf16.mxu0 0
      %666 = vmatpush1.bf16.msra.mxu0 %v584
      %667 = vmatprep.subr.bf16.mxu0 0
      %668 = vmatpush1.bf16.msra.mxu0 %v583
      %669 = vmatprep.subr.bf16.mxu0 0
      %670 = vmatpush1.bf16.msra.mxu0 %v582
      %671 = vmatprep.subr.bf16.mxu0 0
      %672 = vmatpush1.bf16.msra.mxu0 %v581
      %673 = vmatprep.subr.bf16.mxu0 0
      %674 = vmatpush1.bf16.msra.mxu0 %v580
      %675 = vmatprep.subr.bf16.mxu0 0
      %676 = vmatpush1.bf16.msra.mxu0 %v579
      %677 = vmatprep.subr.bf16.mxu0 0
      %678 = vmatpush1.bf16.msra.mxu0 %v578
      %679 = vmatprep.subr.bf16.mxu0 0
      %680 = vmatpush1.bf16.msra.mxu0 %v577
      %681 = vmatprep.subr.bf16.mxu0 0
      %682 = vmatpush2.bf16.msra.mxu0 %v592
      %683 = vmatprep.subr.bf16.mxu0 0
      %684 = vmatpush2.bf16.msra.mxu0 %v591
      %685 = vmatprep.subr.bf16.mxu0 0
      %686 = vmatpush2.bf16.msra.mxu0 %v590
      %687 = vmatprep.subr.bf16.mxu0 0
      %688 = vmatpush2.bf16.msra.mxu0 %v589
      %689 = vmatprep.subr.bf16.mxu0 0
      %690 = vmatpush2.bf16.msra.mxu0 %v588
      %691 = vmatprep.subr.bf16.mxu0 0
      %692 = vmatpush2.bf16.msra.mxu0 %v587
      %693 = vmatprep.subr.bf16.mxu0 0
      %694 = vmatpush2.bf16.msra.mxu0 %v586
      %695 = vmatprep.subr.bf16.mxu0 0
      %696 = vmatpush2.bf16.msra.mxu0 %v585
      %697 = vmatprep.mubr.bf16.mxu0 %v428
      %698 = vmatmul.mubr.bf16.gmra.mxu0 %v421
      %v699 = vpop.f32.mrf.mxu0
      %v700 = vadd.f32 %v660, %v699
      %v701 = vpop.f32.mrf.mxu0
      %v702 = vpop.f32.mrf.mxu0
      %v703 = vpop.f32.mrf.mxu0
      %704 = vdwg.mxu0
      %v707 = vunpack.c.l.b16 %v250
      %v708 = vunpack.c.h.b16 %v250
      %v709 = vunpack.c.l.b16 %v251
      %v710 = vunpack.c.h.b16 %v251
      %v711 = vpack.c.b16 %v707, %v707
      %v712 = vpack.c.b16 %v708, %v708
      %v713 = vpack.c.b16 %v709, %v709
      %v714 = vpack.c.b16 %v710, %v710
      %v783 = vunpack.c.l.b16 %v252
      %v784 = vunpack.c.l.b16 %v253
      %v785 = vunpack.c.l.b16 %v254
      %v786 = vunpack.c.l.b16 %v255
      %v787 = vunpack.c.l.b16 %v256
      %v788 = vunpack.c.l.b16 %v257
      %v789 = vunpack.c.l.b16 %v258
      %v790 = vunpack.c.l.b16 %v259
      %v791 = vunpack.c.l.b16 %v260
      %v792 = vunpack.c.l.b16 %v261
      %v793 = vunpack.c.l.b16 %v262
      %v794 = vunpack.c.l.b16 %v263
      %v795 = vunpack.c.l.b16 %v264
      %v796 = vunpack.c.l.b16 %v265
      %v797 = vunpack.c.l.b16 %v266
      %v798 = vunpack.c.l.b16 %v267
      %v799 = vunpack.c.l.b16 %v268
      %v800 = vunpack.c.l.b16 %v269
      %v801 = vunpack.c.l.b16 %v270
      %v802 = vunpack.c.l.b16 %v271
      %v803 = vunpack.c.l.b16 %v272
      %v804 = vunpack.c.l.b16 %v273
      %v805 = vunpack.c.l.b16 %v274
      %v806 = vunpack.c.l.b16 %v275
      %v807 = vunpack.c.l.b16 %v276
      %v808 = vunpack.c.l.b16 %v277
      %v809 = vunpack.c.l.b16 %v278
      %v810 = vunpack.c.l.b16 %v279
      %v811 = vunpack.c.l.b16 %v280
      %v812 = vunpack.c.l.b16 %v281
      %v813 = vunpack.c.l.b16 %v282
      %v814 = vunpack.c.l.b16 %v283
      %v815 = vunpack.c.l.b16 %v284
      %v816 = vunpack.c.l.b16 %v285
      %v817 = vunpack.c.l.b16 %v286
      %v818 = vunpack.c.l.b16 %v287
      %v819 = vunpack.c.l.b16 %v288
      %v820 = vunpack.c.l.b16 %v289
      %v821 = vunpack.c.l.b16 %v290
      %v822 = vunpack.c.l.b16 %v291
      %v823 = vunpack.c.l.b16 %v292
      %v824 = vunpack.c.l.b16 %v293
      %v825 = vunpack.c.l.b16 %v294
      %v826 = vunpack.c.l.b16 %v295
      %v827 = vunpack.c.l.b16 %v296
      %v828 = vunpack.c.l.b16 %v297
      %v829 = vunpack.c.l.b16 %v298
      %v830 = vunpack.c.l.b16 %v299
      %v831 = vunpack.c.l.b16 %v300
      %v832 = vunpack.c.l.b16 %v301
      %v833 = vunpack.c.l.b16 %v302
      %v834 = vunpack.c.l.b16 %v303
      %v835 = vunpack.c.l.b16 %v304
      %v836 = vunpack.c.l.b16 %v305
      %v837 = vunpack.c.l.b16 %v306
      %v838 = vunpack.c.l.b16 %v307
      %v839 = vunpack.c.l.b16 %v308
      %v840 = vunpack.c.l.b16 %v309
      %v841 = vunpack.c.l.b16 %v310
      %v842 = vunpack.c.l.b16 %v311
      %v843 = vunpack.c.l.b16 %v312
      %v844 = vunpack.c.l.b16 %v313
      %v845 = vunpack.c.l.b16 %v314
      %v846 = vunpack.c.l.b16 %v315
      %v847 = vpack.c.b16 %v784, %v783
      %v848 = vpack.c.b16 %v786, %v785
      %v849 = vpack.c.b16 %v788, %v787
      %v850 = vpack.c.b16 %v790, %v789
      %v851 = vpack.c.b16 %v792, %v791
      %v852 = vpack.c.b16 %v794, %v793
      %v853 = vpack.c.b16 %v796, %v795
      %v854 = vpack.c.b16 %v798, %v797
      %v855 = vpack.c.b16 %v800, %v799
      %v856 = vpack.c.b16 %v802, %v801
      %v857 = vpack.c.b16 %v804, %v803
      %v858 = vpack.c.b16 %v806, %v805
      %v859 = vpack.c.b16 %v808, %v807
      %v860 = vpack.c.b16 %v810, %v809
      %v861 = vpack.c.b16 %v812, %v811
      %v862 = vpack.c.b16 %v814, %v813
      %v863 = vpack.c.b16 %v816, %v815
      %v864 = vpack.c.b16 %v818, %v817
      %v865 = vpack.c.b16 %v820, %v819
      %v866 = vpack.c.b16 %v822, %v821
      %v867 = vpack.c.b16 %v824, %v823
      %v868 = vpack.c.b16 %v826, %v825
      %v869 = vpack.c.b16 %v828, %v827
      %v870 = vpack.c.b16 %v830, %v829
      %v871 = vpack.c.b16 %v832, %v831
      %v872 = vpack.c.b16 %v834, %v833
      %v873 = vpack.c.b16 %v836, %v835
      %v874 = vpack.c.b16 %v838, %v837
      %v875 = vpack.c.b16 %v840, %v839
      %v876 = vpack.c.b16 %v842, %v841
      %v877 = vpack.c.b16 %v844, %v843
      %v878 = vpack.c.b16 %v846, %v845
      %911 = vmatprep.subr.bf16.mxu0 0
      %912 = vmatpush1.bf16.msra.mxu0 %v854
      %913 = vmatprep.subr.bf16.mxu0 0
      %914 = vmatpush1.bf16.msra.mxu0 %v853
      %915 = vmatprep.subr.bf16.mxu0 0
      %916 = vmatpush1.bf16.msra.mxu0 %v852
      %917 = vmatprep.subr.bf16.mxu0 0
      %918 = vmatpush1.bf16.msra.mxu0 %v851
      %919 = vmatprep.subr.bf16.mxu0 0
      %920 = vmatpush1.bf16.msra.mxu0 %v850
      %921 = vmatprep.subr.bf16.mxu0 0
      %922 = vmatpush1.bf16.msra.mxu0 %v849
      %923 = vmatprep.subr.bf16.mxu0 0
      %924 = vmatpush1.bf16.msra.mxu0 %v848
      %925 = vmatprep.subr.bf16.mxu0 0
      %926 = vmatpush1.bf16.msra.mxu0 %v847
      %927 = vmatprep.subr.bf16.mxu0 0
      %928 = vmatpush2.bf16.msra.mxu0 %v862
      %929 = vmatprep.subr.bf16.mxu0 0
      %930 = vmatpush2.bf16.msra.mxu0 %v861
      %931 = vmatprep.subr.bf16.mxu0 0
      %932 = vmatpush2.bf16.msra.mxu0 %v860
      %933 = vmatprep.subr.bf16.mxu0 0
      %934 = vmatpush2.bf16.msra.mxu0 %v859
      %935 = vmatprep.subr.bf16.mxu0 0
      %936 = vmatpush2.bf16.msra.mxu0 %v858
      %937 = vmatprep.subr.bf16.mxu0 0
      %938 = vmatpush2.bf16.msra.mxu0 %v857
      %939 = vmatprep.subr.bf16.mxu0 0
      %940 = vmatpush2.bf16.msra.mxu0 %v856
      %941 = vmatprep.subr.bf16.mxu0 0
      %942 = vmatpush2.bf16.msra.mxu0 %v855
      %943 = vmatprep.mubr.bf16.mxu0 %v712
      %944 = vmatmul.mubr.bf16.gmra.mxu0 %v711
      %v945 = vpop.f32.mrf.mxu0
      %v946 = vadd.f32 %v700, %v945
      %v947 = vpop.f32.mrf.mxu0
      %v948 = vpop.f32.mrf.mxu0
      %v949 = vpop.f32.mrf.mxu0
      %950 = vdwg.mxu0
      %951 = vmatprep.subr.bf16.mxu0 0
      %952 = vmatpush1.bf16.msra.mxu0 %v870
      %953 = vmatprep.subr.bf16.mxu0 0
      %954 = vmatpush1.bf16.msra.mxu0 %v869
      %955 = vmatprep.subr.bf16.mxu0 0
      %956 = vmatpush1.bf16.msra.mxu0 %v868
      %957 = vmatprep.subr.bf16.mxu0 0
      %958 = vmatpush1.bf16.msra.mxu0 %v867
      %959 = vmatprep.subr.bf16.mxu0 0
      %960 = vmatpush1.bf16.msra.mxu0 %v866
      %961 = vmatprep.subr.bf16.mxu0 0
      %962 = vmatpush1.bf16.msra.mxu0 %v865
      %963 = vmatprep.subr.bf16.mxu0 0
      %964 = vmatpush1.bf16.msra.mxu0 %v864
      %965 = vmatprep.subr.bf16.mxu0 0
      %966 = vmatpush1.bf16.msra.mxu0 %v863
      %967 = vmatprep.subr.bf16.mxu0 0
      %968 = vmatpush2.bf16.msra.mxu0 %v878
      %969 = vmatprep.subr.bf16.mxu0 0
      %970 = vmatpush2.bf16.msra.mxu0 %v877
      %971 = vmatprep.subr.bf16.mxu0 0
      %972 = vmatpush2.bf16.msra.mxu0 %v876
      %973 = vmatprep.subr.bf16.mxu0 0
      %974 = vmatpush2.bf16.msra.mxu0 %v875
      %975 = vmatprep.subr.bf16.mxu0 0
      %976 = vmatpush2.bf16.msra.mxu0 %v874
      %977 = vmatprep.subr.bf16.mxu0 0
      %978 = vmatpush2.bf16.msra.mxu0 %v873
      %979 = vmatprep.subr.bf16.mxu0 0
      %980 = vmatpush2.bf16.msra.mxu0 %v872
      %981 = vmatprep.subr.bf16.mxu0 0
      %982 = vmatpush2.bf16.msra.mxu0 %v871
      %983 = vmatprep.mubr.bf16.mxu0 %v714
      %984 = vmatmul.mubr.bf16.gmra.mxu0 %v713
      %v985 = vpop.f32.mrf.mxu0
      %v986 = vadd.f32 %v946, %v985
      %v987 = vpop.f32.mrf.mxu0
      %v988 = vpop.f32.mrf.mxu0
      %v989 = vpop.f32.mrf.mxu0
      %990 = vdwg.mxu0
      %v991 = vld [vmem:[%s231] sm:$0xee]
      %v992 = vld [vmem:[%s231 + $0x8] sm:$0xee]
      %s993 = scalar_lea.vmem %s235, 512
      %v994 = vld [vmem:[%s993] sm:$0xf]
      %v995 = vld [vmem:[%s993 + $0x4] sm:$0xf]
      %v996 = vld [vmem:[%s993 + $0x8] sm:$0xf]
      %v997 = vld [vmem:[%s993 + $0xc] sm:$0xf]
      %v998 = vld [vmem:[%s993 + $0x10] sm:$0xf]
      %v999 = vld [vmem:[%s993 + $0x14] sm:$0xf]
      %v1000 = vld [vmem:[%s993 + $0x18] sm:$0xf]
      %v1001 = vld [vmem:[%s993 + $0x1c] sm:$0xf]
      %v1002 = vld [vmem:[%s993 + $0x20] sm:$0xf]
      %v1003 = vld [vmem:[%s993 + $0x24] sm:$0xf]
      %v1004 = vld [vmem:[%s993 + $0x28] sm:$0xf]
      %v1005 = vld [vmem:[%s993 + $0x2c] sm:$0xf]
      %v1006 = vld [vmem:[%s993 + $0x30] sm:$0xf]
      %v1007 = vld [vmem:[%s993 + $0x34] sm:$0xf]
      %v1008 = vld [vmem:[%s993 + $0x38] sm:$0xf]
      %v1009 = vld [vmem:[%s993 + $0x3c] sm:$0xf]
      %v1010 = vld [vmem:[%s993 + $0x40] sm:$0xf]
      %v1011 = vld [vmem:[%s993 + $0x44] sm:$0xf]
      %v1012 = vld [vmem:[%s993 + $0x48] sm:$0xf]
      %v1013 = vld [vmem:[%s993 + $0x4c] sm:$0xf]
      %v1014 = vld [vmem:[%s993 + $0x50] sm:$0xf]
      %v1015 = vld [vmem:[%s993 + $0x54] sm:$0xf]
      %v1016 = vld [vmem:[%s993 + $0x58] sm:$0xf]
      %v1017 = vld [vmem:[%s993 + $0x5c] sm:$0xf]
      %v1018 = vld [vmem:[%s993 + $0x60] sm:$0xf]
      %v1019 = vld [vmem:[%s993 + $0x64] sm:$0xf]
      %v1020 = vld [vmem:[%s993 + $0x68] sm:$0xf]
      %v1021 = vld [vmem:[%s993 + $0x6c] sm:$0xf]
      %v1022 = vld [vmem:[%s993 + $0x70] sm:$0xf]
      %v1023 = vld [vmem:[%s993 + $0x74] sm:$0xf]
      %v1024 = vld [vmem:[%s993 + $0x78] sm:$0xf]
      %v1025 = vld [vmem:[%s993 + $0x7c] sm:$0xf]
      %v1026 = vld [vmem:[%s993 + $0x80] sm:$0xf]
      %v1027 = vld [vmem:[%s993 + $0x84] sm:$0xf]
      %v1028 = vld [vmem:[%s993 + $0x88] sm:$0xf]
      %v1029 = vld [vmem:[%s993 + $0x8c] sm:$0xf]
      %v1030 = vld [vmem:[%s993 + $0x90] sm:$0xf]
      %v1031 = vld [vmem:[%s993 + $0x94] sm:$0xf]
      %v1032 = vld [vmem:[%s993 + $0x98] sm:$0xf]
      %v1033 = vld [vmem:[%s993 + $0x9c] sm:$0xf]
      %v1034 = vld [vmem:[%s993 + $0xa0] sm:$0xf]
      %v1035 = vld [vmem:[%s993 + $0xa4] sm:$0xf]
      %v1036 = vld [vmem:[%s993 + $0xa8] sm:$0xf]
      %v1037 = vld [vmem:[%s993 + $0xac] sm:$0xf]
      %v1038 = vld [vmem:[%s993 + $0xb0] sm:$0xf]
      %v1039 = vld [vmem:[%s993 + $0xb4] sm:$0xf]
      %v1040 = vld [vmem:[%s993 + $0xb8] sm:$0xf]
      %v1041 = vld [vmem:[%s993 + $0xbc] sm:$0xf]
      %v1042 = vld [vmem:[%s993 + $0xc0] sm:$0xf]
      %v1043 = vld [vmem:[%s993 + $0xc4] sm:$0xf]
      %v1044 = vld [vmem:[%s993 + $0xc8] sm:$0xf]
      %v1045 = vld [vmem:[%s993 + $0xcc] sm:$0xf]
      %v1046 = vld [vmem:[%s993 + $0xd0] sm:$0xf]
      %v1047 = vld [vmem:[%s993 + $0xd4] sm:$0xf]
      %v1048 = vld [vmem:[%s993 + $0xd8] sm:$0xf]
      %v1049 = vld [vmem:[%s993 + $0xdc] sm:$0xf]
      %v1050 = vld [vmem:[%s993 + $0xe0] sm:$0xf]
      %v1051 = vld [vmem:[%s993 + $0xe4] sm:$0xf]
      %v1052 = vld [vmem:[%s993 + $0xe8] sm:$0xf]
      %v1053 = vld [vmem:[%s993 + $0xec] sm:$0xf]
      %v1054 = vld [vmem:[%s993 + $0xf0] sm:$0xf]
      %v1055 = vld [vmem:[%s993 + $0xf4] sm:$0xf]
      %v1056 = vld [vmem:[%s993 + $0xf8] sm:$0xf]
      %v1057 = vld [vmem:[%s993 + $0xfc] sm:$0xf]
      %v1060 = vunpack.c.l.b16 %v991
      %v1061 = vunpack.c.h.b16 %v991
      %v1062 = vunpack.c.l.b16 %v992
      %v1063 = vunpack.c.h.b16 %v992
      %v1064 = vpack.c.b16 %v393, %v1060
      %v1065 = vpack.c.b16 %v394, %v1061
      %v1066 = vpack.c.b16 %v395, %v1062
      %v1067 = vpack.c.b16 %v396, %v1063
      %v1068 = vrot.slane %v1064, 1
      %v1069 = vrot.slane %v1065, 1
      %v1070 = vrot.slane %v1066, 1
      %v1071 = vrot.slane %v1067, 1
      %v1140 = vunpack.c.l.b16 %v994
      %v1141 = vunpack.c.l.b16 %v995
      %v1142 = vunpack.c.l.b16 %v996
      %v1143 = vunpack.c.l.b16 %v997
      %v1144 = vunpack.c.l.b16 %v998
      %v1145 = vunpack.c.l.b16 %v999
      %v1146 = vunpack.c.l.b16 %v1000
      %v1147 = vunpack.c.l.b16 %v1001
      %v1148 = vunpack.c.l.b16 %v1002
      %v1149 = vunpack.c.l.b16 %v1003
      %v1150 = vunpack.c.l.b16 %v1004
      %v1151 = vunpack.c.l.b16 %v1005
      %v1152 = vunpack.c.l.b16 %v1006
      %v1153 = vunpack.c.l.b16 %v1007
      %v1154 = vunpack.c.l.b16 %v1008
      %v1155 = vunpack.c.l.b16 %v1009
      %v1156 = vunpack.c.l.b16 %v1010
      %v1157 = vunpack.c.l.b16 %v1011
      %v1158 = vunpack.c.l.b16 %v1012
      %v1159 = vunpack.c.l.b16 %v1013
      %v1160 = vunpack.c.l.b16 %v1014
      %v1161 = vunpack.c.l.b16 %v1015
      %v1162 = vunpack.c.l.b16 %v1016
      %v1163 = vunpack.c.l.b16 %v1017
      %v1164 = vunpack.c.l.b16 %v1018
      %v1165 = vunpack.c.l.b16 %v1019
      %v1166 = vunpack.c.l.b16 %v1020
      %v1167 = vunpack.c.l.b16 %v1021
      %v1168 = vunpack.c.l.b16 %v1022
      %v1169 = vunpack.c.l.b16 %v1023
      %v1170 = vunpack.c.l.b16 %v1024
      %v1171 = vunpack.c.l.b16 %v1025
      %v1172 = vunpack.c.l.b16 %v1026
      %v1173 = vunpack.c.l.b16 %v1027
      %v1174 = vunpack.c.l.b16 %v1028
      %v1175 = vunpack.c.l.b16 %v1029
      %v1176 = vunpack.c.l.b16 %v1030
      %v1177 = vunpack.c.l.b16 %v1031
      %v1178 = vunpack.c.l.b16 %v1032
      %v1179 = vunpack.c.l.b16 %v1033
      %v1180 = vunpack.c.l.b16 %v1034
      %v1181 = vunpack.c.l.b16 %v1035
      %v1182 = vunpack.c.l.b16 %v1036
      %v1183 = vunpack.c.l.b16 %v1037
      %v1184 = vunpack.c.l.b16 %v1038
      %v1185 = vunpack.c.l.b16 %v1039
      %v1186 = vunpack.c.l.b16 %v1040
      %v1187 = vunpack.c.l.b16 %v1041
      %v1188 = vunpack.c.l.b16 %v1042
      %v1189 = vunpack.c.l.b16 %v1043
      %v1190 = vunpack.c.l.b16 %v1044
      %v1191 = vunpack.c.l.b16 %v1045
      %v1192 = vunpack.c.l.b16 %v1046
      %v1193 = vunpack.c.l.b16 %v1047
      %v1194 = vunpack.c.l.b16 %v1048
      %v1195 = vunpack.c.l.b16 %v1049
      %v1196 = vunpack.c.l.b16 %v1050
      %v1197 = vunpack.c.l.b16 %v1051
      %v1198 = vunpack.c.l.b16 %v1052
      %v1199 = vunpack.c.l.b16 %v1053
      %v1200 = vunpack.c.l.b16 %v1054
      %v1201 = vunpack.c.l.b16 %v1055
      %v1202 = vunpack.c.l.b16 %v1056
      %v1203 = vunpack.c.l.b16 %v1057
      %v1204 = vpack.c.b16 %v1141, %v1140
      %v1205 = vpack.c.b16 %v1143, %v1142
      %v1206 = vpack.c.b16 %v1145, %v1144
      %v1207 = vpack.c.b16 %v1147, %v1146
      %v1208 = vpack.c.b16 %v1149, %v1148
      %v1209 = vpack.c.b16 %v1151, %v1150
      %v1210 = vpack.c.b16 %v1153, %v1152
      %v1211 = vpack.c.b16 %v1155, %v1154
      %v1212 = vpack.c.b16 %v1157, %v1156
      %v1213 = vpack.c.b16 %v1159, %v1158
      %v1214 = vpack.c.b16 %v1161, %v1160
      %v1215 = vpack.c.b16 %v1163, %v1162
      %v1216 = vpack.c.b16 %v1165, %v1164
      %v1217 = vpack.c.b16 %v1167, %v1166
      %v1218 = vpack.c.b16 %v1169, %v1168
      %v1219 = vpack.c.b16 %v1171, %v1170
      %v1220 = vpack.c.b16 %v1173, %v1172
      %v1221 = vpack.c.b16 %v1175, %v1174
      %v1222 = vpack.c.b16 %v1177, %v1176
      %v1223 = vpack.c.b16 %v1179, %v1178
      %v1224 = vpack.c.b16 %v1181, %v1180
      %v1225 = vpack.c.b16 %v1183, %v1182
      %v1226 = vpack.c.b16 %v1185, %v1184
      %v1227 = vpack.c.b16 %v1187, %v1186
      %v1228 = vpack.c.b16 %v1189, %v1188
      %v1229 = vpack.c.b16 %v1191, %v1190
      %v1230 = vpack.c.b16 %v1193, %v1192
      %v1231 = vpack.c.b16 %v1195, %v1194
      %v1232 = vpack.c.b16 %v1197, %v1196
      %v1233 = vpack.c.b16 %v1199, %v1198
      %v1234 = vpack.c.b16 %v1201, %v1200
      %v1235 = vpack.c.b16 %v1203, %v1202
      %1268 = vmatprep.subr.bf16.mxu0 0
      %1269 = vmatpush1.bf16.msra.mxu0 %v1211
      %1270 = vmatprep.subr.bf16.mxu0 0
      %1271 = vmatpush1.bf16.msra.mxu0 %v1210
      %1272 = vmatprep.subr.bf16.mxu0 0
      %1273 = vmatpush1.bf16.msra.mxu0 %v1209
      %1274 = vmatprep.subr.bf16.mxu0 0
      %1275 = vmatpush1.bf16.msra.mxu0 %v1208
      %1276 = vmatprep.subr.bf16.mxu0 0
      %1277 = vmatpush1.bf16.msra.mxu0 %v1207
      %1278 = vmatprep.subr.bf16.mxu0 0
      %1279 = vmatpush1.bf16.msra.mxu0 %v1206
      %1280 = vmatprep.subr.bf16.mxu0 0
      %1281 = vmatpush1.bf16.msra.mxu0 %v1205
      %1282 = vmatprep.subr.bf16.mxu0 0
      %1283 = vmatpush1.bf16.msra.mxu0 %v1204
      %1284 = vmatprep.subr.bf16.mxu0 0
      %1285 = vmatpush2.bf16.msra.mxu0 %v1219
      %1286 = vmatprep.subr.bf16.mxu0 0
      %1287 = vmatpush2.bf16.msra.mxu0 %v1218
      %1288 = vmatprep.subr.bf16.mxu0 0
      %1289 = vmatpush2.bf16.msra.mxu0 %v1217
      %1290 = vmatprep.subr.bf16.mxu0 0
      %1291 = vmatpush2.bf16.msra.mxu0 %v1216
      %1292 = vmatprep.subr.bf16.mxu0 0
      %1293 = vmatpush2.bf16.msra.mxu0 %v1215
      %1294 = vmatprep.subr.bf16.mxu0 0
      %1295 = vmatpush2.bf16.msra.mxu0 %v1214
      %1296 = vmatprep.subr.bf16.mxu0 0
      %1297 = vmatpush2.bf16.msra.mxu0 %v1213
      %1298 = vmatprep.subr.bf16.mxu0 0
      %1299 = vmatpush2.bf16.msra.mxu0 %v1212
      %1300 = vmatprep.mubr.bf16.mxu0 %v1069
      %1301 = vmatmul.mubr.bf16.gmra.mxu0 %v1068
      %v1302 = vpop.f32.mrf.mxu0
      %v1303 = vadd.f32 0.0, %v1302
      %v1304 = vpop.f32.mrf.mxu0
      %v1305 = vpop.f32.mrf.mxu0
      %v1306 = vpop.f32.mrf.mxu0
      %1307 = vdwg.mxu0
      %1308 = vmatprep.subr.bf16.mxu0 0
      %1309 = vmatpush1.bf16.msra.mxu0 %v1227
      %1310 = vmatprep.subr.bf16.mxu0 0
      %1311 = vmatpush1.bf16.msra.mxu0 %v1226
      %1312 = vmatprep.subr.bf16.mxu0 0
      %1313 = vmatpush1.bf16.msra.mxu0 %v1225
      %1314 = vmatprep.subr.bf16.mxu0 0
      %1315 = vmatpush1.bf16.msra.mxu0 %v1224
      %1316 = vmatprep.subr.bf16.mxu0 0
      %1317 = vmatpush1.bf16.msra.mxu0 %v1223
      %1318 = vmatprep.subr.bf16.mxu0 0
      %1319 = vmatpush1.bf16.msra.mxu0 %v1222
      %1320 = vmatprep.subr.bf16.mxu0 0
      %1321 = vmatpush1.bf16.msra.mxu0 %v1221
      %1322 = vmatprep.subr.bf16.mxu0 0
      %1323 = vmatpush1.bf16.msra.mxu0 %v1220
      %1324 = vmatprep.subr.bf16.mxu0 0
      %1325 = vmatpush2.bf16.msra.mxu0 %v1235
      %1326 = vmatprep.subr.bf16.mxu0 0
      %1327 = vmatpush2.bf16.msra.mxu0 %v1234
      %1328 = vmatprep.subr.bf16.mxu0 0
      %1329 = vmatpush2.bf16.msra.mxu0 %v1233
      %1330 = vmatprep.subr.bf16.mxu0 0
      %1331 = vmatpush2.bf16.msra.mxu0 %v1232
      %1332 = vmatprep.subr.bf16.mxu0 0
      %1333 = vmatpush2.bf16.msra.mxu0 %v1231
      %1334 = vmatprep.subr.bf16.mxu0 0
      %1335 = vmatpush2.bf16.msra.mxu0 %v1230
      %1336 = vmatprep.subr.bf16.mxu0 0
      %1337 = vmatpush2.bf16.msra.mxu0 %v1229
      %1338 = vmatprep.subr.bf16.mxu0 0
      %1339 = vmatpush2.bf16.msra.mxu0 %v1228
      %1340 = vmatprep.mubr.bf16.mxu0 %v1071
      %1341 = vmatmul.mubr.bf16.gmra.mxu0 %v1070
      %v1342 = vpop.f32.mrf.mxu0
      %v1343 = vadd.f32 %v1303, %v1342
      %v1344 = vpop.f32.mrf.mxu0
      %v1345 = vpop.f32.mrf.mxu0
      %v1346 = vpop.f32.mrf.mxu0
      %1347 = vdwg.mxu0
      %v1348 = vadd.f32 %v986, %v1343
      %v1349 = vld [vmem:[%s231 + $0x10] sm:$0x33]
      %v1350 = vld [vmem:[%s231 + $0x18] sm:$0x33]
      %s1351 = scalar_lea.vmem %s235, 768
      %v1352 = vld [vmem:[%s1351] sm:$0xf]
      %v1353 = vld [vmem:[%s1351 + $0x4] sm:$0xf]
      %v1354 = vld [vmem:[%s1351 + $0x8] sm:$0xf]
      %v1355 = vld [vmem:[%s1351 + $0xc] sm:$0xf]
      %v1356 = vld [vmem:[%s1351 + $0x10] sm:$0xf]
      %v1357 = vld [vmem:[%s1351 + $0x14] sm:$0xf]
      %v1358 = vld [vmem:[%s1351 + $0x18] sm:$0xf]
      %v1359 = vld [vmem:[%s1351 + $0x1c] sm:$0xf]
      %v1360 = vld [vmem:[%s1351 + $0x20] sm:$0xf]
      %v1361 = vld [vmem:[%s1351 + $0x24] sm:$0xf]
      %v1362 = vld [vmem:[%s1351 + $0x28] sm:$0xf]
      %v1363 = vld [vmem:[%s1351 + $0x2c] sm:$0xf]
      %v1364 = vld [vmem:[%s1351 + $0x30] sm:$0xf]
      %v1365 = vld [vmem:[%s1351 + $0x34] sm:$0xf]
      %v1366 = vld [vmem:[%s1351 + $0x38] sm:$0xf]
      %v1367 = vld [vmem:[%s1351 + $0x3c] sm:$0xf]
      %v1368 = vld [vmem:[%s1351 + $0x40] sm:$0xf]
      %v1369 = vld [vmem:[%s1351 + $0x44] sm:$0xf]
      %v1370 = vld [vmem:[%s1351 + $0x48] sm:$0xf]
      %v1371 = vld [vmem:[%s1351 + $0x4c] sm:$0xf]
      %v1372 = vld [vmem:[%s1351 + $0x50] sm:$0xf]
      %v1373 = vld [vmem:[%s1351 + $0x54] sm:$0xf]
      %v1374 = vld [vmem:[%s1351 + $0x58] sm:$0xf]
      %v1375 = vld [vmem:[%s1351 + $0x5c] sm:$0xf]
      %v1376 = vld [vmem:[%s1351 + $0x60] sm:$0xf]
      %v1377 = vld [vmem:[%s1351 + $0x64] sm:$0xf]
      %v1378 = vld [vmem:[%s1351 + $0x68] sm:$0xf]
      %v1379 = vld [vmem:[%s1351 + $0x6c] sm:$0xf]
      %v1380 = vld [vmem:[%s1351 + $0x70] sm:$0xf]
      %v1381 = vld [vmem:[%s1351 + $0x74] sm:$0xf]
      %v1382 = vld [vmem:[%s1351 + $0x78] sm:$0xf]
      %v1383 = vld [vmem:[%s1351 + $0x7c] sm:$0xf]
      %v1384 = vld [vmem:[%s1351 + $0x80] sm:$0xf]
      %v1385 = vld [vmem:[%s1351 + $0x84] sm:$0xf]
      %v1386 = vld [vmem:[%s1351 + $0x88] sm:$0xf]
      %v1387 = vld [vmem:[%s1351 + $0x8c] sm:$0xf]
      %v1388 = vld [vmem:[%s1351 + $0x90] sm:$0xf]
      %v1389 = vld [vmem:[%s1351 + $0x94] sm:$0xf]
      %v1390 = vld [vmem:[%s1351 + $0x98] sm:$0xf]
      %v1391 = vld [vmem:[%s1351 + $0x9c] sm:$0xf]
      %v1392 = vld [vmem:[%s1351 + $0xa0] sm:$0xf]
      %v1393 = vld [vmem:[%s1351 + $0xa4] sm:$0xf]
      %v1394 = vld [vmem:[%s1351 + $0xa8] sm:$0xf]
      %v1395 = vld [vmem:[%s1351 + $0xac] sm:$0xf]
      %v1396 = vld [vmem:[%s1351 + $0xb0] sm:$0xf]
      %v1397 = vld [vmem:[%s1351 + $0xb4] sm:$0xf]
      %v1398 = vld [vmem:[%s1351 + $0xb8] sm:$0xf]
      %v1399 = vld [vmem:[%s1351 + $0xbc] sm:$0xf]
      %v1400 = vld [vmem:[%s1351 + $0xc0] sm:$0xf]
      %v1401 = vld [vmem:[%s1351 + $0xc4] sm:$0xf]
      %v1402 = vld [vmem:[%s1351 + $0xc8] sm:$0xf]
      %v1403 = vld [vmem:[%s1351 + $0xcc] sm:$0xf]
      %v1404 = vld [vmem:[%s1351 + $0xd0] sm:$0xf]
      %v1405 = vld [vmem:[%s1351 + $0xd4] sm:$0xf]
      %v1406 = vld [vmem:[%s1351 + $0xd8] sm:$0xf]
      %v1407 = vld [vmem:[%s1351 + $0xdc] sm:$0xf]
      %v1408 = vld [vmem:[%s1351 + $0xe0] sm:$0xf]
      %v1409 = vld [vmem:[%s1351 + $0xe4] sm:$0xf]
      %v1410 = vld [vmem:[%s1351 + $0xe8] sm:$0xf]
      %v1411 = vld [vmem:[%s1351 + $0xec] sm:$0xf]
      %v1412 = vld [vmem:[%s1351 + $0xf0] sm:$0xf]
      %v1413 = vld [vmem:[%s1351 + $0xf4] sm:$0xf]
      %v1414 = vld [vmem:[%s1351 + $0xf8] sm:$0xf]
      %v1415 = vld [vmem:[%s1351 + $0xfc] sm:$0xf]
      %v1418 = vunpack.c.l.b16 %v1349
      %v1419 = vunpack.c.h.b16 %v1349
      %v1420 = vunpack.c.l.b16 %v1350
      %v1421 = vunpack.c.h.b16 %v1350
      %v1422 = vpack.c.b16 %v1418, %v1060
      %v1423 = vpack.c.b16 %v1419, %v1061
      %v1424 = vpack.c.b16 %v1420, %v1062
      %v1425 = vpack.c.b16 %v1421, %v1063
      %v1427 = vshrl.u32 %v1422, 16
      %v1429 = vrot.slane %v1427, 1
      %v1430 = vshll.u32 %v1422, 16
      %v1432 = vrot.slane %v1430, 2
      %v1433 = vor.u32 %v1429, %v1432
      %v1435 = vshrl.u32 %v1423, 16
      %v1437 = vrot.slane %v1435, 1
      %v1438 = vshll.u32 %v1423, 16
      %v1440 = vrot.slane %v1438, 2
      %v1441 = vor.u32 %v1437, %v1440
      %v1443 = vshrl.u32 %v1424, 16
      %v1445 = vrot.slane %v1443, 1
      %v1446 = vshll.u32 %v1424, 16
      %v1448 = vrot.slane %v1446, 2
      %v1449 = vor.u32 %v1445, %v1448
      %v1451 = vshrl.u32 %v1425, 16
      %v1453 = vrot.slane %v1451, 1
      %v1454 = vshll.u32 %v1425, 16
      %v1456 = vrot.slane %v1454, 2
      %v1457 = vor.u32 %v1453, %v1456
      %v1526 = vunpack.c.l.b16 %v1352
      %v1527 = vunpack.c.l.b16 %v1353
      %v1528 = vunpack.c.l.b16 %v1354
      %v1529 = vunpack.c.l.b16 %v1355
      %v1530 = vunpack.c.l.b16 %v1356
      %v1531 = vunpack.c.l.b16 %v1357
      %v1532 = vunpack.c.l.b16 %v1358
      %v1533 = vunpack.c.l.b16 %v1359
      %v1534 = vunpack.c.l.b16 %v1360
      %v1535 = vunpack.c.l.b16 %v1361
      %v1536 = vunpack.c.l.b16 %v1362
      %v1537 = vunpack.c.l.b16 %v1363
      %v1538 = vunpack.c.l.b16 %v1364
      %v1539 = vunpack.c.l.b16 %v1365
      %v1540 = vunpack.c.l.b16 %v1366
      %v1541 = vunpack.c.l.b16 %v1367
      %v1542 = vunpack.c.l.b16 %v1368
      %v1543 = vunpack.c.l.b16 %v1369
      %v1544 = vunpack.c.l.b16 %v1370
      %v1545 = vunpack.c.l.b16 %v1371
      %v1546 = vunpack.c.l.b16 %v1372
      %v1547 = vunpack.c.l.b16 %v1373
      %v1548 = vunpack.c.l.b16 %v1374
      %v1549 = vunpack.c.l.b16 %v1375
      %v1550 = vunpack.c.l.b16 %v1376
      %v1551 = vunpack.c.l.b16 %v1377
      %v1552 = vunpack.c.l.b16 %v1378
      %v1553 = vunpack.c.l.b16 %v1379
      %v1554 = vunpack.c.l.b16 %v1380
      %v1555 = vunpack.c.l.b16 %v1381
      %v1556 = vunpack.c.l.b16 %v1382
      %v1557 = vunpack.c.l.b16 %v1383
      %v1558 = vunpack.c.l.b16 %v1384
      %v1559 = vunpack.c.l.b16 %v1385
      %v1560 = vunpack.c.l.b16 %v1386
      %v1561 = vunpack.c.l.b16 %v1387
      %v1562 = vunpack.c.l.b16 %v1388
      %v1563 = vunpack.c.l.b16 %v1389
      %v1564 = vunpack.c.l.b16 %v1390
      %v1565 = vunpack.c.l.b16 %v1391
      %v1566 = vunpack.c.l.b16 %v1392
      %v1567 = vunpack.c.l.b16 %v1393
      %v1568 = vunpack.c.l.b16 %v1394
      %v1569 = vunpack.c.l.b16 %v1395
      %v1570 = vunpack.c.l.b16 %v1396
      %v1571 = vunpack.c.l.b16 %v1397
      %v1572 = vunpack.c.l.b16 %v1398
      %v1573 = vunpack.c.l.b16 %v1399
      %v1574 = vunpack.c.l.b16 %v1400
      %v1575 = vunpack.c.l.b16 %v1401
      %v1576 = vunpack.c.l.b16 %v1402
      %v1577 = vunpack.c.l.b16 %v1403
      %v1578 = vunpack.c.l.b16 %v1404
      %v1579 = vunpack.c.l.b16 %v1405
      %v1580 = vunpack.c.l.b16 %v1406
      %v1581 = vunpack.c.l.b16 %v1407
      %v1582 = vunpack.c.l.b16 %v1408
      %v1583 = vunpack.c.l.b16 %v1409
      %v1584 = vunpack.c.l.b16 %v1410
      %v1585 = vunpack.c.l.b16 %v1411
      %v1586 = vunpack.c.l.b16 %v1412
      %v1587 = vunpack.c.l.b16 %v1413
      %v1588 = vunpack.c.l.b16 %v1414
      %v1589 = vunpack.c.l.b16 %v1415
      %v1590 = vpack.c.b16 %v1527, %v1526
      %v1591 = vpack.c.b16 %v1529, %v1528
      %v1592 = vpack.c.b16 %v1531, %v1530
      %v1593 = vpack.c.b16 %v1533, %v1532
      %v1594 = vpack.c.b16 %v1535, %v1534
      %v1595 = vpack.c.b16 %v1537, %v1536
      %v1596 = vpack.c.b16 %v1539, %v1538
      %v1597 = vpack.c.b16 %v1541, %v1540
      %v1598 = vpack.c.b16 %v1543, %v1542
      %v1599 = vpack.c.b16 %v1545, %v1544
      %v1600 = vpack.c.b16 %v1547, %v1546
      %v1601 = vpack.c.b16 %v1549, %v1548
      %v1602 = vpack.c.b16 %v1551, %v1550
      %v1603 = vpack.c.b16 %v1553, %v1552
      %v1604 = vpack.c.b16 %v1555, %v1554
      %v1605 = vpack.c.b16 %v1557, %v1556
      %v1606 = vpack.c.b16 %v1559, %v1558
      %v1607 = vpack.c.b16 %v1561, %v1560
      %v1608 = vpack.c.b16 %v1563, %v1562
      %v1609 = vpack.c.b16 %v1565, %v1564
      %v1610 = vpack.c.b16 %v1567, %v1566
      %v1611 = vpack.c.b16 %v1569, %v1568
      %v1612 = vpack.c.b16 %v1571, %v1570
      %v1613 = vpack.c.b16 %v1573, %v1572
      %v1614 = vpack.c.b16 %v1575, %v1574
      %v1615 = vpack.c.b16 %v1577, %v1576
      %v1616 = vpack.c.b16 %v1579, %v1578
      %v1617 = vpack.c.b16 %v1581, %v1580
      %v1618 = vpack.c.b16 %v1583, %v1582
      %v1619 = vpack.c.b16 %v1585, %v1584
      %v1620 = vpack.c.b16 %v1587, %v1586
      %v1621 = vpack.c.b16 %v1589, %v1588
      %1654 = vmatprep.subr.bf16.mxu0 0
      %1655 = vmatpush1.bf16.msra.mxu0 %v1597
      %1656 = vmatprep.subr.bf16.mxu0 0
      %1657 = vmatpush1.bf16.msra.mxu0 %v1596
      %1658 = vmatprep.subr.bf16.mxu0 0
      %1659 = vmatpush1.bf16.msra.mxu0 %v1595
      %1660 = vmatprep.subr.bf16.mxu0 0
      %1661 = vmatpush1.bf16.msra.mxu0 %v1594
      %1662 = vmatprep.subr.bf16.mxu0 0
      %1663 = vmatpush1.bf16.msra.mxu0 %v1593
      %1664 = vmatprep.subr.bf16.mxu0 0
      %1665 = vmatpush1.bf16.msra.mxu0 %v1592
      %1666 = vmatprep.subr.bf16.mxu0 0
      %1667 = vmatpush1.bf16.msra.mxu0 %v1591
      %1668 = vmatprep.subr.bf16.mxu0 0
      %1669 = vmatpush1.bf16.msra.mxu0 %v1590
      %1670 = vmatprep.subr.bf16.mxu0 0
      %1671 = vmatpush2.bf16.msra.mxu0 %v1605
      %1672 = vmatprep.subr.bf16.mxu0 0
      %1673 = vmatpush2.bf16.msra.mxu0 %v1604
      %1674 = vmatprep.subr.bf16.mxu0 0
      %1675 = vmatpush2.bf16.msra.mxu0 %v1603
      %1676 = vmatprep.subr.bf16.mxu0 0
      %1677 = vmatpush2.bf16.msra.mxu0 %v1602
      %1678 = vmatprep.subr.bf16.mxu0 0
      %1679 = vmatpush2.bf16.msra.mxu0 %v1601
      %1680 = vmatprep.subr.bf16.mxu0 0
      %1681 = vmatpush2.bf16.msra.mxu0 %v1600
      %1682 = vmatprep.subr.bf16.mxu0 0
      %1683 = vmatpush2.bf16.msra.mxu0 %v1599
      %1684 = vmatprep.subr.bf16.mxu0 0
      %1685 = vmatpush2.bf16.msra.mxu0 %v1598
      %1686 = vmatprep.mubr.bf16.mxu0 %v1441
      %1687 = vmatmul.mubr.bf16.gmra.mxu0 %v1433
      %v1688 = vpop.f32.mrf.mxu0
      %v1689 = vadd.f32 0.0, %v1688
      %v1690 = vpop.f32.mrf.mxu0
      %v1691 = vpop.f32.mrf.mxu0
      %v1692 = vpop.f32.mrf.mxu0
      %1693 = vdwg.mxu0
      %1694 = vmatprep.subr.bf16.mxu0 0
      %1695 = vmatpush1.bf16.msra.mxu0 %v1613
      %1696 = vmatprep.subr.bf16.mxu0 0
      %1697 = vmatpush1.bf16.msra.mxu0 %v1612
      %1698 = vmatprep.subr.bf16.mxu0 0
      %1699 = vmatpush1.bf16.msra.mxu0 %v1611
      %1700 = vmatprep.subr.bf16.mxu0 0
      %1701 = vmatpush1.bf16.msra.mxu0 %v1610
      %1702 = vmatprep.subr.bf16.mxu0 0
      %1703 = vmatpush1.bf16.msra.mxu0 %v1609
      %1704 = vmatprep.subr.bf16.mxu0 0
      %1705 = vmatpush1.bf16.msra.mxu0 %v1608
      %1706 = vmatprep.subr.bf16.mxu0 0
      %1707 = vmatpush1.bf16.msra.mxu0 %v1607
      %1708 = vmatprep.subr.bf16.mxu0 0
      %1709 = vmatpush1.bf16.msra.mxu0 %v1606
      %1710 = vmatprep.subr.bf16.mxu0 0
      %1711 = vmatpush2.bf16.msra.mxu0 %v1621
      %1712 = vmatprep.subr.bf16.mxu0 0
      %1713 = vmatpush2.bf16.msra.mxu0 %v1620
      %1714 = vmatprep.subr.bf16.mxu0 0
      %1715 = vmatpush2.bf16.msra.mxu0 %v1619
      %1716 = vmatprep.subr.bf16.mxu0 0
      %1717 = vmatpush2.bf16.msra.mxu0 %v1618
      %1718 = vmatprep.subr.bf16.mxu0 0
      %1719 = vmatpush2.bf16.msra.mxu0 %v1617
      %1720 = vmatprep.subr.bf16.mxu0 0
      %1721 = vmatpush2.bf16.msra.mxu0 %v1616
      %1722 = vmatprep.subr.bf16.mxu0 0
      %1723 = vmatpush2.bf16.msra.mxu0 %v1615
      %1724 = vmatprep.subr.bf16.mxu0 0
      %1725 = vmatpush2.bf16.msra.mxu0 %v1614
      %1726 = vmatprep.mubr.bf16.mxu0 %v1457
      %1727 = vmatmul.mubr.bf16.gmra.mxu0 %v1449
      %v1728 = vpop.f32.mrf.mxu0
      %v1729 = vadd.f32 %v1689, %v1728
      %v1730 = vpop.f32.mrf.mxu0
      %v1731 = vpop.f32.mrf.mxu0
      %v1732 = vpop.f32.mrf.mxu0
      %1733 = vdwg.mxu0
      %v1734 = vadd.f32 %v1348, %v1729
      %v1735 = vld [vmem:[%s238] sm:$0x1]
      %v1737 = vlaneseq
      %v1738 = vshrl.u32 %v1737, 7
      %v1739 = vsub.s32 0, %v1738
      %v1740 = vrot.slane %v1735, %v1739
      %v1742 = vadd.f32 %v1734, %v1740
      %vm1743 = vcmp.ge.f32.partialorder %v1742, 0.0
      %v1744 = vmul.f32 %v1742, 0.2
      %v1745 = vsel %vm1743, %v1742, %v1744
      %v1746 = vpack.c.bf16 %v1745, %v1745
      %1747 = vst [vmem:[%s248] sm:$0xf] %v1746
      %p1748 = scmp.lt.s32.totalorder %s19, 1
      %s1749 = scalar_select %p1748, %s19, 1
      %p1750 = scmp.lt.s32.totalorder %s20, 0
      %s1751 = scalar_select %p1750, %s20, 0
      %p1752 = scmp.lt.s32.totalorder %s21, 0
      %s1753 = scalar_select %p1752, %s21, 0
      %s1754 = sadd.s32 %s1753, %s1751
      %s1755 = sadd.s32 %s1754, %s1749
      %s1756 = smul.addr %s1755, 4
      %s1757 = scalar_lea.vmem %s3, %s1756
      // Predicated region
      $region33: #{discriminator_forward.8} parent=31 // pred_check
        %p1758 = pneg %p135
      $region34: #{discriminator_forward.8} parent=31 // pred_check_branch
        %1760 = sbr.rel (%p1758) target = $region36
      $region35: #{discriminator_forward.8} parent=31 // pred_region
        _
      $region36: #{discriminator_forward.8} parent=31 // pred_fallthru
        _
    $region32: #{discriminator_forward.8} parent=5 // pred_fallthru
      _
    %p1761 = scmp.le.s32.totalorder 2, %s9
    // Predicated region
    $region37: #{discriminator_forward.8} parent=5 // pred_check
      %p1762 = pneg %p1761
    $region38: #{discriminator_forward.8} parent=5 // pred_check_branch
      %1764 = sbr.rel (%p1762) target = $region40
    $region39: #{discriminator_forward.8} parent=5 // pred_region
      %s1765 = ssub.s32 %s9, 2
      // Predicated region
      $region41: #{discriminator_forward.8} parent=39 // pred_check
        %p1766 = pneg %p141
      $region42: #{discriminator_forward.8} parent=39 // pred_check_branch
        %1768 = sbr.rel (%p1766) target = $region44
      $region43: #{discriminator_forward.8} parent=39 // pred_region
        %p1769 = scmp.lt.s32.totalorder %s22, 1
        %s1770 = scalar_select %p1769, %s22, 1
        %p1771 = scmp.lt.s32.totalorder %s23, 0
        %s1772 = scalar_select %p1771, %s23, 0
        %p1773 = scmp.lt.s32.totalorder %s24, 0
        %s1774 = scalar_select %p1773, %s24, 0
        %s1775 = sadd.s32 %s1774, %s1772
        %s1776 = sadd.s32 %s1775, %s1770
        %s1777 = smul.addr %s1776, 4
        %s1778 = scalar_lea.vmem %s3, %s1777
      $region44: #{discriminator_forward.8} parent=39 // pred_fallthru
        _
    $region40: #{discriminator_forward.8} parent=5 // pred_fallthru
      _
  $region6: #{discriminator_forward.8} parent=0 // loop_footer
    %s13 = sadd.s32 1, %s9
  $region7: #{discriminator_forward.8} parent=0 // loop_footer_branch
    %8 = sbr.rel target = $region3
  $region8: #{discriminator_forward.8} parent=0 // loop_exit
    _

</llo_original>
